<compile_context>
chip_gen: v6e
topology: v6e:2x2x1
jax: 0.10.0
libtpu: 0.0.40
codegen_flags: <defaults>
</compile_context>

<pallas_src>
import numpy as np
import jax
import jax.numpy as jnp
from jax.experimental import pallas as pl
from jax.experimental.pallas import tpu as pltpu


def _pair_indices(num_fields):
    rows, cols = [], []
    for i in range(num_fields - 1):
        for j in range(i + 1, num_fields):
            rows.append(i)
            cols.append(j)
    return rows, cols


def _make_afm_kernel(num_fields, embed_dim, attn_size, tb):
    rows, cols = _pair_indices(num_fields)
    P, D, A = len(rows), embed_dim, attn_size

    def afm_kernel(embT_ref, lin_ref, waugT_ref, ba_ref, wp_ref, bp_ref,
                   bfc_ref, out_ref):
        embT = embT_ref[...]                                     # (F*D, TB)

        # Pairwise interaction products, built directly (single concat) so the
        # (D, P*TB) gathered operands of the previous version never exist.
        # Batch on lanes, embedding dim on sublanes, the P pair blocks on
        # 128-aligned lane slabs -> every intermediate is fully lane-dense.
        innerT = jnp.concatenate(
            [embT[i * D:(i + 1) * D, :] * embT[j * D:(j + 1) * D, :]
             for i, j in zip(rows, cols)], axis=1)               # (D, P*TB)

        # One fused MXU matmul per grid step: rows 0..A-1 are the attention
        # pre-activations, row A is w_fc . inner (final FC folded in).
        z = jnp.dot(waugT_ref[...], innerT,
                    preferred_element_type=jnp.float32)          # (A+1, P*TB)

        attn = jnp.maximum(z[:A, :] + ba_ref[...], 0.0)          # (A, P*TB)
        score = (jnp.sum(attn * wp_ref[...], axis=0, keepdims=True)
                 + bp_ref[...])                                  # (1, P*TB)
        t = z[A:A + 1, :]                                        # (1, P*TB)

        # Softmax over the P pairs fused with the weighted reduction of t.
        # Each pair occupies a vreg-aligned lane slab of width TB.
        m = score[:, 0:tb]
        for p in range(1, P):
            m = jnp.maximum(m, score[:, p * tb:(p + 1) * tb])
        num = jnp.zeros_like(m)
        den = jnp.zeros_like(m)
        for p in range(P):
            e = jnp.exp(score[:, p * tb:(p + 1) * tb] - m)
            den = den + e
            num = num + e * t[:, p * tb:(p + 1) * tb]
        afm = num * pl.reciprocal(den, approx=True) + bfc_ref[...]  # (1, TB)
        out_ref[...] = afm + lin_ref[...]

    return afm_kernel


def afm_forward(x, params, field_dims, *, tb=256):
    """x: int32 (B, F).  Returns (out (B,), [None, None]) mirroring the module."""
    B, F = x.shape
    D = params["emb_table"].shape[1]
    A = params["w_attn"].shape[1]
    assert B % tb == 0 and tb % 128 == 0, "batch tile must be a multiple of 128"

    offsets = jnp.asarray(
        np.array((0, *np.cumsum(field_dims)[:-1]), dtype=np.int32))
    idx = x + offsets[None, :]                                   # (B, F)

    # Embedding / linear lookups stay as plain-XLA gathers; only the flattened
    # transposed (F*D, B) slab is DMA'd into the kernel (layout plumbing).
    embT = params["emb_table"][idx].reshape(B, F * D).T.astype(jnp.float32)  # (F*D, B)
    lin = (jnp.sum(params["fc_table"][idx], axis=1)
           + params["lin_bias"]).reshape(1, B).astype(jnp.float32)           # (1, B)

    waug_t = jnp.concatenate(
        [params["w_attn"], params["w_fc"]], axis=1).T.astype(jnp.float32)    # (A+1, D)
    ba_col = params["b_attn"].reshape(A, 1).astype(jnp.float32)
    wp_col = params["w_proj"].reshape(A, 1).astype(jnp.float32)
    bp = params["b_proj"].reshape(1, 1).astype(jnp.float32)
    bfc = params["b_fc"].reshape(1, 1).astype(jnp.float32)

    kernel = _make_afm_kernel(F, D, A, tb)
    full = lambda b: (0, 0)
    out = pl.pallas_call(
        kernel,
        out_shape=jax.ShapeDtypeStruct((1, B), jnp.float32),
        grid_spec=pltpu.PrefetchScalarGridSpec(
            num_scalar_prefetch=0,
            grid=(B // tb,),
            in_specs=[
                pl.BlockSpec((F * D, tb), lambda b: (0, b)),   # embT (lane-dense)
                pl.BlockSpec((1, tb), lambda b: (0, b)),       # linear term
                pl.BlockSpec((A + 1, D), full),                # [W_attn | w_fc]^T
                pl.BlockSpec((A, 1), full),                    # b_attn
                pl.BlockSpec((A, 1), full),                    # w_proj
                pl.BlockSpec((1, 1), full),                    # b_proj
                pl.BlockSpec((1, 1), full),                    # b_fc
            ],
            out_specs=pl.BlockSpec((1, tb), lambda b: (0, b)),
        ),
        compiler_params=pltpu.CompilerParams(
            dimension_semantics=("parallel",)),
    )(embT, lin, waug_t, ba_col, wp_col, bp, bfc)

    # return_l2=False path: no regularization terms are computed.
    return out.reshape(B), [None, None]


def afm_reference(x, params, field_dims):
    """Pure-JAX reference of the PyTorch forward (eval mode, no dropout)."""
    B, F = x.shape
    offsets = jnp.asarray(
        np.array((0, *np.cumsum(field_dims)[:-1]), dtype=np.int32))
    idx = x + offsets[None, :]
    emb = params["emb_table"][idx]                                 # (B, F, D)
    lin = jnp.sum(params["fc_table"][idx], axis=1) + params["lin_bias"]  # (B, 1)

    row, col = _pair_indices(F)
    p = emb[:, np.array(row)]
    q = emb[:, np.array(col)]
    inner = p * q                                                  # (B, P, D)
    attn = jax.nn.relu(jnp.einsum("bpd,da->bpa", inner, params["w_attn"])
                       + params["b_attn"])
    score = jnp.einsum("bpa,ao->bpo", attn, params["w_proj"]) + params["b_proj"]
    s = jax.nn.softmax(score, axis=1)                              # softmax over pairs
    attn_out = jnp.sum(s * inner, axis=1)                          # (B, D)
    afm = attn_out @ params["w_fc"] + params["b_fc"]               # (B, 1)
    return (afm + lin).squeeze(1)


def init_params(key, field_dims, embed_dim, attn_size):
    n_feat = int(sum(field_dims))
    ks = jax.random.split(key, 8)
    scale = 0.1
    return {
        "emb_table": scale * jax.random.normal(ks[0], (n_feat, embed_dim), jnp.float32),
        "fc_table":  scale * jax.random.normal(ks[1], (n_feat, 1), jnp.float32),
        "lin_bias":  scale * jax.random.normal(ks[2], (1,), jnp.float32),
        "w_attn":    scale * jax.random.normal(ks[3], (embed_dim, attn_size), jnp.float32),
        "b_attn":    scale * jax.random.normal(ks[4], (attn_size,), jnp.float32),
        "w_proj":    scale * jax.random.normal(ks[5], (attn_size, 1), jnp.float32),
        "b_proj":    scale * jax.random.normal(ks[6], (1,), jnp.float32),
        "w_fc":      scale * jax.random.normal(ks[7], (embed_dim, 1), jnp.float32),
        "b_fc":      jnp.zeros((1,), jnp.float32),
    }


if __name__ == "__main__":
    field_dims = [10, 10, 10, 10, 10, 10, 10, 10]   # F = 8 fields -> 28 pairs, F*D = 128
    embed_dim = 16
    attn_size = 8
    batch = 512                                     # TB=256 -> grid=(2,) (exercises tiling)

    key = jax.random.PRNGKey(0)
    kp, kx = jax.random.split(key)
    params = init_params(kp, field_dims, embed_dim, attn_size)

    # x: Long tensor (batch, num_fields), each entry indexes within its field
    maxes = jnp.asarray(np.array(field_dims, dtype=np.int32))
    x = (jax.random.randint(kx, (batch, len(field_dims)), 0, 1 << 30, jnp.int32)
         % maxes[None, :]).astype(jnp.int32)

    out, _regs = afm_forward(x, params, field_dims, tb=256)
    out = jax.block_until_ready(out)

    ref = afm_reference(x, params, field_dims)
    # Tolerance covers the EUP approximate reciprocal used for the softmax
    # denominator (everything else is f32); errors are ~1e-4 or below.
    np.testing.assert_allclose(np.asarray(out), np.asarray(ref),
                               rtol=1e-3, atol=1e-3)
    print("KERNEL_OK")
</pallas_src>

<mosaic_0001>
module attributes {stable_mosaic.version = 11 : i64} {
  func.func @afm_kernel(%arg0: i32, %arg1: memref<128x256xf32, #tpu.memory_space<vmem>>, %arg2: memref<1x256xf32, #tpu.memory_space<vmem>>, %arg3: memref<9x16xf32, #tpu.memory_space<vmem>>, %arg4: memref<8x1xf32, #tpu.memory_space<vmem>>, %arg5: memref<8x1xf32, #tpu.memory_space<vmem>>, %arg6: memref<1x1xf32, #tpu.memory_space<vmem>>, %arg7: memref<1x1xf32, #tpu.memory_space<vmem>>, %arg8: memref<1x256xf32, #tpu.memory_space<vmem>>) attributes {dimension_semantics = [#tpu.dimension_semantics<parallel>], iteration_bounds = array<i64: 2>, scalar_prefetch = 0 : i64, scratch_operands = 0 : i64, tpu.core_type = #tpu.core_type<tc>, window_params = [{transform_indices = @transform_0, window_bounds = array<i64: 128, 256>}, {transform_indices = @transform_1, window_bounds = array<i64: 1, 256>}, {pipeline_mode = #tpu.pipeline_mode<synchronous>, transform_indices = @transform_2, window_bounds = array<i64: 9, 16>}, {pipeline_mode = #tpu.pipeline_mode<synchronous>, transform_indices = @transform_3, window_bounds = array<i64: 8, 1>}, {pipeline_mode = #tpu.pipeline_mode<synchronous>, transform_indices = @transform_4, window_bounds = array<i64: 8, 1>}, {pipeline_mode = #tpu.pipeline_mode<synchronous>, transform_indices = @transform_5, window_bounds = array<i64: 1, 1>}, {pipeline_mode = #tpu.pipeline_mode<synchronous>, transform_indices = @transform_6, window_bounds = array<i64: 1, 1>}, {transform_indices = @transform_7, window_bounds = array<i64: 1, 256>}]} {
    %c0 = arith.constant 0 : index
    %c0_0 = arith.constant 0 : index
    %0 = vector.load %arg1[%c0, %c0_0] : memref<128x256xf32, #tpu.memory_space<vmem>>, vector<128x256xf32>
    %1 = vector.extract_strided_slice %0 {offsets = [0, 0], sizes = [16, 256], strides = [1, 1]} : vector<128x256xf32> to vector<16x256xf32>
    %2 = vector.extract_strided_slice %0 {offsets = [16, 0], sizes = [16, 256], strides = [1, 1]} : vector<128x256xf32> to vector<16x256xf32>
    %3 = arith.mulf %1, %2 : vector<16x256xf32>
    %4 = vector.extract_strided_slice %0 {offsets = [0, 0], sizes = [16, 256], strides = [1, 1]} : vector<128x256xf32> to vector<16x256xf32>
    %5 = vector.extract_strided_slice %0 {offsets = [32, 0], sizes = [16, 256], strides = [1, 1]} : vector<128x256xf32> to vector<16x256xf32>
    %6 = arith.mulf %4, %5 : vector<16x256xf32>
    %7 = vector.extract_strided_slice %0 {offsets = [0, 0], sizes = [16, 256], strides = [1, 1]} : vector<128x256xf32> to vector<16x256xf32>
    %8 = vector.extract_strided_slice %0 {offsets = [48, 0], sizes = [16, 256], strides = [1, 1]} : vector<128x256xf32> to vector<16x256xf32>
    %9 = arith.mulf %7, %8 : vector<16x256xf32>
    %10 = vector.extract_strided_slice %0 {offsets = [0, 0], sizes = [16, 256], strides = [1, 1]} : vector<128x256xf32> to vector<16x256xf32>
    %11 = vector.extract_strided_slice %0 {offsets = [64, 0], sizes = [16, 256], strides = [1, 1]} : vector<128x256xf32> to vector<16x256xf32>
    %12 = arith.mulf %10, %11 : vector<16x256xf32>
    %13 = vector.extract_strided_slice %0 {offsets = [0, 0], sizes = [16, 256], strides = [1, 1]} : vector<128x256xf32> to vector<16x256xf32>
    %14 = vector.extract_strided_slice %0 {offsets = [80, 0], sizes = [16, 256], strides = [1, 1]} : vector<128x256xf32> to vector<16x256xf32>
    %15 = arith.mulf %13, %14 : vector<16x256xf32>
    %16 = vector.extract_strided_slice %0 {offsets = [0, 0], sizes = [16, 256], strides = [1, 1]} : vector<128x256xf32> to vector<16x256xf32>
    %17 = vector.extract_strided_slice %0 {offsets = [96, 0], sizes = [16, 256], strides = [1, 1]} : vector<128x256xf32> to vector<16x256xf32>
    %18 = arith.mulf %16, %17 : vector<16x256xf32>
    %19 = vector.extract_strided_slice %0 {offsets = [0, 0], sizes = [16, 256], strides = [1, 1]} : vector<128x256xf32> to vector<16x256xf32>
    %20 = vector.extract_strided_slice %0 {offsets = [112, 0], sizes = [16, 256], strides = [1, 1]} : vector<128x256xf32> to vector<16x256xf32>
    %21 = arith.mulf %19, %20 : vector<16x256xf32>
    %22 = vector.extract_strided_slice %0 {offsets = [16, 0], sizes = [16, 256], strides = [1, 1]} : vector<128x256xf32> to vector<16x256xf32>
    %23 = vector.extract_strided_slice %0 {offsets = [32, 0], sizes = [16, 256], strides = [1, 1]} : vector<128x256xf32> to vector<16x256xf32>
    %24 = arith.mulf %22, %23 : vector<16x256xf32>
    %25 = vector.extract_strided_slice %0 {offsets = [16, 0], sizes = [16, 256], strides = [1, 1]} : vector<128x256xf32> to vector<16x256xf32>
    %26 = vector.extract_strided_slice %0 {offsets = [48, 0], sizes = [16, 256], strides = [1, 1]} : vector<128x256xf32> to vector<16x256xf32>
    %27 = arith.mulf %25, %26 : vector<16x256xf32>
    %28 = vector.extract_strided_slice %0 {offsets = [16, 0], sizes = [16, 256], strides = [1, 1]} : vector<128x256xf32> to vector<16x256xf32>
    %29 = vector.extract_strided_slice %0 {offsets = [64, 0], sizes = [16, 256], strides = [1, 1]} : vector<128x256xf32> to vector<16x256xf32>
    %30 = arith.mulf %28, %29 : vector<16x256xf32>
    %31 = vector.extract_strided_slice %0 {offsets = [16, 0], sizes = [16, 256], strides = [1, 1]} : vector<128x256xf32> to vector<16x256xf32>
    %32 = vector.extract_strided_slice %0 {offsets = [80, 0], sizes = [16, 256], strides = [1, 1]} : vector<128x256xf32> to vector<16x256xf32>
    %33 = arith.mulf %31, %32 : vector<16x256xf32>
    %34 = vector.extract_strided_slice %0 {offsets = [16, 0], sizes = [16, 256], strides = [1, 1]} : vector<128x256xf32> to vector<16x256xf32>
    %35 = vector.extract_strided_slice %0 {offsets = [96, 0], sizes = [16, 256], strides = [1, 1]} : vector<128x256xf32> to vector<16x256xf32>
    %36 = arith.mulf %34, %35 : vector<16x256xf32>
    %37 = vector.extract_strided_slice %0 {offsets = [16, 0], sizes = [16, 256], strides = [1, 1]} : vector<128x256xf32> to vector<16x256xf32>
    %38 = vector.extract_strided_slice %0 {offsets = [112, 0], sizes = [16, 256], strides = [1, 1]} : vector<128x256xf32> to vector<16x256xf32>
    %39 = arith.mulf %37, %38 : vector<16x256xf32>
    %40 = vector.extract_strided_slice %0 {offsets = [32, 0], sizes = [16, 256], strides = [1, 1]} : vector<128x256xf32> to vector<16x256xf32>
    %41 = vector.extract_strided_slice %0 {offsets = [48, 0], sizes = [16, 256], strides = [1, 1]} : vector<128x256xf32> to vector<16x256xf32>
    %42 = arith.mulf %40, %41 : vector<16x256xf32>
    %43 = vector.extract_strided_slice %0 {offsets = [32, 0], sizes = [16, 256], strides = [1, 1]} : vector<128x256xf32> to vector<16x256xf32>
    %44 = vector.extract_strided_slice %0 {offsets = [64, 0], sizes = [16, 256], strides = [1, 1]} : vector<128x256xf32> to vector<16x256xf32>
    %45 = arith.mulf %43, %44 : vector<16x256xf32>
    %46 = vector.extract_strided_slice %0 {offsets = [32, 0], sizes = [16, 256], strides = [1, 1]} : vector<128x256xf32> to vector<16x256xf32>
    %47 = vector.extract_strided_slice %0 {offsets = [80, 0], sizes = [16, 256], strides = [1, 1]} : vector<128x256xf32> to vector<16x256xf32>
    %48 = arith.mulf %46, %47 : vector<16x256xf32>
    %49 = vector.extract_strided_slice %0 {offsets = [32, 0], sizes = [16, 256], strides = [1, 1]} : vector<128x256xf32> to vector<16x256xf32>
    %50 = vector.extract_strided_slice %0 {offsets = [96, 0], sizes = [16, 256], strides = [1, 1]} : vector<128x256xf32> to vector<16x256xf32>
    %51 = arith.mulf %49, %50 : vector<16x256xf32>
    %52 = vector.extract_strided_slice %0 {offsets = [32, 0], sizes = [16, 256], strides = [1, 1]} : vector<128x256xf32> to vector<16x256xf32>
    %53 = vector.extract_strided_slice %0 {offsets = [112, 0], sizes = [16, 256], strides = [1, 1]} : vector<128x256xf32> to vector<16x256xf32>
    %54 = arith.mulf %52, %53 : vector<16x256xf32>
    %55 = vector.extract_strided_slice %0 {offsets = [48, 0], sizes = [16, 256], strides = [1, 1]} : vector<128x256xf32> to vector<16x256xf32>
    %56 = vector.extract_strided_slice %0 {offsets = [64, 0], sizes = [16, 256], strides = [1, 1]} : vector<128x256xf32> to vector<16x256xf32>
    %57 = arith.mulf %55, %56 : vector<16x256xf32>
    %58 = vector.extract_strided_slice %0 {offsets = [48, 0], sizes = [16, 256], strides = [1, 1]} : vector<128x256xf32> to vector<16x256xf32>
    %59 = vector.extract_strided_slice %0 {offsets = [80, 0], sizes = [16, 256], strides = [1, 1]} : vector<128x256xf32> to vector<16x256xf32>
    %60 = arith.mulf %58, %59 : vector<16x256xf32>
    %61 = vector.extract_strided_slice %0 {offsets = [48, 0], sizes = [16, 256], strides = [1, 1]} : vector<128x256xf32> to vector<16x256xf32>
    %62 = vector.extract_strided_slice %0 {offsets = [96, 0], sizes = [16, 256], strides = [1, 1]} : vector<128x256xf32> to vector<16x256xf32>
    %63 = arith.mulf %61, %62 : vector<16x256xf32>
    %64 = vector.extract_strided_slice %0 {offsets = [48, 0], sizes = [16, 256], strides = [1, 1]} : vector<128x256xf32> to vector<16x256xf32>
    %65 = vector.extract_strided_slice %0 {offsets = [112, 0], sizes = [16, 256], strides = [1, 1]} : vector<128x256xf32> to vector<16x256xf32>
    %66 = arith.mulf %64, %65 : vector<16x256xf32>
    %67 = vector.extract_strided_slice %0 {offsets = [64, 0], sizes = [16, 256], strides = [1, 1]} : vector<128x256xf32> to vector<16x256xf32>
    %68 = vector.extract_strided_slice %0 {offsets = [80, 0], sizes = [16, 256], strides = [1, 1]} : vector<128x256xf32> to vector<16x256xf32>
    %69 = arith.mulf %67, %68 : vector<16x256xf32>
    %70 = vector.extract_strided_slice %0 {offsets = [64, 0], sizes = [16, 256], strides = [1, 1]} : vector<128x256xf32> to vector<16x256xf32>
    %71 = vector.extract_strided_slice %0 {offsets = [96, 0], sizes = [16, 256], strides = [1, 1]} : vector<128x256xf32> to vector<16x256xf32>
    %72 = arith.mulf %70, %71 : vector<16x256xf32>
    %73 = vector.extract_strided_slice %0 {offsets = [64, 0], sizes = [16, 256], strides = [1, 1]} : vector<128x256xf32> to vector<16x256xf32>
    %74 = vector.extract_strided_slice %0 {offsets = [112, 0], sizes = [16, 256], strides = [1, 1]} : vector<128x256xf32> to vector<16x256xf32>
    %75 = arith.mulf %73, %74 : vector<16x256xf32>
    %76 = vector.extract_strided_slice %0 {offsets = [80, 0], sizes = [16, 256], strides = [1, 1]} : vector<128x256xf32> to vector<16x256xf32>
    %77 = vector.extract_strided_slice %0 {offsets = [96, 0], sizes = [16, 256], strides = [1, 1]} : vector<128x256xf32> to vector<16x256xf32>
    %78 = arith.mulf %76, %77 : vector<16x256xf32>
    %79 = vector.extract_strided_slice %0 {offsets = [80, 0], sizes = [16, 256], strides = [1, 1]} : vector<128x256xf32> to vector<16x256xf32>
    %80 = vector.extract_strided_slice %0 {offsets = [112, 0], sizes = [16, 256], strides = [1, 1]} : vector<128x256xf32> to vector<16x256xf32>
    %81 = arith.mulf %79, %80 : vector<16x256xf32>
    %82 = vector.extract_strided_slice %0 {offsets = [96, 0], sizes = [16, 256], strides = [1, 1]} : vector<128x256xf32> to vector<16x256xf32>
    %83 = vector.extract_strided_slice %0 {offsets = [112, 0], sizes = [16, 256], strides = [1, 1]} : vector<128x256xf32> to vector<16x256xf32>
    %84 = arith.mulf %82, %83 : vector<16x256xf32>
    %85 = tpu.concatenate %3, %6, %9, %12, %15, %18, %21, %24, %27, %30, %33, %36, %39, %42, %45, %48 in 1 : vector<16x256xf32>, vector<16x256xf32>, vector<16x256xf32>, vector<16x256xf32>, vector<16x256xf32>, vector<16x256xf32>, vector<16x256xf32>, vector<16x256xf32>, vector<16x256xf32>, vector<16x256xf32>, vector<16x256xf32>, vector<16x256xf32>, vector<16x256xf32>, vector<16x256xf32>, vector<16x256xf32>, vector<16x256xf32> -> vector<16x4096xf32>
    %86 = tpu.concatenate %51, %54, %57, %60, %63, %66, %69, %72, %75, %78, %81, %84 in 1 : vector<16x256xf32>, vector<16x256xf32>, vector<16x256xf32>, vector<16x256xf32>, vector<16x256xf32>, vector<16x256xf32>, vector<16x256xf32>, vector<16x256xf32>, vector<16x256xf32>, vector<16x256xf32>, vector<16x256xf32>, vector<16x256xf32> -> vector<16x3072xf32>
    %87 = tpu.concatenate %85, %86 in 1 : vector<16x4096xf32>, vector<16x3072xf32> -> vector<16x7168xf32>
    %c0_1 = arith.constant 0 : index
    %c0_2 = arith.constant 0 : index
    %88 = vector.load %arg3[%c0_1, %c0_2] : memref<9x16xf32, #tpu.memory_space<vmem>>, vector<9x16xf32>
    %cst = arith.constant dense<0.000000e+00> : vector<9x7168xf32>
    %89 = tpu.matmul %88, %87, %cst {dimension_numbers = #tpu.dot_dimension_numbers<[1], [0], [0], [1], [0, 0, 1, 1], [], []>} : vector<9x16xf32>, vector<16x7168xf32>, vector<9x7168xf32> -> vector<9x7168xf32>
    %90 = vector.extract_strided_slice %89 {offsets = [0, 0], sizes = [8, 7168], strides = [1, 1]} : vector<9x7168xf32> to vector<8x7168xf32>
    %c0_3 = arith.constant 0 : index
    %c0_4 = arith.constant 0 : index
    %91 = vector.load %arg4[%c0_3, %c0_4] : memref<8x1xf32, #tpu.memory_space<vmem>>, vector<8x1xf32>
    %92 = vector.broadcast %91 : vector<8x1xf32> to vector<8x7168xf32>
    %93 = arith.addf %90, %92 : vector<8x7168xf32>
    %cst_5 = arith.constant 0.000000e+00 : f32
    %94 = vector.broadcast %cst_5 : f32 to vector<8x7168xf32>
    %95 = arith.maximumf %93, %94 : vector<8x7168xf32>
    %c0_6 = arith.constant 0 : index
    %c0_7 = arith.constant 0 : index
    %96 = vector.load %arg5[%c0_6, %c0_7] : memref<8x1xf32, #tpu.memory_space<vmem>>, vector<8x1xf32>
    %97 = vector.broadcast %96 : vector<8x1xf32> to vector<8x7168xf32>
    %98 = arith.mulf %95, %97 : vector<8x7168xf32>
    %cst_8 = arith.constant dense<0.000000e+00> : vector<7168xf32>
    %99 = vector.multi_reduction <add>, %98, %cst_8 [0] : vector<8x7168xf32> to vector<7168xf32>
    %100 = vector.shape_cast %99 : vector<7168xf32> to vector<1x7168xf32>
    %c0_9 = arith.constant 0 : index
    %c0_10 = arith.constant 0 : index
    %101 = vector.load %arg6[%c0_9, %c0_10] : memref<1x1xf32, #tpu.memory_space<vmem>>, vector<1x1xf32>
    %102 = vector.broadcast %101 : vector<1x1xf32> to vector<1x7168xf32>
    %103 = arith.addf %100, %102 : vector<1x7168xf32>
    %104 = vector.extract_strided_slice %89 {offsets = [8, 0], sizes = [1, 7168], strides = [1, 1]} : vector<9x7168xf32> to vector<1x7168xf32>
    %105 = vector.extract_strided_slice %103 {offsets = [0, 0], sizes = [1, 256], strides = [1, 1]} : vector<1x7168xf32> to vector<1x256xf32>
    %106 = vector.extract_strided_slice %103 {offsets = [0, 256], sizes = [1, 256], strides = [1, 1]} : vector<1x7168xf32> to vector<1x256xf32>
    %107 = arith.maximumf %105, %106 : vector<1x256xf32>
    %108 = vector.extract_strided_slice %103 {offsets = [0, 512], sizes = [1, 256], strides = [1, 1]} : vector<1x7168xf32> to vector<1x256xf32>
    %109 = arith.maximumf %107, %108 : vector<1x256xf32>
    %110 = vector.extract_strided_slice %103 {offsets = [0, 768], sizes = [1, 256], strides = [1, 1]} : vector<1x7168xf32> to vector<1x256xf32>
    %111 = arith.maximumf %109, %110 : vector<1x256xf32>
    %112 = vector.extract_strided_slice %103 {offsets = [0, 1024], sizes = [1, 256], strides = [1, 1]} : vector<1x7168xf32> to vector<1x256xf32>
    %113 = arith.maximumf %111, %112 : vector<1x256xf32>
    %114 = vector.extract_strided_slice %103 {offsets = [0, 1280], sizes = [1, 256], strides = [1, 1]} : vector<1x7168xf32> to vector<1x256xf32>
    %115 = arith.maximumf %113, %114 : vector<1x256xf32>
    %116 = vector.extract_strided_slice %103 {offsets = [0, 1536], sizes = [1, 256], strides = [1, 1]} : vector<1x7168xf32> to vector<1x256xf32>
    %117 = arith.maximumf %115, %116 : vector<1x256xf32>
    %118 = vector.extract_strided_slice %103 {offsets = [0, 1792], sizes = [1, 256], strides = [1, 1]} : vector<1x7168xf32> to vector<1x256xf32>
    %119 = arith.maximumf %117, %118 : vector<1x256xf32>
    %120 = vector.extract_strided_slice %103 {offsets = [0, 2048], sizes = [1, 256], strides = [1, 1]} : vector<1x7168xf32> to vector<1x256xf32>
    %121 = arith.maximumf %119, %120 : vector<1x256xf32>
    %122 = vector.extract_strided_slice %103 {offsets = [0, 2304], sizes = [1, 256], strides = [1, 1]} : vector<1x7168xf32> to vector<1x256xf32>
    %123 = arith.maximumf %121, %122 : vector<1x256xf32>
    %124 = vector.extract_strided_slice %103 {offsets = [0, 2560], sizes = [1, 256], strides = [1, 1]} : vector<1x7168xf32> to vector<1x256xf32>
    %125 = arith.maximumf %123, %124 : vector<1x256xf32>
    %126 = vector.extract_strided_slice %103 {offsets = [0, 2816], sizes = [1, 256], strides = [1, 1]} : vector<1x7168xf32> to vector<1x256xf32>
    %127 = arith.maximumf %125, %126 : vector<1x256xf32>
    %128 = vector.extract_strided_slice %103 {offsets = [0, 3072], sizes = [1, 256], strides = [1, 1]} : vector<1x7168xf32> to vector<1x256xf32>
    %129 = arith.maximumf %127, %128 : vector<1x256xf32>
    %130 = vector.extract_strided_slice %103 {offsets = [0, 3328], sizes = [1, 256], strides = [1, 1]} : vector<1x7168xf32> to vector<1x256xf32>
    %131 = arith.maximumf %129, %130 : vector<1x256xf32>
    %132 = vector.extract_strided_slice %103 {offsets = [0, 3584], sizes = [1, 256], strides = [1, 1]} : vector<1x7168xf32> to vector<1x256xf32>
    %133 = arith.maximumf %131, %132 : vector<1x256xf32>
    %134 = vector.extract_strided_slice %103 {offsets = [0, 3840], sizes = [1, 256], strides = [1, 1]} : vector<1x7168xf32> to vector<1x256xf32>
    %135 = arith.maximumf %133, %134 : vector<1x256xf32>
    %136 = vector.extract_strided_slice %103 {offsets = [0, 4096], sizes = [1, 256], strides = [1, 1]} : vector<1x7168xf32> to vector<1x256xf32>
    %137 = arith.maximumf %135, %136 : vector<1x256xf32>
    %138 = vector.extract_strided_slice %103 {offsets = [0, 4352], sizes = [1, 256], strides = [1, 1]} : vector<1x7168xf32> to vector<1x256xf32>
    %139 = arith.maximumf %137, %138 : vector<1x256xf32>
    %140 = vector.extract_strided_slice %103 {offsets = [0, 4608], sizes = [1, 256], strides = [1, 1]} : vector<1x7168xf32> to vector<1x256xf32>
    %141 = arith.maximumf %139, %140 : vector<1x256xf32>
    %142 = vector.extract_strided_slice %103 {offsets = [0, 4864], sizes = [1, 256], strides = [1, 1]} : vector<1x7168xf32> to vector<1x256xf32>
    %143 = arith.maximumf %141, %142 : vector<1x256xf32>
    %144 = vector.extract_strided_slice %103 {offsets = [0, 5120], sizes = [1, 256], strides = [1, 1]} : vector<1x7168xf32> to vector<1x256xf32>
    %145 = arith.maximumf %143, %144 : vector<1x256xf32>
    %146 = vector.extract_strided_slice %103 {offsets = [0, 5376], sizes = [1, 256], strides = [1, 1]} : vector<1x7168xf32> to vector<1x256xf32>
    %147 = arith.maximumf %145, %146 : vector<1x256xf32>
    %148 = vector.extract_strided_slice %103 {offsets = [0, 5632], sizes = [1, 256], strides = [1, 1]} : vector<1x7168xf32> to vector<1x256xf32>
    %149 = arith.maximumf %147, %148 : vector<1x256xf32>
    %150 = vector.extract_strided_slice %103 {offsets = [0, 5888], sizes = [1, 256], strides = [1, 1]} : vector<1x7168xf32> to vector<1x256xf32>
    %151 = arith.maximumf %149, %150 : vector<1x256xf32>
    %152 = vector.extract_strided_slice %103 {offsets = [0, 6144], sizes = [1, 256], strides = [1, 1]} : vector<1x7168xf32> to vector<1x256xf32>
    %153 = arith.maximumf %151, %152 : vector<1x256xf32>
    %154 = vector.extract_strided_slice %103 {offsets = [0, 6400], sizes = [1, 256], strides = [1, 1]} : vector<1x7168xf32> to vector<1x256xf32>
    %155 = arith.maximumf %153, %154 : vector<1x256xf32>
    %156 = vector.extract_strided_slice %103 {offsets = [0, 6656], sizes = [1, 256], strides = [1, 1]} : vector<1x7168xf32> to vector<1x256xf32>
    %157 = arith.maximumf %155, %156 : vector<1x256xf32>
    %158 = vector.extract_strided_slice %103 {offsets = [0, 6912], sizes = [1, 256], strides = [1, 1]} : vector<1x7168xf32> to vector<1x256xf32>
    %159 = arith.maximumf %157, %158 : vector<1x256xf32>
    %cst_11 = arith.constant 0.000000e+00 : f32
    %160 = vector.broadcast %cst_11 : f32 to vector<1x256xf32>
    %cst_12 = arith.constant 0.000000e+00 : f32
    %161 = vector.broadcast %cst_12 : f32 to vector<1x256xf32>
    %162 = vector.extract_strided_slice %103 {offsets = [0, 0], sizes = [1, 256], strides = [1, 1]} : vector<1x7168xf32> to vector<1x256xf32>
    %163 = arith.subf %162, %159 : vector<1x256xf32>
    %164 = math.exp %163 : vector<1x256xf32>
    %165 = arith.addf %161, %164 : vector<1x256xf32>
    %166 = vector.extract_strided_slice %104 {offsets = [0, 0], sizes = [1, 256], strides = [1, 1]} : vector<1x7168xf32> to vector<1x256xf32>
    %167 = arith.mulf %164, %166 : vector<1x256xf32>
    %168 = arith.addf %160, %167 : vector<1x256xf32>
    %169 = vector.extract_strided_slice %103 {offsets = [0, 256], sizes = [1, 256], strides = [1, 1]} : vector<1x7168xf32> to vector<1x256xf32>
    %170 = arith.subf %169, %159 : vector<1x256xf32>
    %171 = math.exp %170 : vector<1x256xf32>
    %172 = arith.addf %165, %171 : vector<1x256xf32>
    %173 = vector.extract_strided_slice %104 {offsets = [0, 256], sizes = [1, 256], strides = [1, 1]} : vector<1x7168xf32> to vector<1x256xf32>
    %174 = arith.mulf %171, %173 : vector<1x256xf32>
    %175 = arith.addf %168, %174 : vector<1x256xf32>
    %176 = vector.extract_strided_slice %103 {offsets = [0, 512], sizes = [1, 256], strides = [1, 1]} : vector<1x7168xf32> to vector<1x256xf32>
    %177 = arith.subf %176, %159 : vector<1x256xf32>
    %178 = math.exp %177 : vector<1x256xf32>
    %179 = arith.addf %172, %178 : vector<1x256xf32>
    %180 = vector.extract_strided_slice %104 {offsets = [0, 512], sizes = [1, 256], strides = [1, 1]} : vector<1x7168xf32> to vector<1x256xf32>
    %181 = arith.mulf %178, %180 : vector<1x256xf32>
    %182 = arith.addf %175, %181 : vector<1x256xf32>
    %183 = vector.extract_strided_slice %103 {offsets = [0, 768], sizes = [1, 256], strides = [1, 1]} : vector<1x7168xf32> to vector<1x256xf32>
    %184 = arith.subf %183, %159 : vector<1x256xf32>
    %185 = math.exp %184 : vector<1x256xf32>
    %186 = arith.addf %179, %185 : vector<1x256xf32>
    %187 = vector.extract_strided_slice %104 {offsets = [0, 768], sizes = [1, 256], strides = [1, 1]} : vector<1x7168xf32> to vector<1x256xf32>
    %188 = arith.mulf %185, %187 : vector<1x256xf32>
    %189 = arith.addf %182, %188 : vector<1x256xf32>
    %190 = vector.extract_strided_slice %103 {offsets = [0, 1024], sizes = [1, 256], strides = [1, 1]} : vector<1x7168xf32> to vector<1x256xf32>
    %191 = arith.subf %190, %159 : vector<1x256xf32>
    %192 = math.exp %191 : vector<1x256xf32>
    %193 = arith.addf %186, %192 : vector<1x256xf32>
    %194 = vector.extract_strided_slice %104 {offsets = [0, 1024], sizes = [1, 256], strides = [1, 1]} : vector<1x7168xf32> to vector<1x256xf32>
    %195 = arith.mulf %192, %194 : vector<1x256xf32>
    %196 = arith.addf %189, %195 : vector<1x256xf32>
    %197 = vector.extract_strided_slice %103 {offsets = [0, 1280], sizes = [1, 256], strides = [1, 1]} : vector<1x7168xf32> to vector<1x256xf32>
    %198 = arith.subf %197, %159 : vector<1x256xf32>
    %199 = math.exp %198 : vector<1x256xf32>
    %200 = arith.addf %193, %199 : vector<1x256xf32>
    %201 = vector.extract_strided_slice %104 {offsets = [0, 1280], sizes = [1, 256], strides = [1, 1]} : vector<1x7168xf32> to vector<1x256xf32>
    %202 = arith.mulf %199, %201 : vector<1x256xf32>
    %203 = arith.addf %196, %202 : vector<1x256xf32>
    %204 = vector.extract_strided_slice %103 {offsets = [0, 1536], sizes = [1, 256], strides = [1, 1]} : vector<1x7168xf32> to vector<1x256xf32>
    %205 = arith.subf %204, %159 : vector<1x256xf32>
    %206 = math.exp %205 : vector<1x256xf32>
    %207 = arith.addf %200, %206 : vector<1x256xf32>
    %208 = vector.extract_strided_slice %104 {offsets = [0, 1536], sizes = [1, 256], strides = [1, 1]} : vector<1x7168xf32> to vector<1x256xf32>
    %209 = arith.mulf %206, %208 : vector<1x256xf32>
    %210 = arith.addf %203, %209 : vector<1x256xf32>
    %211 = vector.extract_strided_slice %103 {offsets = [0, 1792], sizes = [1, 256], strides = [1, 1]} : vector<1x7168xf32> to vector<1x256xf32>
    %212 = arith.subf %211, %159 : vector<1x256xf32>
    %213 = math.exp %212 : vector<1x256xf32>
    %214 = arith.addf %207, %213 : vector<1x256xf32>
    %215 = vector.extract_strided_slice %104 {offsets = [0, 1792], sizes = [1, 256], strides = [1, 1]} : vector<1x7168xf32> to vector<1x256xf32>
    %216 = arith.mulf %213, %215 : vector<1x256xf32>
    %217 = arith.addf %210, %216 : vector<1x256xf32>
    %218 = vector.extract_strided_slice %103 {offsets = [0, 2048], sizes = [1, 256], strides = [1, 1]} : vector<1x7168xf32> to vector<1x256xf32>
    %219 = arith.subf %218, %159 : vector<1x256xf32>
    %220 = math.exp %219 : vector<1x256xf32>
    %221 = arith.addf %214, %220 : vector<1x256xf32>
    %222 = vector.extract_strided_slice %104 {offsets = [0, 2048], sizes = [1, 256], strides = [1, 1]} : vector<1x7168xf32> to vector<1x256xf32>
    %223 = arith.mulf %220, %222 : vector<1x256xf32>
    %224 = arith.addf %217, %223 : vector<1x256xf32>
    %225 = vector.extract_strided_slice %103 {offsets = [0, 2304], sizes = [1, 256], strides = [1, 1]} : vector<1x7168xf32> to vector<1x256xf32>
    %226 = arith.subf %225, %159 : vector<1x256xf32>
    %227 = math.exp %226 : vector<1x256xf32>
    %228 = arith.addf %221, %227 : vector<1x256xf32>
    %229 = vector.extract_strided_slice %104 {offsets = [0, 2304], sizes = [1, 256], strides = [1, 1]} : vector<1x7168xf32> to vector<1x256xf32>
    %230 = arith.mulf %227, %229 : vector<1x256xf32>
    %231 = arith.addf %224, %230 : vector<1x256xf32>
    %232 = vector.extract_strided_slice %103 {offsets = [0, 2560], sizes = [1, 256], strides = [1, 1]} : vector<1x7168xf32> to vector<1x256xf32>
    %233 = arith.subf %232, %159 : vector<1x256xf32>
    %234 = math.exp %233 : vector<1x256xf32>
    %235 = arith.addf %228, %234 : vector<1x256xf32>
    %236 = vector.extract_strided_slice %104 {offsets = [0, 2560], sizes = [1, 256], strides = [1, 1]} : vector<1x7168xf32> to vector<1x256xf32>
    %237 = arith.mulf %234, %236 : vector<1x256xf32>
    %238 = arith.addf %231, %237 : vector<1x256xf32>
    %239 = vector.extract_strided_slice %103 {offsets = [0, 2816], sizes = [1, 256], strides = [1, 1]} : vector<1x7168xf32> to vector<1x256xf32>
    %240 = arith.subf %239, %159 : vector<1x256xf32>
    %241 = math.exp %240 : vector<1x256xf32>
    %242 = arith.addf %235, %241 : vector<1x256xf32>
    %243 = vector.extract_strided_slice %104 {offsets = [0, 2816], sizes = [1, 256], strides = [1, 1]} : vector<1x7168xf32> to vector<1x256xf32>
    %244 = arith.mulf %241, %243 : vector<1x256xf32>
    %245 = arith.addf %238, %244 : vector<1x256xf32>
    %246 = vector.extract_strided_slice %103 {offsets = [0, 3072], sizes = [1, 256], strides = [1, 1]} : vector<1x7168xf32> to vector<1x256xf32>
    %247 = arith.subf %246, %159 : vector<1x256xf32>
    %248 = math.exp %247 : vector<1x256xf32>
    %249 = arith.addf %242, %248 : vector<1x256xf32>
    %250 = vector.extract_strided_slice %104 {offsets = [0, 3072], sizes = [1, 256], strides = [1, 1]} : vector<1x7168xf32> to vector<1x256xf32>
    %251 = arith.mulf %248, %250 : vector<1x256xf32>
    %252 = arith.addf %245, %251 : vector<1x256xf32>
    %253 = vector.extract_strided_slice %103 {offsets = [0, 3328], sizes = [1, 256], strides = [1, 1]} : vector<1x7168xf32> to vector<1x256xf32>
    %254 = arith.subf %253, %159 : vector<1x256xf32>
    %255 = math.exp %254 : vector<1x256xf32>
    %256 = arith.addf %249, %255 : vector<1x256xf32>
    %257 = vector.extract_strided_slice %104 {offsets = [0, 3328], sizes = [1, 256], strides = [1, 1]} : vector<1x7168xf32> to vector<1x256xf32>
    %258 = arith.mulf %255, %257 : vector<1x256xf32>
    %259 = arith.addf %252, %258 : vector<1x256xf32>
    %260 = vector.extract_strided_slice %103 {offsets = [0, 3584], sizes = [1, 256], strides = [1, 1]} : vector<1x7168xf32> to vector<1x256xf32>
    %261 = arith.subf %260, %159 : vector<1x256xf32>
    %262 = math.exp %261 : vector<1x256xf32>
    %263 = arith.addf %256, %262 : vector<1x256xf32>
    %264 = vector.extract_strided_slice %104 {offsets = [0, 3584], sizes = [1, 256], strides = [1, 1]} : vector<1x7168xf32> to vector<1x256xf32>
    %265 = arith.mulf %262, %264 : vector<1x256xf32>
    %266 = arith.addf %259, %265 : vector<1x256xf32>
    %267 = vector.extract_strided_slice %103 {offsets = [0, 3840], sizes = [1, 256], strides = [1, 1]} : vector<1x7168xf32> to vector<1x256xf32>
    %268 = arith.subf %267, %159 : vector<1x256xf32>
    %269 = math.exp %268 : vector<1x256xf32>
    %270 = arith.addf %263, %269 : vector<1x256xf32>
    %271 = vector.extract_strided_slice %104 {offsets = [0, 3840], sizes = [1, 256], strides = [1, 1]} : vector<1x7168xf32> to vector<1x256xf32>
    %272 = arith.mulf %269, %271 : vector<1x256xf32>
    %273 = arith.addf %266, %272 : vector<1x256xf32>
    %274 = vector.extract_strided_slice %103 {offsets = [0, 4096], sizes = [1, 256], strides = [1, 1]} : vector<1x7168xf32> to vector<1x256xf32>
    %275 = arith.subf %274, %159 : vector<1x256xf32>
    %276 = math.exp %275 : vector<1x256xf32>
    %277 = arith.addf %270, %276 : vector<1x256xf32>
    %278 = vector.extract_strided_slice %104 {offsets = [0, 4096], sizes = [1, 256], strides = [1, 1]} : vector<1x7168xf32> to vector<1x256xf32>
    %279 = arith.mulf %276, %278 : vector<1x256xf32>
    %280 = arith.addf %273, %279 : vector<1x256xf32>
    %281 = vector.extract_strided_slice %103 {offsets = [0, 4352], sizes = [1, 256], strides = [1, 1]} : vector<1x7168xf32> to vector<1x256xf32>
    %282 = arith.subf %281, %159 : vector<1x256xf32>
    %283 = math.exp %282 : vector<1x256xf32>
    %284 = arith.addf %277, %283 : vector<1x256xf32>
    %285 = vector.extract_strided_slice %104 {offsets = [0, 4352], sizes = [1, 256], strides = [1, 1]} : vector<1x7168xf32> to vector<1x256xf32>
    %286 = arith.mulf %283, %285 : vector<1x256xf32>
    %287 = arith.addf %280, %286 : vector<1x256xf32>
    %288 = vector.extract_strided_slice %103 {offsets = [0, 4608], sizes = [1, 256], strides = [1, 1]} : vector<1x7168xf32> to vector<1x256xf32>
    %289 = arith.subf %288, %159 : vector<1x256xf32>
    %290 = math.exp %289 : vector<1x256xf32>
    %291 = arith.addf %284, %290 : vector<1x256xf32>
    %292 = vector.extract_strided_slice %104 {offsets = [0, 4608], sizes = [1, 256], strides = [1, 1]} : vector<1x7168xf32> to vector<1x256xf32>
    %293 = arith.mulf %290, %292 : vector<1x256xf32>
    %294 = arith.addf %287, %293 : vector<1x256xf32>
    %295 = vector.extract_strided_slice %103 {offsets = [0, 4864], sizes = [1, 256], strides = [1, 1]} : vector<1x7168xf32> to vector<1x256xf32>
    %296 = arith.subf %295, %159 : vector<1x256xf32>
    %297 = math.exp %296 : vector<1x256xf32>
    %298 = arith.addf %291, %297 : vector<1x256xf32>
    %299 = vector.extract_strided_slice %104 {offsets = [0, 4864], sizes = [1, 256], strides = [1, 1]} : vector<1x7168xf32> to vector<1x256xf32>
    %300 = arith.mulf %297, %299 : vector<1x256xf32>
    %301 = arith.addf %294, %300 : vector<1x256xf32>
    %302 = vector.extract_strided_slice %103 {offsets = [0, 5120], sizes = [1, 256], strides = [1, 1]} : vector<1x7168xf32> to vector<1x256xf32>
    %303 = arith.subf %302, %159 : vector<1x256xf32>
    %304 = math.exp %303 : vector<1x256xf32>
    %305 = arith.addf %298, %304 : vector<1x256xf32>
    %306 = vector.extract_strided_slice %104 {offsets = [0, 5120], sizes = [1, 256], strides = [1, 1]} : vector<1x7168xf32> to vector<1x256xf32>
    %307 = arith.mulf %304, %306 : vector<1x256xf32>
    %308 = arith.addf %301, %307 : vector<1x256xf32>
    %309 = vector.extract_strided_slice %103 {offsets = [0, 5376], sizes = [1, 256], strides = [1, 1]} : vector<1x7168xf32> to vector<1x256xf32>
    %310 = arith.subf %309, %159 : vector<1x256xf32>
    %311 = math.exp %310 : vector<1x256xf32>
    %312 = arith.addf %305, %311 : vector<1x256xf32>
    %313 = vector.extract_strided_slice %104 {offsets = [0, 5376], sizes = [1, 256], strides = [1, 1]} : vector<1x7168xf32> to vector<1x256xf32>
    %314 = arith.mulf %311, %313 : vector<1x256xf32>
    %315 = arith.addf %308, %314 : vector<1x256xf32>
    %316 = vector.extract_strided_slice %103 {offsets = [0, 5632], sizes = [1, 256], strides = [1, 1]} : vector<1x7168xf32> to vector<1x256xf32>
    %317 = arith.subf %316, %159 : vector<1x256xf32>
    %318 = math.exp %317 : vector<1x256xf32>
    %319 = arith.addf %312, %318 : vector<1x256xf32>
    %320 = vector.extract_strided_slice %104 {offsets = [0, 5632], sizes = [1, 256], strides = [1, 1]} : vector<1x7168xf32> to vector<1x256xf32>
    %321 = arith.mulf %318, %320 : vector<1x256xf32>
    %322 = arith.addf %315, %321 : vector<1x256xf32>
    %323 = vector.extract_strided_slice %103 {offsets = [0, 5888], sizes = [1, 256], strides = [1, 1]} : vector<1x7168xf32> to vector<1x256xf32>
    %324 = arith.subf %323, %159 : vector<1x256xf32>
    %325 = math.exp %324 : vector<1x256xf32>
    %326 = arith.addf %319, %325 : vector<1x256xf32>
    %327 = vector.extract_strided_slice %104 {offsets = [0, 5888], sizes = [1, 256], strides = [1, 1]} : vector<1x7168xf32> to vector<1x256xf32>
    %328 = arith.mulf %325, %327 : vector<1x256xf32>
    %329 = arith.addf %322, %328 : vector<1x256xf32>
    %330 = vector.extract_strided_slice %103 {offsets = [0, 6144], sizes = [1, 256], strides = [1, 1]} : vector<1x7168xf32> to vector<1x256xf32>
    %331 = arith.subf %330, %159 : vector<1x256xf32>
    %332 = math.exp %331 : vector<1x256xf32>
    %333 = arith.addf %326, %332 : vector<1x256xf32>
    %334 = vector.extract_strided_slice %104 {offsets = [0, 6144], sizes = [1, 256], strides = [1, 1]} : vector<1x7168xf32> to vector<1x256xf32>
    %335 = arith.mulf %332, %334 : vector<1x256xf32>
    %336 = arith.addf %329, %335 : vector<1x256xf32>
    %337 = vector.extract_strided_slice %103 {offsets = [0, 6400], sizes = [1, 256], strides = [1, 1]} : vector<1x7168xf32> to vector<1x256xf32>
    %338 = arith.subf %337, %159 : vector<1x256xf32>
    %339 = math.exp %338 : vector<1x256xf32>
    %340 = arith.addf %333, %339 : vector<1x256xf32>
    %341 = vector.extract_strided_slice %104 {offsets = [0, 6400], sizes = [1, 256], strides = [1, 1]} : vector<1x7168xf32> to vector<1x256xf32>
    %342 = arith.mulf %339, %341 : vector<1x256xf32>
    %343 = arith.addf %336, %342 : vector<1x256xf32>
    %344 = vector.extract_strided_slice %103 {offsets = [0, 6656], sizes = [1, 256], strides = [1, 1]} : vector<1x7168xf32> to vector<1x256xf32>
    %345 = arith.subf %344, %159 : vector<1x256xf32>
    %346 = math.exp %345 : vector<1x256xf32>
    %347 = arith.addf %340, %346 : vector<1x256xf32>
    %348 = vector.extract_strided_slice %104 {offsets = [0, 6656], sizes = [1, 256], strides = [1, 1]} : vector<1x7168xf32> to vector<1x256xf32>
    %349 = arith.mulf %346, %348 : vector<1x256xf32>
    %350 = arith.addf %343, %349 : vector<1x256xf32>
    %351 = vector.extract_strided_slice %103 {offsets = [0, 6912], sizes = [1, 256], strides = [1, 1]} : vector<1x7168xf32> to vector<1x256xf32>
    %352 = arith.subf %351, %159 : vector<1x256xf32>
    %353 = math.exp %352 : vector<1x256xf32>
    %354 = arith.addf %347, %353 : vector<1x256xf32>
    %355 = vector.extract_strided_slice %104 {offsets = [0, 6912], sizes = [1, 256], strides = [1, 1]} : vector<1x7168xf32> to vector<1x256xf32>
    %356 = arith.mulf %353, %355 : vector<1x256xf32>
    %357 = arith.addf %350, %356 : vector<1x256xf32>
    %358 = tpu.reciprocal %354 {approx = true} : vector<1x256xf32> -> vector<1x256xf32>
    %359 = arith.mulf %357, %358 : vector<1x256xf32>
    %c0_13 = arith.constant 0 : index
    %c0_14 = arith.constant 0 : index
    %360 = vector.load %arg7[%c0_13, %c0_14] : memref<1x1xf32, #tpu.memory_space<vmem>>, vector<1x1xf32>
    %361 = vector.broadcast %360 : vector<1x1xf32> to vector<1x256xf32>
    %362 = arith.addf %359, %361 : vector<1x256xf32>
    %c0_15 = arith.constant 0 : index
    %c0_16 = arith.constant 0 : index
    %363 = vector.load %arg2[%c0_15, %c0_16] : memref<1x256xf32, #tpu.memory_space<vmem>>, vector<1x256xf32>
    %364 = arith.addf %362, %363 : vector<1x256xf32>
    %c0_17 = arith.constant 0 : index
    %c0_18 = arith.constant 0 : index
    %365 = vector.load %arg8[%c0_17, %c0_18] : memref<1x256xf32, #tpu.memory_space<vmem>>, vector<1x256xf32>
    tpu.vector_store %arg8[%c0_17, %c0_18], %364 {strides = array<i32>} : memref<1x256xf32, #tpu.memory_space<vmem>>, vector<1x256xf32>,
    return
  }
  func.func @transform_0(%arg0: i32) -> (i32, i32) {
    %c0_i32 = arith.constant 0 : i32
    %c0_i32_0 = arith.constant 0 : i32
    return %c0_i32, %arg0 : i32, i32
  }
  func.func @transform_1(%arg0: i32) -> (i32, i32) {
    %c0_i32 = arith.constant 0 : i32
    %c0_i32_0 = arith.constant 0 : i32
    return %c0_i32, %arg0 : i32, i32
  }
  func.func @transform_2(%arg0: i32) -> (i32, i32) {
    %c0_i32 = arith.constant 0 : i32
    %c0_i32_0 = arith.constant 0 : i32
    %c0_i32_1 = arith.constant 0 : i32
    return %c0_i32, %c0_i32_0 : i32, i32
  }
  func.func @transform_3(%arg0: i32) -> (i32, i32) {
    %c0_i32 = arith.constant 0 : i32
    %c0_i32_0 = arith.constant 0 : i32
    %c0_i32_1 = arith.constant 0 : i32
    return %c0_i32, %c0_i32_0 : i32, i32
  }
  func.func @transform_4(%arg0: i32) -> (i32, i32) {
    %c0_i32 = arith.constant 0 : i32
    %c0_i32_0 = arith.constant 0 : i32
    %c0_i32_1 = arith.constant 0 : i32
    return %c0_i32, %c0_i32_0 : i32, i32
  }
  func.func @transform_5(%arg0: i32) -> (i32, i32) {
    %c0_i32 = arith.constant 0 : i32
    %c0_i32_0 = arith.constant 0 : i32
    %c0_i32_1 = arith.constant 0 : i32
    return %c0_i32, %c0_i32_0 : i32, i32
  }
  func.func @transform_6(%arg0: i32) -> (i32, i32) {
    %c0_i32 = arith.constant 0 : i32
    %c0_i32_0 = arith.constant 0 : i32
    %c0_i32_1 = arith.constant 0 : i32
    return %c0_i32, %c0_i32_0 : i32, i32
  }
  func.func @transform_7(%arg0: i32) -> (i32, i32) {
    %c0_i32 = arith.constant 0 : i32
    %c0_i32_0 = arith.constant 0 : i32
    return %c0_i32, %arg0 : i32, i32
  }
}

</mosaic_0001>

<llo_original>
// kernel: tpu_custom_call.1
$region0: #{tpu_custom_call.1}
  #allocation0 [shape = 'u32[]', space=smem, size = 0x4, offset = 0x4, fixed_abs, tag = 'smem constant byte address 0x4 - core index']
  #allocation1 [shape = 'u32[144,128]{1,0:T(1,128)}', space=vmem, size = 0x12000, scoped, tag = 'internal scratch']
  #allocation2 [shape = 'f32[1,1]{1,0:T(1,128)S(1)}', space=vmem, size = 0x200, scoped, tag = 'scoped memory for tpu_custom_call.1']
  #allocation3 [shape = 'f32[1,1]{1,0:T(1,128)S(1)}', space=vmem, size = 0x200, scoped, tag = 'scoped memory for tpu_custom_call.1']
  %s0 = inlined_call_operand.hbm [shape: f32[128,512], index: 0, kind: input, shape index: {}]
  %s1 = inlined_call_operand.vmem [shape: f32[1,512], index: 1, kind: input, shape index: {}]
  %s2 = inlined_call_operand.vmem [shape: f32[9,16], index: 2, kind: input, shape index: {}]
  %s3 = inlined_call_operand.vmem [shape: f32[8,1], index: 3, kind: input, shape index: {}]
  %s4 = inlined_call_operand.vmem [shape: f32[8,1], index: 4, kind: input, shape index: {}]
  %s5 = inlined_call_operand.<no memory space> [shape: f32[1,1], index: 5, kind: input, shape index: {}]
  %s6 = inlined_call_operand.<no memory space> [shape: f32[1,1], index: 6, kind: input, shape index: {}]
  %s7 = inlined_call_operand.hbm [shape: f32[1,512], index: 7, kind: output, shape index: {}]
  %s8 = sld [smem:[#allocation0]]
  $region65: #{tpu_custom_call.1} parent=0
    _
  %s10 = ssub.s32 1, %s8
  %s11 = scalar_select 0, %s10, %s8
  %v12 = vstv %s5
  %13 = vst [vmem:[#allocation2] sm:$0x1] %v12
  %v14 = vstv %s6
  %15 = vst [vmem:[#allocation3] sm:$0x1] %v14
  $region1: #{tpu_custom_call.1} parent=0
    #allocation4 [shape = 'u8[262144]{0}', space=vmem, size = 0x40000, scoped, tag = 'input window, operand 0']
    #allocation5 [shape = 's32[2]{0}', space=sflag, size = 0x8, scoped, tag = 'scoped memory for tpu_custom_call.1']
    #allocation6 [shape = 's32[2]{0}', space=sflag, size = 0x8, scoped, tag = 'scoped memory for tpu_custom_call.1']
    #allocation7 [shape = 'u8[2048]{0}', space=vmem, size = 0x800, scoped, tag = 'output window, operand 0']
    %16 = vsyncpa [#allocation5], 0
    %s17 = scalar_lea.sflag [#allocation5], 1
    %18 = vsyncpa %s17, 0
    %19 = vsyncpa [#allocation6], 0
    %s20 = scalar_lea.sflag [#allocation6], 1
    %21 = vsyncpa %s20, 0
    loop: start=0, step=1, limit=4
    $region2: #{tpu_custom_call.1} parent=1 // loop_pre_header
      _
    $region3: #{tpu_custom_call.1} parent=1 // loop_header
      %s23 = sphi 0, %s27
      %p24 = scmp.ge.s32.totalorder %s23, 4
      %s33 = sphi 0, %s35
      %s36 = sphi 0, %s33
      %s37 = sphi 0, %s36
      %s53 = sphi 0, %s37
      %s59 = sphi 0, %s61
      %s62 = sphi 0, %s59
      %s63 = sphi 0, %s62
      %s79 = sphi 0, %s63
      %s83 = sphi 0, %s83
      %s85 = sphi 0, %s83
      %s86 = sphi 0, %s85
      %s100 = sphi 0, %s86
      %s104 = sphi 0, %s104
      %s106 = sphi 0, %s104
      %s107 = sphi 0, %s106
      %s121 = sphi 0, %s107
      %s125 = sphi 0, %s125
      %s127 = sphi 0, %s125
      %s128 = sphi 0, %s127
      %s142 = sphi 0, %s128
      %s146 = sphi 0, %s146
      %s148 = sphi 0, %s146
      %s149 = sphi 0, %s148
      %s163 = sphi 0, %s149
      %s167 = sphi 0, %s167
      %s169 = sphi 0, %s167
      %s170 = sphi 0, %s169
      %s184 = sphi 0, %s170
      %s190 = sphi 0, %s192
      %s193 = sphi 0, %s190
      %s194 = sphi 0, %s193
      %s210 = sphi 0, %s194
    $region4: #{tpu_custom_call.1} parent=1 // loop_header_branch
      %26 = sbr.rel (%p24) target = $region8
    $region5: #{tpu_custom_call.1} parent=1 // loop_body
      %s28 = ssub.s32 %s23, 1
      %s29 = ssub.s32 %s23, 2
      %s30 = sadd.s32 %s23, 1
      %s31 = ssub.s32 %s23, %s30
      %p32 = scmp.eq.s32.totalorder %s31, 0
      %s34 = sadd.s32 %s33, 1
      %s35 = scalar_select %p32, %s33, %s34
      %p38 = pneg %p32
      %p39 = scmp.eq.s32.totalorder %s23, 1
      %p40 = por %p38, %p39
      %p41 = scmp.ne.s32.totalorder %s33, %s36
      %p42 = scmp.eq.s32.totalorder %s23, 0
      %p43 = por %p41, %p42
      %p44 = scmp.ne.s32.totalorder %s33, %s36
      %p45 = scmp.eq.s32.totalorder %s28, 1
      %p46 = por %p44, %p45
      %p47 = scmp.ne.s32.totalorder %s36, %s37
      %p48 = scmp.eq.s32.totalorder %s28, 0
      %p49 = por %p47, %p48
      %p50 = scmp.ne.s32.totalorder %s36, %s37
      %p51 = scmp.eq.s32.totalorder %s29, 1
      %p52 = por %p50, %p51
      %p54 = scmp.ne.s32.totalorder %s37, %s53
      %p55 = scmp.eq.s32.totalorder %s29, 0
      %p56 = por %p54, %p55
      %s57 = ssub.s32 %s23, %s30
      %p58 = scmp.eq.s32.totalorder %s57, 0
      %s60 = sadd.s32 %s59, 1
      %s61 = scalar_select %p58, %s59, %s60
      %p64 = pneg %p58
      %p65 = scmp.eq.s32.totalorder %s23, 1
      %p66 = por %p64, %p65
      %p67 = scmp.ne.s32.totalorder %s59, %s62
      %p68 = scmp.eq.s32.totalorder %s23, 0
      %p69 = por %p67, %p68
      %p70 = scmp.ne.s32.totalorder %s59, %s62
      %p71 = scmp.eq.s32.totalorder %s28, 1
      %p72 = por %p70, %p71
      %p73 = scmp.ne.s32.totalorder %s62, %s63
      %p74 = scmp.eq.s32.totalorder %s28, 0
      %p75 = por %p73, %p74
      %p76 = scmp.ne.s32.totalorder %s62, %s63
      %p77 = scmp.eq.s32.totalorder %s29, 1
      %p78 = por %p76, %p77
      %p80 = scmp.ne.s32.totalorder %s63, %s79
      %p81 = scmp.eq.s32.totalorder %s29, 0
      %p82 = por %p80, %p81
      %s84 = sadd.s32 %s83, 1
      %p87 = scmp.eq.s32.totalorder %s23, 1
      %p88 = scmp.ne.s32.totalorder %s83, %s85
      %p89 = scmp.eq.s32.totalorder %s23, 0
      %p90 = por %p88, %p89
      %p91 = scmp.ne.s32.totalorder %s83, %s85
      %p92 = scmp.eq.s32.totalorder %s28, 1
      %p93 = por %p91, %p92
      %p94 = scmp.ne.s32.totalorder %s85, %s86
      %p95 = scmp.eq.s32.totalorder %s28, 0
      %p96 = por %p94, %p95
      %p97 = scmp.ne.s32.totalorder %s85, %s86
      %p98 = scmp.eq.s32.totalorder %s29, 1
      %p99 = por %p97, %p98
      %p101 = scmp.ne.s32.totalorder %s86, %s100
      %p102 = scmp.eq.s32.totalorder %s29, 0
      %p103 = por %p101, %p102
      %s105 = sadd.s32 %s104, 1
      %p108 = scmp.eq.s32.totalorder %s23, 1
      %p109 = scmp.ne.s32.totalorder %s104, %s106
      %p110 = scmp.eq.s32.totalorder %s23, 0
      %p111 = por %p109, %p110
      %p112 = scmp.ne.s32.totalorder %s104, %s106
      %p113 = scmp.eq.s32.totalorder %s28, 1
      %p114 = por %p112, %p113
      %p115 = scmp.ne.s32.totalorder %s106, %s107
      %p116 = scmp.eq.s32.totalorder %s28, 0
      %p117 = por %p115, %p116
      %p118 = scmp.ne.s32.totalorder %s106, %s107
      %p119 = scmp.eq.s32.totalorder %s29, 1
      %p120 = por %p118, %p119
      %p122 = scmp.ne.s32.totalorder %s107, %s121
      %p123 = scmp.eq.s32.totalorder %s29, 0
      %p124 = por %p122, %p123
      %s126 = sadd.s32 %s125, 1
      %p129 = scmp.eq.s32.totalorder %s23, 1
      %p130 = scmp.ne.s32.totalorder %s125, %s127
      %p131 = scmp.eq.s32.totalorder %s23, 0
      %p132 = por %p130, %p131
      %p133 = scmp.ne.s32.totalorder %s125, %s127
      %p134 = scmp.eq.s32.totalorder %s28, 1
      %p135 = por %p133, %p134
      %p136 = scmp.ne.s32.totalorder %s127, %s128
      %p137 = scmp.eq.s32.totalorder %s28, 0
      %p138 = por %p136, %p137
      %p139 = scmp.ne.s32.totalorder %s127, %s128
      %p140 = scmp.eq.s32.totalorder %s29, 1
      %p141 = por %p139, %p140
      %p143 = scmp.ne.s32.totalorder %s128, %s142
      %p144 = scmp.eq.s32.totalorder %s29, 0
      %p145 = por %p143, %p144
      %s147 = sadd.s32 %s146, 1
      %p150 = scmp.eq.s32.totalorder %s23, 1
      %p151 = scmp.ne.s32.totalorder %s146, %s148
      %p152 = scmp.eq.s32.totalorder %s23, 0
      %p153 = por %p151, %p152
      %p154 = scmp.ne.s32.totalorder %s146, %s148
      %p155 = scmp.eq.s32.totalorder %s28, 1
      %p156 = por %p154, %p155
      %p157 = scmp.ne.s32.totalorder %s148, %s149
      %p158 = scmp.eq.s32.totalorder %s28, 0
      %p159 = por %p157, %p158
      %p160 = scmp.ne.s32.totalorder %s148, %s149
      %p161 = scmp.eq.s32.totalorder %s29, 1
      %p162 = por %p160, %p161
      %p164 = scmp.ne.s32.totalorder %s149, %s163
      %p165 = scmp.eq.s32.totalorder %s29, 0
      %p166 = por %p164, %p165
      %s168 = sadd.s32 %s167, 1
      %p171 = scmp.eq.s32.totalorder %s23, 1
      %p172 = scmp.ne.s32.totalorder %s167, %s169
      %p173 = scmp.eq.s32.totalorder %s23, 0
      %p174 = por %p172, %p173
      %p175 = scmp.ne.s32.totalorder %s167, %s169
      %p176 = scmp.eq.s32.totalorder %s28, 1
      %p177 = por %p175, %p176
      %p178 = scmp.ne.s32.totalorder %s169, %s170
      %p179 = scmp.eq.s32.totalorder %s28, 0
      %p180 = por %p178, %p179
      %p181 = scmp.ne.s32.totalorder %s169, %s170
      %p182 = scmp.eq.s32.totalorder %s29, 1
      %p183 = por %p181, %p182
      %p185 = scmp.ne.s32.totalorder %s170, %s184
      %p186 = scmp.eq.s32.totalorder %s29, 0
      %p187 = por %p185, %p186
      %s188 = ssub.s32 %s23, %s30
      %p189 = scmp.eq.s32.totalorder %s188, 0
      %s191 = sadd.s32 %s190, 1
      %s192 = scalar_select %p189, %s190, %s191
      %p195 = pneg %p189
      %p196 = scmp.eq.s32.totalorder %s23, 1
      %p197 = por %p195, %p196
      %p198 = scmp.ne.s32.totalorder %s190, %s193
      %p199 = scmp.eq.s32.totalorder %s23, 0
      %p200 = por %p198, %p199
      %p201 = scmp.ne.s32.totalorder %s190, %s193
      %p202 = scmp.eq.s32.totalorder %s28, 1
      %p203 = por %p201, %p202
      %p204 = scmp.ne.s32.totalorder %s193, %s194
      %p205 = scmp.eq.s32.totalorder %s28, 0
      %p206 = por %p204, %p205
      %p207 = scmp.ne.s32.totalorder %s193, %s194
      %p208 = scmp.eq.s32.totalorder %s29, 1
      %p209 = por %p207, %p208
      %p211 = scmp.ne.s32.totalorder %s194, %s210
      %p212 = scmp.eq.s32.totalorder %s29, 0
      %p213 = por %p211, %p212
      %p214 = scmp.le.s32.totalorder 1, %s23
      %p215 = scmp.lt.s32.totalorder %s23, 3
      %p216 = pnand %p214, %p215
      %p217 = pneg %p216
      // Predicated region
      $region9: #{tpu_custom_call.1} parent=5 // pred_check
        _
      $region10: #{tpu_custom_call.1} parent=5 // pred_check_branch
        %219 = sbr.rel (%p216) target = $region12
      $region11: #{tpu_custom_call.1} parent=5 // pred_region
        %s220 = ssub.s32 %s23, 1
        // Predicated region
        $region13: #{tpu_custom_call.1} parent=11 // pred_check
          %p221 = pneg %p96
        $region14: #{tpu_custom_call.1} parent=11 // pred_check_branch
          %223 = sbr.rel (%p221) target = $region16
        $region15: #{tpu_custom_call.1} parent=11 // pred_region
          _
        $region16: #{tpu_custom_call.1} parent=11 // pred_fallthru
          _
        // Predicated region
        $region17: #{tpu_custom_call.1} parent=11 // pred_check
          %p224 = pneg %p117
        $region18: #{tpu_custom_call.1} parent=11 // pred_check_branch
          %226 = sbr.rel (%p224) target = $region20
        $region19: #{tpu_custom_call.1} parent=11 // pred_region
          _
        $region20: #{tpu_custom_call.1} parent=11 // pred_fallthru
          _
        // Predicated region
        $region21: #{tpu_custom_call.1} parent=11 // pred_check
          %p227 = pneg %p138
        $region22: #{tpu_custom_call.1} parent=11 // pred_check_branch
          %229 = sbr.rel (%p227) target = $region24
        $region23: #{tpu_custom_call.1} parent=11 // pred_region
          _
        $region24: #{tpu_custom_call.1} parent=11 // pred_fallthru
          _
        // Predicated region
        $region25: #{tpu_custom_call.1} parent=11 // pred_check
          %p230 = pneg %p159
        $region26: #{tpu_custom_call.1} parent=11 // pred_check_branch
          %232 = sbr.rel (%p230) target = $region28
        $region27: #{tpu_custom_call.1} parent=11 // pred_region
          _
        $region28: #{tpu_custom_call.1} parent=11 // pred_fallthru
          _
        // Predicated region
        $region29: #{tpu_custom_call.1} parent=11 // pred_check
          %p233 = pneg %p180
        $region30: #{tpu_custom_call.1} parent=11 // pred_check_branch
          %235 = sbr.rel (%p233) target = $region32
        $region31: #{tpu_custom_call.1} parent=11 // pred_region
          _
        $region32: #{tpu_custom_call.1} parent=11 // pred_fallthru
          _
      $region12: #{tpu_custom_call.1} parent=5 // pred_fallthru
        _
      %p236 = scmp.lt.s32.totalorder %s23, 2
      // Predicated region
      $region33: #{tpu_custom_call.1} parent=5 // pred_check
        %p237 = pneg %p236
      $region34: #{tpu_custom_call.1} parent=5 // pred_check_branch
        %239 = sbr.rel (%p237) target = $region36
      $region35: #{tpu_custom_call.1} parent=5 // pred_region
        // Predicated region
        $region37: #{tpu_custom_call.1} parent=35 // pred_check
          %p240 = pneg %p43
        $region38: #{tpu_custom_call.1} parent=35 // pred_check_branch
          %242 = sbr.rel (%p240) target = $region40
        $region39: #{tpu_custom_call.1} parent=35 // pred_region
          %s243 = sand.u32 %s33, 1
          %s244 = scalar_lea.sflag [#allocation5], %s243
          %s245 = sand.u32 %s33, 1
          %s246 = smul.addr %s245, 256
          %s247 = scalar_lea.vmem [#allocation4], %s246
          %s248 = smul.u32 2, %s23
          %s250 = ssub.s32 4096, 4096
          %251 = vsyncadd %s244, %s250
          %s252 = smul.addr %s248, 128
          %s253 = scalar_lea.hbm %s0, %s252
          %s254 = sshll.u32 %s247, 4
          %s255 = int_to_ptr.vmem [resolvable:$true] %s254
          %260 = dma.hbm_to_vmem [thread:$0]  %s253, 4096, %s255, %s244, 512, 256, 16
        $region40: #{tpu_custom_call.1} parent=35 // pred_fallthru
          _
        // Predicated region
        $region41: #{tpu_custom_call.1} parent=35 // pred_check
          %p261 = pneg %p69
        $region42: #{tpu_custom_call.1} parent=35 // pred_check_branch
          %263 = sbr.rel (%p261) target = $region44
        $region43: #{tpu_custom_call.1} parent=35 // pred_region
          %s264 = smul.u32 2, %s23
          %p265 = scmp.lt.s32.totalorder %s264, 3
          %s266 = scalar_select %p265, %s264, 3
          %s267 = scalar_lea.vmem %s1, %s266
          %s268 = smul.u32 2, %s23
        $region44: #{tpu_custom_call.1} parent=35 // pred_fallthru
          _
      $region36: #{tpu_custom_call.1} parent=5 // pred_fallthru
        _
      %p269 = scmp.le.s32.totalorder 1, %s23
      %p270 = scmp.lt.s32.totalorder %s23, 3
      %p271 = pnand %p269, %p270
      %p272 = pneg %p271
      // Predicated region
      $region45: #{tpu_custom_call.1} parent=5 // pred_check
        _
      $region46: #{tpu_custom_call.1} parent=5 // pred_check_branch
        %274 = sbr.rel (%p271) target = $region48
      $region47: #{tpu_custom_call.1} parent=5 // pred_region
        %s275 = ssub.s32 %s23, 1
        %s276 = sand.u32 %s36, 1
        %s277 = scalar_lea.sflag [#allocation5], %s276
        %s278 = sand.u32 %s36, 1
        %s279 = smul.addr %s278, 256
        %s280 = scalar_lea.vmem [#allocation4], %s279
        // Predicated region
        $region49: #{tpu_custom_call.1} parent=47 // pred_check
          %p281 = pneg %p49
        $region50: #{tpu_custom_call.1} parent=47 // pred_check_branch
          %283 = sbr.rel (%p281) target = $region52
        $region51: #{tpu_custom_call.1} parent=47 // pred_region
          %284 = dma.done %s277, 4096
        $region52: #{tpu_custom_call.1} parent=47 // pred_fallthru
          _
        %s285 = sand.u32 %s36, 1
        %s286 = scalar_lea.sflag [#allocation5], %s285
        %s287 = sand.u32 %s36, 1
        %s288 = smul.addr %s287, 256
        %s289 = scalar_lea.vmem [#allocation4], %s288
        %p290 = pneg %p49
        %p291 = pneg %p46
        %s292 = smul.u32 2, %s28
        %p293 = scmp.lt.s32.totalorder %s292, 3
        %s294 = scalar_select %p293, %s292, 3
        %s295 = scalar_lea.vmem %s1, %s294
        %p296 = pneg %p75
        %p297 = pneg %p72
        %p298 = pneg %p96
        %p299 = pneg %p93
        %p300 = pneg %p117
        %p301 = pneg %p114
        %p302 = pneg %p138
        %p303 = pneg %p135
        %p304 = pneg %p159
        %p305 = pneg %p156
        %p306 = pneg %p180
        %p307 = pneg %p177
        %p308 = pneg %p206
        %p309 = pneg %p203
        %s310 = sand.u32 %s193, 1
        %s311 = scalar_lea.sflag [#allocation6], %s310
        %s312 = sand.u32 %s193, 1
        %s313 = smul.addr %s312, 2
        %s314 = scalar_lea.vmem [#allocation7], %s313
        %s315 = smul.u32 2, %s28
        %s316 = smul.u32 2, %s28
        %p317 = scmp.lt.s32.totalorder %s316, 3
        %s318 = scalar_select %p317, %s316, 3
        %s319 = scalar_lea.vmem %s1, %s318
        %s320 = smul.u32 2, %s28
        %s321 = smul.u32 2, %s28
        %v322 = vld [vmem:[%s280] sm:$0xff]
        %v323 = vld [vmem:[%s280 + $0x8] sm:$0xff]
        %v324 = vld [vmem:[%s280 + $0x10] sm:$0xff]
        %v325 = vld [vmem:[%s280 + $0x18] sm:$0xff]
        %v326 = vld [vmem:[%s280 + $0x20] sm:$0xff]
        %v327 = vld [vmem:[%s280 + $0x28] sm:$0xff]
        %v328 = vld [vmem:[%s280 + $0x30] sm:$0xff]
        %v329 = vld [vmem:[%s280 + $0x38] sm:$0xff]
        %v330 = vld [vmem:[%s280 + $0x40] sm:$0xff]
        %v331 = vld [vmem:[%s280 + $0x48] sm:$0xff]
        %v332 = vld [vmem:[%s280 + $0x50] sm:$0xff]
        %v333 = vld [vmem:[%s280 + $0x58] sm:$0xff]
        %v334 = vld [vmem:[%s280 + $0x60] sm:$0xff]
        %v335 = vld [vmem:[%s280 + $0x68] sm:$0xff]
        %v336 = vld [vmem:[%s280 + $0x70] sm:$0xff]
        %v337 = vld [vmem:[%s280 + $0x78] sm:$0xff]
        %v338 = vld [vmem:[%s280 + $0x80] sm:$0xff]
        %v339 = vld [vmem:[%s280 + $0x88] sm:$0xff]
        %v340 = vld [vmem:[%s280 + $0x90] sm:$0xff]
        %v341 = vld [vmem:[%s280 + $0x98] sm:$0xff]
        %v342 = vld [vmem:[%s280 + $0xa0] sm:$0xff]
        %v343 = vld [vmem:[%s280 + $0xa8] sm:$0xff]
        %v344 = vld [vmem:[%s280 + $0xb0] sm:$0xff]
        %v345 = vld [vmem:[%s280 + $0xb8] sm:$0xff]
        %v346 = vld [vmem:[%s280 + $0xc0] sm:$0xff]
        %v347 = vld [vmem:[%s280 + $0xc8] sm:$0xff]
        %v348 = vld [vmem:[%s280 + $0xd0] sm:$0xff]
        %v349 = vld [vmem:[%s280 + $0xd8] sm:$0xff]
        %v350 = vld [vmem:[%s280 + $0xe0] sm:$0xff]
        %v351 = vld [vmem:[%s280 + $0xe8] sm:$0xff]
        %v352 = vld [vmem:[%s280 + $0xf0] sm:$0xff]
        %v353 = vld [vmem:[%s280 + $0xf8] sm:$0xff]
        %v354 = vmul.f32 %v322, %v326
        %v355 = vmul.f32 %v323, %v327
        %v356 = vmul.f32 %v324, %v328
        %v357 = vmul.f32 %v325, %v329
        %v358 = vmul.f32 %v322, %v330
        %v359 = vmul.f32 %v323, %v331
        %v360 = vmul.f32 %v324, %v332
        %v361 = vmul.f32 %v325, %v333
        %v362 = vmul.f32 %v322, %v334
        %v363 = vmul.f32 %v323, %v335
        %v364 = vmul.f32 %v324, %v336
        %v365 = vmul.f32 %v325, %v337
        %v366 = vmul.f32 %v322, %v338
        %v367 = vmul.f32 %v323, %v339
        %v368 = vmul.f32 %v324, %v340
        %v369 = vmul.f32 %v325, %v341
        %v370 = vmul.f32 %v322, %v342
        %v371 = vmul.f32 %v323, %v343
        %v372 = vmul.f32 %v324, %v344
        %v373 = vmul.f32 %v325, %v345
        %v374 = vmul.f32 %v322, %v346
        %v375 = vmul.f32 %v323, %v347
        %v376 = vmul.f32 %v324, %v348
        %v377 = vmul.f32 %v325, %v349
        %v378 = vmul.f32 %v322, %v350
        %v379 = vmul.f32 %v323, %v351
        %v380 = vmul.f32 %v324, %v352
        %v381 = vmul.f32 %v325, %v353
        %v382 = vmul.f32 %v326, %v330
        %v383 = vmul.f32 %v327, %v331
        %v384 = vmul.f32 %v328, %v332
        %v385 = vmul.f32 %v329, %v333
        %v386 = vmul.f32 %v326, %v334
        %v387 = vmul.f32 %v327, %v335
        %v388 = vmul.f32 %v328, %v336
        %v389 = vmul.f32 %v329, %v337
        %v390 = vmul.f32 %v326, %v338
        %v391 = vmul.f32 %v327, %v339
        %v392 = vmul.f32 %v328, %v340
        %v393 = vmul.f32 %v329, %v341
        %v394 = vmul.f32 %v326, %v342
        %v395 = vmul.f32 %v327, %v343
        %v396 = vmul.f32 %v328, %v344
        %v397 = vmul.f32 %v329, %v345
        %v398 = vmul.f32 %v326, %v346
        %v399 = vmul.f32 %v327, %v347
        %v400 = vmul.f32 %v328, %v348
        %v401 = vmul.f32 %v329, %v349
        %v402 = vmul.f32 %v326, %v350
        %v403 = vmul.f32 %v327, %v351
        %v404 = vmul.f32 %v328, %v352
        %v405 = vmul.f32 %v329, %v353
        %v406 = vmul.f32 %v330, %v334
        %v407 = vmul.f32 %v331, %v335
        %v408 = vmul.f32 %v332, %v336
        %v409 = vmul.f32 %v333, %v337
        %v410 = vmul.f32 %v330, %v338
        %v411 = vmul.f32 %v331, %v339
        %v412 = vmul.f32 %v332, %v340
        %v413 = vmul.f32 %v333, %v341
        %v414 = vmul.f32 %v330, %v342
        %v415 = vmul.f32 %v331, %v343
        %v416 = vmul.f32 %v332, %v344
        %v417 = vmul.f32 %v333, %v345
        %v418 = vmul.f32 %v330, %v346
        %v419 = vmul.f32 %v331, %v347
        %v420 = vmul.f32 %v332, %v348
        %v421 = vmul.f32 %v333, %v349
        %v422 = vmul.f32 %v330, %v350
        %v423 = vmul.f32 %v331, %v351
        %v424 = vmul.f32 %v332, %v352
        %v425 = vmul.f32 %v333, %v353
        %v426 = vmul.f32 %v334, %v338
        %v427 = vmul.f32 %v335, %v339
        %v428 = vmul.f32 %v336, %v340
        %v429 = vmul.f32 %v337, %v341
        %v430 = vmul.f32 %v334, %v342
        %v431 = vmul.f32 %v335, %v343
        %v432 = vmul.f32 %v336, %v344
        %v433 = vmul.f32 %v337, %v345
        %v434 = vmul.f32 %v334, %v346
        %v435 = vmul.f32 %v335, %v347
        %v436 = vmul.f32 %v336, %v348
        %v437 = vmul.f32 %v337, %v349
        %v438 = vmul.f32 %v334, %v350
        %v439 = vmul.f32 %v335, %v351
        %v440 = vmul.f32 %v336, %v352
        %v441 = vmul.f32 %v337, %v353
        %v442 = vmul.f32 %v338, %v342
        %v443 = vmul.f32 %v339, %v343
        %v444 = vmul.f32 %v340, %v344
        %v445 = vmul.f32 %v341, %v345
        %v446 = vmul.f32 %v338, %v346
        %v447 = vmul.f32 %v339, %v347
        %v448 = vmul.f32 %v340, %v348
        %v449 = vmul.f32 %v341, %v349
        %v450 = vmul.f32 %v338, %v350
        %v451 = vmul.f32 %v339, %v351
        %v452 = vmul.f32 %v340, %v352
        %v453 = vmul.f32 %v341, %v353
        %v454 = vmul.f32 %v342, %v346
        %v455 = vmul.f32 %v343, %v347
        %v456 = vmul.f32 %v344, %v348
        %v457 = vmul.f32 %v345, %v349
        %v458 = vmul.f32 %v342, %v350
        %v459 = vmul.f32 %v343, %v351
        %v460 = vmul.f32 %v344, %v352
        %v461 = vmul.f32 %v345, %v353
        %v462 = vmul.f32 %v346, %v350
        %v463 = vmul.f32 %v347, %v351
        %v464 = vmul.f32 %v348, %v352
        %v465 = vmul.f32 %v349, %v353
        %v466 = vld [vmem:[%s2] sm:$0xff]
        %v467 = vld [vmem:[%s2 + $0x8] sm:$0x1]
        %vm468 = vcmask 130048
        %v470 = vsel %vm468, %v466, 0
        %v473 = vsel %vm468, %v467, 0
        %475 = vmatprep.subr.mxu0 0.0
        %476 = vmatpush1.msra.mxu0 0.0
        %477 = vmatprep.subr.mxu0 0.0
        %478 = vmatpush1.msra.mxu0 0.0
        %479 = vmatprep.subr.mxu0 0.0
        %480 = vmatpush1.msra.mxu0 0.0
        %481 = vmatprep.subr.mxu0 0.0
        %482 = vmatpush1.msra.mxu0 0.0
        %483 = vmatprep.subr.mxu0 0.0
        %484 = vmatpush1.msra.mxu0 0.0
        %485 = vmatprep.subr.mxu0 0.0
        %486 = vmatpush1.msra.mxu0 0.0
        %487 = vmatprep.subr.mxu0 0.0
        %488 = vmatpush1.msra.mxu0 0.0
        %489 = vmatprep.subr.mxu0 0.0
        %490 = vmatpush1.msra.mxu0 0.0
        %491 = vmatprep.subr.mxu0 0.0
        %492 = vmatpush1.msra.mxu0 0.0
        %493 = vmatprep.subr.mxu0 0.0
        %494 = vmatpush1.msra.mxu0 0.0
        %495 = vmatprep.subr.mxu0 0.0
        %496 = vmatpush1.msra.mxu0 0.0
        %497 = vmatprep.subr.mxu0 0.0
        %498 = vmatpush1.msra.mxu0 0.0
        %499 = vmatprep.subr.mxu0 0.0
        %500 = vmatpush1.msra.mxu0 0.0
        %501 = vmatprep.subr.mxu0 0.0
        %502 = vmatpush1.msra.mxu0 0.0
        %503 = vmatprep.subr.mxu0 %v357
        %504 = vmatpush1.msra.mxu0 %v356
        %505 = vmatprep.subr.mxu0 %v355
        %506 = vmatpush1.msra.mxu0 %v354
        %507 = vmatprep.subr.mxu0 0.0
        %508 = vmatpush2.msra.mxu0 0.0
        %509 = vmatprep.subr.mxu0 0.0
        %510 = vmatpush2.msra.mxu0 0.0
        %511 = vmatprep.subr.mxu0 0.0
        %512 = vmatpush2.msra.mxu0 0.0
        %513 = vmatprep.subr.mxu0 0.0
        %514 = vmatpush2.msra.mxu0 0.0
        %515 = vmatprep.subr.mxu0 0.0
        %516 = vmatpush2.msra.mxu0 0.0
        %517 = vmatprep.subr.mxu0 0.0
        %518 = vmatpush2.msra.mxu0 0.0
        %519 = vmatprep.subr.mxu0 0.0
        %520 = vmatpush2.msra.mxu0 0.0
        %521 = vmatprep.subr.mxu0 0.0
        %522 = vmatpush2.msra.mxu0 0.0
        %523 = vmatprep.subr.mxu0 0.0
        %524 = vmatpush2.msra.mxu0 0.0
        %525 = vmatprep.subr.mxu0 0.0
        %526 = vmatpush2.msra.mxu0 0.0
        %527 = vmatprep.subr.mxu0 0.0
        %528 = vmatpush2.msra.mxu0 0.0
        %529 = vmatprep.subr.mxu0 0.0
        %530 = vmatpush2.msra.mxu0 0.0
        %531 = vmatprep.subr.mxu0 0.0
        %532 = vmatpush2.msra.mxu0 0.0
        %533 = vmatprep.subr.mxu0 0.0
        %534 = vmatpush2.msra.mxu0 0.0
        %535 = vmatprep.subr.mxu0 0.0
        %536 = vmatpush2.msra.mxu0 0.0
        %537 = vmatprep.subr.mxu0 0.0
        %538 = vmatpush2.msra.mxu0 0.0
        %539 = vmatprep.mubr.f32.mxu0 0.0
        %540 = vmatmul.mubr.f32.gmra.mxu0 %v470
        %v541 = vpop.f32.mrf.mxu0
        %v542 = vadd.f32 0.0, %v541
        %v543 = vpop.f32.mrf.mxu0
        %v544 = vadd.f32 0.0, %v543
        %545 = vmatprep.mubr.f32.mxu0 0.0
        %546 = vmatmul.mubr.f32.gmra.mxu0 %v473
        %v547 = vpop.f32.mrf.mxu0
        %v548 = vadd.f32 0.0, %v547
        %v549 = vpop.f32.mrf.mxu0
        %v550 = vadd.f32 0.0, %v549
        %551 = vdwg.mxu0
        %552 = vmatprep.subr.mxu0 0.0
        %553 = vmatpush1.msra.mxu0 0.0
        %554 = vmatprep.subr.mxu0 0.0
        %555 = vmatpush1.msra.mxu0 0.0
        %556 = vmatprep.subr.mxu0 0.0
        %557 = vmatpush1.msra.mxu0 0.0
        %558 = vmatprep.subr.mxu0 0.0
        %559 = vmatpush1.msra.mxu0 0.0
        %560 = vmatprep.subr.mxu0 0.0
        %561 = vmatpush1.msra.mxu0 0.0
        %562 = vmatprep.subr.mxu0 0.0
        %563 = vmatpush1.msra.mxu0 0.0
        %564 = vmatprep.subr.mxu0 0.0
        %565 = vmatpush1.msra.mxu0 0.0
        %566 = vmatprep.subr.mxu0 0.0
        %567 = vmatpush1.msra.mxu0 0.0
        %568 = vmatprep.subr.mxu0 0.0
        %569 = vmatpush1.msra.mxu0 0.0
        %570 = vmatprep.subr.mxu0 0.0
        %571 = vmatpush1.msra.mxu0 0.0
        %572 = vmatprep.subr.mxu0 0.0
        %573 = vmatpush1.msra.mxu0 0.0
        %574 = vmatprep.subr.mxu0 0.0
        %575 = vmatpush1.msra.mxu0 0.0
        %576 = vmatprep.subr.mxu0 0.0
        %577 = vmatpush1.msra.mxu0 0.0
        %578 = vmatprep.subr.mxu0 0.0
        %579 = vmatpush1.msra.mxu0 0.0
        %580 = vmatprep.subr.mxu0 %v361
        %581 = vmatpush1.msra.mxu0 %v360
        %582 = vmatprep.subr.mxu0 %v359
        %583 = vmatpush1.msra.mxu0 %v358
        %584 = vmatprep.subr.mxu0 0.0
        %585 = vmatpush2.msra.mxu0 0.0
        %586 = vmatprep.subr.mxu0 0.0
        %587 = vmatpush2.msra.mxu0 0.0
        %588 = vmatprep.subr.mxu0 0.0
        %589 = vmatpush2.msra.mxu0 0.0
        %590 = vmatprep.subr.mxu0 0.0
        %591 = vmatpush2.msra.mxu0 0.0
        %592 = vmatprep.subr.mxu0 0.0
        %593 = vmatpush2.msra.mxu0 0.0
        %594 = vmatprep.subr.mxu0 0.0
        %595 = vmatpush2.msra.mxu0 0.0
        %596 = vmatprep.subr.mxu0 0.0
        %597 = vmatpush2.msra.mxu0 0.0
        %598 = vmatprep.subr.mxu0 0.0
        %599 = vmatpush2.msra.mxu0 0.0
        %600 = vmatprep.subr.mxu0 0.0
        %601 = vmatpush2.msra.mxu0 0.0
        %602 = vmatprep.subr.mxu0 0.0
        %603 = vmatpush2.msra.mxu0 0.0
        %604 = vmatprep.subr.mxu0 0.0
        %605 = vmatpush2.msra.mxu0 0.0
        %606 = vmatprep.subr.mxu0 0.0
        %607 = vmatpush2.msra.mxu0 0.0
        %608 = vmatprep.subr.mxu0 0.0
        %609 = vmatpush2.msra.mxu0 0.0
        %610 = vmatprep.subr.mxu0 0.0
        %611 = vmatpush2.msra.mxu0 0.0
        %612 = vmatprep.subr.mxu0 0.0
        %613 = vmatpush2.msra.mxu0 0.0
        %614 = vmatprep.subr.mxu0 0.0
        %615 = vmatpush2.msra.mxu0 0.0
        %616 = vmatprep.mubr.f32.mxu0 0.0
        %617 = vmatmul.mubr.f32.gmra.mxu0 %v470
        %v618 = vpop.f32.mrf.mxu0
        %v619 = vadd.f32 0.0, %v618
        %v620 = vpop.f32.mrf.mxu0
        %v621 = vadd.f32 0.0, %v620
        %622 = vmatprep.mubr.f32.mxu0 0.0
        %623 = vmatmul.mubr.f32.gmra.mxu0 %v473
        %v624 = vpop.f32.mrf.mxu0
        %v625 = vadd.f32 0.0, %v624
        %v626 = vpop.f32.mrf.mxu0
        %v627 = vadd.f32 0.0, %v626
        %628 = vdwg.mxu0
        %629 = vmatprep.subr.mxu0 0.0
        %630 = vmatpush1.msra.mxu0 0.0
        %631 = vmatprep.subr.mxu0 0.0
        %632 = vmatpush1.msra.mxu0 0.0
        %633 = vmatprep.subr.mxu0 0.0
        %634 = vmatpush1.msra.mxu0 0.0
        %635 = vmatprep.subr.mxu0 0.0
        %636 = vmatpush1.msra.mxu0 0.0
        %637 = vmatprep.subr.mxu0 0.0
        %638 = vmatpush1.msra.mxu0 0.0
        %639 = vmatprep.subr.mxu0 0.0
        %640 = vmatpush1.msra.mxu0 0.0
        %641 = vmatprep.subr.mxu0 0.0
        %642 = vmatpush1.msra.mxu0 0.0
        %643 = vmatprep.subr.mxu0 0.0
        %644 = vmatpush1.msra.mxu0 0.0
        %645 = vmatprep.subr.mxu0 0.0
        %646 = vmatpush1.msra.mxu0 0.0
        %647 = vmatprep.subr.mxu0 0.0
        %648 = vmatpush1.msra.mxu0 0.0
        %649 = vmatprep.subr.mxu0 0.0
        %650 = vmatpush1.msra.mxu0 0.0
        %651 = vmatprep.subr.mxu0 0.0
        %652 = vmatpush1.msra.mxu0 0.0
        %653 = vmatprep.subr.mxu0 0.0
        %654 = vmatpush1.msra.mxu0 0.0
        %655 = vmatprep.subr.mxu0 0.0
        %656 = vmatpush1.msra.mxu0 0.0
        %657 = vmatprep.subr.mxu0 %v365
        %658 = vmatpush1.msra.mxu0 %v364
        %659 = vmatprep.subr.mxu0 %v363
        %660 = vmatpush1.msra.mxu0 %v362
        %661 = vmatprep.subr.mxu0 0.0
        %662 = vmatpush2.msra.mxu0 0.0
        %663 = vmatprep.subr.mxu0 0.0
        %664 = vmatpush2.msra.mxu0 0.0
        %665 = vmatprep.subr.mxu0 0.0
        %666 = vmatpush2.msra.mxu0 0.0
        %667 = vmatprep.subr.mxu0 0.0
        %668 = vmatpush2.msra.mxu0 0.0
        %669 = vmatprep.subr.mxu0 0.0
        %670 = vmatpush2.msra.mxu0 0.0
        %671 = vmatprep.subr.mxu0 0.0
        %672 = vmatpush2.msra.mxu0 0.0
        %673 = vmatprep.subr.mxu0 0.0
        %674 = vmatpush2.msra.mxu0 0.0
        %675 = vmatprep.subr.mxu0 0.0
        %676 = vmatpush2.msra.mxu0 0.0
        %677 = vmatprep.subr.mxu0 0.0
        %678 = vmatpush2.msra.mxu0 0.0
        %679 = vmatprep.subr.mxu0 0.0
        %680 = vmatpush2.msra.mxu0 0.0
        %681 = vmatprep.subr.mxu0 0.0
        %682 = vmatpush2.msra.mxu0 0.0
        %683 = vmatprep.subr.mxu0 0.0
        %684 = vmatpush2.msra.mxu0 0.0
        %685 = vmatprep.subr.mxu0 0.0
        %686 = vmatpush2.msra.mxu0 0.0
        %687 = vmatprep.subr.mxu0 0.0
        %688 = vmatpush2.msra.mxu0 0.0
        %689 = vmatprep.subr.mxu0 0.0
        %690 = vmatpush2.msra.mxu0 0.0
        %691 = vmatprep.subr.mxu0 0.0
        %692 = vmatpush2.msra.mxu0 0.0
        %693 = vmatprep.mubr.f32.mxu0 0.0
        %694 = vmatmul.mubr.f32.gmra.mxu0 %v470
        %v695 = vpop.f32.mrf.mxu0
        %v696 = vadd.f32 0.0, %v695
        %v697 = vpop.f32.mrf.mxu0
        %v698 = vadd.f32 0.0, %v697
        %699 = vmatprep.mubr.f32.mxu0 0.0
        %700 = vmatmul.mubr.f32.gmra.mxu0 %v473
        %v701 = vpop.f32.mrf.mxu0
        %v702 = vadd.f32 0.0, %v701
        %v703 = vpop.f32.mrf.mxu0
        %v704 = vadd.f32 0.0, %v703
        %705 = vdwg.mxu0
        %706 = vmatprep.subr.mxu0 0.0
        %707 = vmatpush1.msra.mxu0 0.0
        %708 = vmatprep.subr.mxu0 0.0
        %709 = vmatpush1.msra.mxu0 0.0
        %710 = vmatprep.subr.mxu0 0.0
        %711 = vmatpush1.msra.mxu0 0.0
        %712 = vmatprep.subr.mxu0 0.0
        %713 = vmatpush1.msra.mxu0 0.0
        %714 = vmatprep.subr.mxu0 0.0
        %715 = vmatpush1.msra.mxu0 0.0
        %716 = vmatprep.subr.mxu0 0.0
        %717 = vmatpush1.msra.mxu0 0.0
        %718 = vmatprep.subr.mxu0 0.0
        %719 = vmatpush1.msra.mxu0 0.0
        %720 = vmatprep.subr.mxu0 0.0
        %721 = vmatpush1.msra.mxu0 0.0
        %722 = vmatprep.subr.mxu0 0.0
        %723 = vmatpush1.msra.mxu0 0.0
        %724 = vmatprep.subr.mxu0 0.0
        %725 = vmatpush1.msra.mxu0 0.0
        %726 = vmatprep.subr.mxu0 0.0
        %727 = vmatpush1.msra.mxu0 0.0
        %728 = vmatprep.subr.mxu0 0.0
        %729 = vmatpush1.msra.mxu0 0.0
        %730 = vmatprep.subr.mxu0 0.0
        %731 = vmatpush1.msra.mxu0 0.0
        %732 = vmatprep.subr.mxu0 0.0
        %733 = vmatpush1.msra.mxu0 0.0
        %734 = vmatprep.subr.mxu0 %v369
        %735 = vmatpush1.msra.mxu0 %v368
        %736 = vmatprep.subr.mxu0 %v367
        %737 = vmatpush1.msra.mxu0 %v366
        %738 = vmatprep.subr.mxu0 0.0
        %739 = vmatpush2.msra.mxu0 0.0
        %740 = vmatprep.subr.mxu0 0.0
        %741 = vmatpush2.msra.mxu0 0.0
        %742 = vmatprep.subr.mxu0 0.0
        %743 = vmatpush2.msra.mxu0 0.0
        %744 = vmatprep.subr.mxu0 0.0
        %745 = vmatpush2.msra.mxu0 0.0
        %746 = vmatprep.subr.mxu0 0.0
        %747 = vmatpush2.msra.mxu0 0.0
        %748 = vmatprep.subr.mxu0 0.0
        %749 = vmatpush2.msra.mxu0 0.0
        %750 = vmatprep.subr.mxu0 0.0
        %751 = vmatpush2.msra.mxu0 0.0
        %752 = vmatprep.subr.mxu0 0.0
        %753 = vmatpush2.msra.mxu0 0.0
        %754 = vmatprep.subr.mxu0 0.0
        %755 = vmatpush2.msra.mxu0 0.0
        %756 = vmatprep.subr.mxu0 0.0
        %757 = vmatpush2.msra.mxu0 0.0
        %758 = vmatprep.subr.mxu0 0.0
        %759 = vmatpush2.msra.mxu0 0.0
        %760 = vmatprep.subr.mxu0 0.0
        %761 = vmatpush2.msra.mxu0 0.0
        %762 = vmatprep.subr.mxu0 0.0
        %763 = vmatpush2.msra.mxu0 0.0
        %764 = vmatprep.subr.mxu0 0.0
        %765 = vmatpush2.msra.mxu0 0.0
        %766 = vmatprep.subr.mxu0 0.0
        %767 = vmatpush2.msra.mxu0 0.0
        %768 = vmatprep.subr.mxu0 0.0
        %769 = vmatpush2.msra.mxu0 0.0
        %770 = vmatprep.mubr.f32.mxu0 0.0
        %771 = vmatmul.mubr.f32.gmra.mxu0 %v470
        %v772 = vpop.f32.mrf.mxu0
        %v773 = vadd.f32 0.0, %v772
        %v774 = vpop.f32.mrf.mxu0
        %v775 = vadd.f32 0.0, %v774
        %776 = vmatprep.mubr.f32.mxu0 0.0
        %777 = vmatmul.mubr.f32.gmra.mxu0 %v473
        %v778 = vpop.f32.mrf.mxu0
        %v779 = vadd.f32 0.0, %v778
        %v780 = vpop.f32.mrf.mxu0
        %v781 = vadd.f32 0.0, %v780
        %782 = vdwg.mxu0
        %783 = vmatprep.subr.mxu0 0.0
        %784 = vmatpush1.msra.mxu0 0.0
        %785 = vmatprep.subr.mxu0 0.0
        %786 = vmatpush1.msra.mxu0 0.0
        %787 = vmatprep.subr.mxu0 0.0
        %788 = vmatpush1.msra.mxu0 0.0
        %789 = vmatprep.subr.mxu0 0.0
        %790 = vmatpush1.msra.mxu0 0.0
        %791 = vmatprep.subr.mxu0 0.0
        %792 = vmatpush1.msra.mxu0 0.0
        %793 = vmatprep.subr.mxu0 0.0
        %794 = vmatpush1.msra.mxu0 0.0
        %795 = vmatprep.subr.mxu0 0.0
        %796 = vmatpush1.msra.mxu0 0.0
        %797 = vmatprep.subr.mxu0 0.0
        %798 = vmatpush1.msra.mxu0 0.0
        %799 = vmatprep.subr.mxu0 0.0
        %800 = vmatpush1.msra.mxu0 0.0
        %801 = vmatprep.subr.mxu0 0.0
        %802 = vmatpush1.msra.mxu0 0.0
        %803 = vmatprep.subr.mxu0 0.0
        %804 = vmatpush1.msra.mxu0 0.0
        %805 = vmatprep.subr.mxu0 0.0
        %806 = vmatpush1.msra.mxu0 0.0
        %807 = vmatprep.subr.mxu0 0.0
        %808 = vmatpush1.msra.mxu0 0.0
        %809 = vmatprep.subr.mxu0 0.0
        %810 = vmatpush1.msra.mxu0 0.0
        %811 = vmatprep.subr.mxu0 %v373
        %812 = vmatpush1.msra.mxu0 %v372
        %813 = vmatprep.subr.mxu0 %v371
        %814 = vmatpush1.msra.mxu0 %v370
        %815 = vmatprep.subr.mxu0 0.0
        %816 = vmatpush2.msra.mxu0 0.0
        %817 = vmatprep.subr.mxu0 0.0
        %818 = vmatpush2.msra.mxu0 0.0
        %819 = vmatprep.subr.mxu0 0.0
        %820 = vmatpush2.msra.mxu0 0.0
        %821 = vmatprep.subr.mxu0 0.0
        %822 = vmatpush2.msra.mxu0 0.0
        %823 = vmatprep.subr.mxu0 0.0
        %824 = vmatpush2.msra.mxu0 0.0
        %825 = vmatprep.subr.mxu0 0.0
        %826 = vmatpush2.msra.mxu0 0.0
        %827 = vmatprep.subr.mxu0 0.0
        %828 = vmatpush2.msra.mxu0 0.0
        %829 = vmatprep.subr.mxu0 0.0
        %830 = vmatpush2.msra.mxu0 0.0
        %831 = vmatprep.subr.mxu0 0.0
        %832 = vmatpush2.msra.mxu0 0.0
        %833 = vmatprep.subr.mxu0 0.0
        %834 = vmatpush2.msra.mxu0 0.0
        %835 = vmatprep.subr.mxu0 0.0
        %836 = vmatpush2.msra.mxu0 0.0
        %837 = vmatprep.subr.mxu0 0.0
        %838 = vmatpush2.msra.mxu0 0.0
        %839 = vmatprep.subr.mxu0 0.0
        %840 = vmatpush2.msra.mxu0 0.0
        %841 = vmatprep.subr.mxu0 0.0
        %842 = vmatpush2.msra.mxu0 0.0
        %843 = vmatprep.subr.mxu0 0.0
        %844 = vmatpush2.msra.mxu0 0.0
        %845 = vmatprep.subr.mxu0 0.0
        %846 = vmatpush2.msra.mxu0 0.0
        %847 = vmatprep.mubr.f32.mxu0 0.0
        %848 = vmatmul.mubr.f32.gmra.mxu0 %v470
        %v849 = vpop.f32.mrf.mxu0
        %v850 = vadd.f32 0.0, %v849
        %v851 = vpop.f32.mrf.mxu0
        %v852 = vadd.f32 0.0, %v851
        %853 = vmatprep.mubr.f32.mxu0 0.0
        %854 = vmatmul.mubr.f32.gmra.mxu0 %v473
        %v855 = vpop.f32.mrf.mxu0
        %v856 = vadd.f32 0.0, %v855
        %v857 = vpop.f32.mrf.mxu0
        %v858 = vadd.f32 0.0, %v857
        %859 = vdwg.mxu0
        %860 = vmatprep.subr.mxu0 0.0
        %861 = vmatpush1.msra.mxu0 0.0
        %862 = vmatprep.subr.mxu0 0.0
        %863 = vmatpush1.msra.mxu0 0.0
        %864 = vmatprep.subr.mxu0 0.0
        %865 = vmatpush1.msra.mxu0 0.0
        %866 = vmatprep.subr.mxu0 0.0
        %867 = vmatpush1.msra.mxu0 0.0
        %868 = vmatprep.subr.mxu0 0.0
        %869 = vmatpush1.msra.mxu0 0.0
        %870 = vmatprep.subr.mxu0 0.0
        %871 = vmatpush1.msra.mxu0 0.0
        %872 = vmatprep.subr.mxu0 0.0
        %873 = vmatpush1.msra.mxu0 0.0
        %874 = vmatprep.subr.mxu0 0.0
        %875 = vmatpush1.msra.mxu0 0.0
        %876 = vmatprep.subr.mxu0 0.0
        %877 = vmatpush1.msra.mxu0 0.0
        %878 = vmatprep.subr.mxu0 0.0
        %879 = vmatpush1.msra.mxu0 0.0
        %880 = vmatprep.subr.mxu0 0.0
        %881 = vmatpush1.msra.mxu0 0.0
        %882 = vmatprep.subr.mxu0 0.0
        %883 = vmatpush1.msra.mxu0 0.0
        %884 = vmatprep.subr.mxu0 0.0
        %885 = vmatpush1.msra.mxu0 0.0
        %886 = vmatprep.subr.mxu0 0.0
        %887 = vmatpush1.msra.mxu0 0.0
        %888 = vmatprep.subr.mxu0 %v377
        %889 = vmatpush1.msra.mxu0 %v376
        %890 = vmatprep.subr.mxu0 %v375
        %891 = vmatpush1.msra.mxu0 %v374
        %892 = vmatprep.subr.mxu0 0.0
        %893 = vmatpush2.msra.mxu0 0.0
        %894 = vmatprep.subr.mxu0 0.0
        %895 = vmatpush2.msra.mxu0 0.0
        %896 = vmatprep.subr.mxu0 0.0
        %897 = vmatpush2.msra.mxu0 0.0
        %898 = vmatprep.subr.mxu0 0.0
        %899 = vmatpush2.msra.mxu0 0.0
        %900 = vmatprep.subr.mxu0 0.0
        %901 = vmatpush2.msra.mxu0 0.0
        %902 = vmatprep.subr.mxu0 0.0
        %903 = vmatpush2.msra.mxu0 0.0
        %904 = vmatprep.subr.mxu0 0.0
        %905 = vmatpush2.msra.mxu0 0.0
        %906 = vmatprep.subr.mxu0 0.0
        %907 = vmatpush2.msra.mxu0 0.0
        %908 = vmatprep.subr.mxu0 0.0
        %909 = vmatpush2.msra.mxu0 0.0
        %910 = vmatprep.subr.mxu0 0.0
        %911 = vmatpush2.msra.mxu0 0.0
        %912 = vmatprep.subr.mxu0 0.0
        %913 = vmatpush2.msra.mxu0 0.0
        %914 = vmatprep.subr.mxu0 0.0
        %915 = vmatpush2.msra.mxu0 0.0
        %916 = vmatprep.subr.mxu0 0.0
        %917 = vmatpush2.msra.mxu0 0.0
        %918 = vmatprep.subr.mxu0 0.0
        %919 = vmatpush2.msra.mxu0 0.0
        %920 = vmatprep.subr.mxu0 0.0
        %921 = vmatpush2.msra.mxu0 0.0
        %922 = vmatprep.subr.mxu0 0.0
        %923 = vmatpush2.msra.mxu0 0.0
        %924 = vmatprep.mubr.f32.mxu0 0.0
        %925 = vmatmul.mubr.f32.gmra.mxu0 %v470
        %v926 = vpop.f32.mrf.mxu0
        %v927 = vadd.f32 0.0, %v926
        %v928 = vpop.f32.mrf.mxu0
        %v929 = vadd.f32 0.0, %v928
        %930 = vmatprep.mubr.f32.mxu0 0.0
        %931 = vmatmul.mubr.f32.gmra.mxu0 %v473
        %v932 = vpop.f32.mrf.mxu0
        %v933 = vadd.f32 0.0, %v932
        %v934 = vpop.f32.mrf.mxu0
        %v935 = vadd.f32 0.0, %v934
        %936 = vdwg.mxu0
        %937 = vmatprep.subr.mxu0 0.0
        %938 = vmatpush1.msra.mxu0 0.0
        %939 = vmatprep.subr.mxu0 0.0
        %940 = vmatpush1.msra.mxu0 0.0
        %941 = vmatprep.subr.mxu0 0.0
        %942 = vmatpush1.msra.mxu0 0.0
        %943 = vmatprep.subr.mxu0 0.0
        %944 = vmatpush1.msra.mxu0 0.0
        %945 = vmatprep.subr.mxu0 0.0
        %946 = vmatpush1.msra.mxu0 0.0
        %947 = vmatprep.subr.mxu0 0.0
        %948 = vmatpush1.msra.mxu0 0.0
        %949 = vmatprep.subr.mxu0 0.0
        %950 = vmatpush1.msra.mxu0 0.0
        %951 = vmatprep.subr.mxu0 0.0
        %952 = vmatpush1.msra.mxu0 0.0
        %953 = vmatprep.subr.mxu0 0.0
        %954 = vmatpush1.msra.mxu0 0.0
        %955 = vmatprep.subr.mxu0 0.0
        %956 = vmatpush1.msra.mxu0 0.0
        %957 = vmatprep.subr.mxu0 0.0
        %958 = vmatpush1.msra.mxu0 0.0
        %959 = vmatprep.subr.mxu0 0.0
        %960 = vmatpush1.msra.mxu0 0.0
        %961 = vmatprep.subr.mxu0 0.0
        %962 = vmatpush1.msra.mxu0 0.0
        %963 = vmatprep.subr.mxu0 0.0
        %964 = vmatpush1.msra.mxu0 0.0
        %965 = vmatprep.subr.mxu0 %v381
        %966 = vmatpush1.msra.mxu0 %v380
        %967 = vmatprep.subr.mxu0 %v379
        %968 = vmatpush1.msra.mxu0 %v378
        %969 = vmatprep.subr.mxu0 0.0
        %970 = vmatpush2.msra.mxu0 0.0
        %971 = vmatprep.subr.mxu0 0.0
        %972 = vmatpush2.msra.mxu0 0.0
        %973 = vmatprep.subr.mxu0 0.0
        %974 = vmatpush2.msra.mxu0 0.0
        %975 = vmatprep.subr.mxu0 0.0
        %976 = vmatpush2.msra.mxu0 0.0
        %977 = vmatprep.subr.mxu0 0.0
        %978 = vmatpush2.msra.mxu0 0.0
        %979 = vmatprep.subr.mxu0 0.0
        %980 = vmatpush2.msra.mxu0 0.0
        %981 = vmatprep.subr.mxu0 0.0
        %982 = vmatpush2.msra.mxu0 0.0
        %983 = vmatprep.subr.mxu0 0.0
        %984 = vmatpush2.msra.mxu0 0.0
        %985 = vmatprep.subr.mxu0 0.0
        %986 = vmatpush2.msra.mxu0 0.0
        %987 = vmatprep.subr.mxu0 0.0
        %988 = vmatpush2.msra.mxu0 0.0
        %989 = vmatprep.subr.mxu0 0.0
        %990 = vmatpush2.msra.mxu0 0.0
        %991 = vmatprep.subr.mxu0 0.0
        %992 = vmatpush2.msra.mxu0 0.0
        %993 = vmatprep.subr.mxu0 0.0
        %994 = vmatpush2.msra.mxu0 0.0
        %995 = vmatprep.subr.mxu0 0.0
        %996 = vmatpush2.msra.mxu0 0.0
        %997 = vmatprep.subr.mxu0 0.0
        %998 = vmatpush2.msra.mxu0 0.0
        %999 = vmatprep.subr.mxu0 0.0
        %1000 = vmatpush2.msra.mxu0 0.0
        %1001 = vmatprep.mubr.f32.mxu0 0.0
        %1002 = vmatmul.mubr.f32.gmra.mxu0 %v470
        %v1003 = vpop.f32.mrf.mxu0
        %v1004 = vadd.f32 0.0, %v1003
        %v1005 = vpop.f32.mrf.mxu0
        %v1006 = vadd.f32 0.0, %v1005
        %1007 = vmatprep.mubr.f32.mxu0 0.0
        %1008 = vmatmul.mubr.f32.gmra.mxu0 %v473
        %v1009 = vpop.f32.mrf.mxu0
        %v1010 = vadd.f32 0.0, %v1009
        %v1011 = vpop.f32.mrf.mxu0
        %v1012 = vadd.f32 0.0, %v1011
        %1013 = vdwg.mxu0
        %1014 = vmatprep.subr.mxu0 0.0
        %1015 = vmatpush1.msra.mxu0 0.0
        %1016 = vmatprep.subr.mxu0 0.0
        %1017 = vmatpush1.msra.mxu0 0.0
        %1018 = vmatprep.subr.mxu0 0.0
        %1019 = vmatpush1.msra.mxu0 0.0
        %1020 = vmatprep.subr.mxu0 0.0
        %1021 = vmatpush1.msra.mxu0 0.0
        %1022 = vmatprep.subr.mxu0 0.0
        %1023 = vmatpush1.msra.mxu0 0.0
        %1024 = vmatprep.subr.mxu0 0.0
        %1025 = vmatpush1.msra.mxu0 0.0
        %1026 = vmatprep.subr.mxu0 0.0
        %1027 = vmatpush1.msra.mxu0 0.0
        %1028 = vmatprep.subr.mxu0 0.0
        %1029 = vmatpush1.msra.mxu0 0.0
        %1030 = vmatprep.subr.mxu0 0.0
        %1031 = vmatpush1.msra.mxu0 0.0
        %1032 = vmatprep.subr.mxu0 0.0
        %1033 = vmatpush1.msra.mxu0 0.0
        %1034 = vmatprep.subr.mxu0 0.0
        %1035 = vmatpush1.msra.mxu0 0.0
        %1036 = vmatprep.subr.mxu0 0.0
        %1037 = vmatpush1.msra.mxu0 0.0
        %1038 = vmatprep.subr.mxu0 0.0
        %1039 = vmatpush1.msra.mxu0 0.0
        %1040 = vmatprep.subr.mxu0 0.0
        %1041 = vmatpush1.msra.mxu0 0.0
        %1042 = vmatprep.subr.mxu0 %v385
        %1043 = vmatpush1.msra.mxu0 %v384
        %1044 = vmatprep.subr.mxu0 %v383
        %1045 = vmatpush1.msra.mxu0 %v382
        %1046 = vmatprep.subr.mxu0 0.0
        %1047 = vmatpush2.msra.mxu0 0.0
        %1048 = vmatprep.subr.mxu0 0.0
        %1049 = vmatpush2.msra.mxu0 0.0
        %1050 = vmatprep.subr.mxu0 0.0
        %1051 = vmatpush2.msra.mxu0 0.0
        %1052 = vmatprep.subr.mxu0 0.0
        %1053 = vmatpush2.msra.mxu0 0.0
        %1054 = vmatprep.subr.mxu0 0.0
        %1055 = vmatpush2.msra.mxu0 0.0
        %1056 = vmatprep.subr.mxu0 0.0
        %1057 = vmatpush2.msra.mxu0 0.0
        %1058 = vmatprep.subr.mxu0 0.0
        %1059 = vmatpush2.msra.mxu0 0.0
        %1060 = vmatprep.subr.mxu0 0.0
        %1061 = vmatpush2.msra.mxu0 0.0
        %1062 = vmatprep.subr.mxu0 0.0
        %1063 = vmatpush2.msra.mxu0 0.0
        %1064 = vmatprep.subr.mxu0 0.0
        %1065 = vmatpush2.msra.mxu0 0.0
        %1066 = vmatprep.subr.mxu0 0.0
        %1067 = vmatpush2.msra.mxu0 0.0
        %1068 = vmatprep.subr.mxu0 0.0
        %1069 = vmatpush2.msra.mxu0 0.0
        %1070 = vmatprep.subr.mxu0 0.0
        %1071 = vmatpush2.msra.mxu0 0.0
        %1072 = vmatprep.subr.mxu0 0.0
        %1073 = vmatpush2.msra.mxu0 0.0
        %1074 = vmatprep.subr.mxu0 0.0
        %1075 = vmatpush2.msra.mxu0 0.0
        %1076 = vmatprep.subr.mxu0 0.0
        %1077 = vmatpush2.msra.mxu0 0.0
        %1078 = vmatprep.mubr.f32.mxu0 0.0
        %1079 = vmatmul.mubr.f32.gmra.mxu0 %v470
        %v1080 = vpop.f32.mrf.mxu0
        %v1081 = vadd.f32 0.0, %v1080
        %v1082 = vpop.f32.mrf.mxu0
        %v1083 = vadd.f32 0.0, %v1082
        %1084 = vmatprep.mubr.f32.mxu0 0.0
        %1085 = vmatmul.mubr.f32.gmra.mxu0 %v473
        %v1086 = vpop.f32.mrf.mxu0
        %v1087 = vadd.f32 0.0, %v1086
        %v1088 = vpop.f32.mrf.mxu0
        %v1089 = vadd.f32 0.0, %v1088
        %1090 = vdwg.mxu0
        %1091 = vmatprep.subr.mxu0 0.0
        %1092 = vmatpush1.msra.mxu0 0.0
        %1093 = vmatprep.subr.mxu0 0.0
        %1094 = vmatpush1.msra.mxu0 0.0
        %1095 = vmatprep.subr.mxu0 0.0
        %1096 = vmatpush1.msra.mxu0 0.0
        %1097 = vmatprep.subr.mxu0 0.0
        %1098 = vmatpush1.msra.mxu0 0.0
        %1099 = vmatprep.subr.mxu0 0.0
        %1100 = vmatpush1.msra.mxu0 0.0
        %1101 = vmatprep.subr.mxu0 0.0
        %1102 = vmatpush1.msra.mxu0 0.0
        %1103 = vmatprep.subr.mxu0 0.0
        %1104 = vmatpush1.msra.mxu0 0.0
        %1105 = vmatprep.subr.mxu0 0.0
        %1106 = vmatpush1.msra.mxu0 0.0
        %1107 = vmatprep.subr.mxu0 0.0
        %1108 = vmatpush1.msra.mxu0 0.0
        %1109 = vmatprep.subr.mxu0 0.0
        %1110 = vmatpush1.msra.mxu0 0.0
        %1111 = vmatprep.subr.mxu0 0.0
        %1112 = vmatpush1.msra.mxu0 0.0
        %1113 = vmatprep.subr.mxu0 0.0
        %1114 = vmatpush1.msra.mxu0 0.0
        %1115 = vmatprep.subr.mxu0 0.0
        %1116 = vmatpush1.msra.mxu0 0.0
        %1117 = vmatprep.subr.mxu0 0.0
        %1118 = vmatpush1.msra.mxu0 0.0
        %1119 = vmatprep.subr.mxu0 %v389
        %1120 = vmatpush1.msra.mxu0 %v388
        %1121 = vmatprep.subr.mxu0 %v387
        %1122 = vmatpush1.msra.mxu0 %v386
        %1123 = vmatprep.subr.mxu0 0.0
        %1124 = vmatpush2.msra.mxu0 0.0
        %1125 = vmatprep.subr.mxu0 0.0
        %1126 = vmatpush2.msra.mxu0 0.0
        %1127 = vmatprep.subr.mxu0 0.0
        %1128 = vmatpush2.msra.mxu0 0.0
        %1129 = vmatprep.subr.mxu0 0.0
        %1130 = vmatpush2.msra.mxu0 0.0
        %1131 = vmatprep.subr.mxu0 0.0
        %1132 = vmatpush2.msra.mxu0 0.0
        %1133 = vmatprep.subr.mxu0 0.0
        %1134 = vmatpush2.msra.mxu0 0.0
        %1135 = vmatprep.subr.mxu0 0.0
        %1136 = vmatpush2.msra.mxu0 0.0
        %1137 = vmatprep.subr.mxu0 0.0
        %1138 = vmatpush2.msra.mxu0 0.0
        %1139 = vmatprep.subr.mxu0 0.0
        %1140 = vmatpush2.msra.mxu0 0.0
        %1141 = vmatprep.subr.mxu0 0.0
        %1142 = vmatpush2.msra.mxu0 0.0
        %1143 = vmatprep.subr.mxu0 0.0
        %1144 = vmatpush2.msra.mxu0 0.0
        %1145 = vmatprep.subr.mxu0 0.0
        %1146 = vmatpush2.msra.mxu0 0.0
        %1147 = vmatprep.subr.mxu0 0.0
        %1148 = vmatpush2.msra.mxu0 0.0
        %1149 = vmatprep.subr.mxu0 0.0
        %1150 = vmatpush2.msra.mxu0 0.0
        %1151 = vmatprep.subr.mxu0 0.0
        %1152 = vmatpush2.msra.mxu0 0.0
        %1153 = vmatprep.subr.mxu0 0.0
        %1154 = vmatpush2.msra.mxu0 0.0
        %1155 = vmatprep.mubr.f32.mxu0 0.0
        %1156 = vmatmul.mubr.f32.gmra.mxu0 %v470
        %v1157 = vpop.f32.mrf.mxu0
        %v1158 = vadd.f32 0.0, %v1157
        %v1159 = vpop.f32.mrf.mxu0
        %v1160 = vadd.f32 0.0, %v1159
        %1161 = vmatprep.mubr.f32.mxu0 0.0
        %1162 = vmatmul.mubr.f32.gmra.mxu0 %v473
        %v1163 = vpop.f32.mrf.mxu0
        %v1164 = vadd.f32 0.0, %v1163
        %v1165 = vpop.f32.mrf.mxu0
        %v1166 = vadd.f32 0.0, %v1165
        %1167 = vdwg.mxu0
        %1168 = vmatprep.subr.mxu0 0.0
        %1169 = vmatpush1.msra.mxu0 0.0
        %1170 = vmatprep.subr.mxu0 0.0
        %1171 = vmatpush1.msra.mxu0 0.0
        %1172 = vmatprep.subr.mxu0 0.0
        %1173 = vmatpush1.msra.mxu0 0.0
        %1174 = vmatprep.subr.mxu0 0.0
        %1175 = vmatpush1.msra.mxu0 0.0
        %1176 = vmatprep.subr.mxu0 0.0
        %1177 = vmatpush1.msra.mxu0 0.0
        %1178 = vmatprep.subr.mxu0 0.0
        %1179 = vmatpush1.msra.mxu0 0.0
        %1180 = vmatprep.subr.mxu0 0.0
        %1181 = vmatpush1.msra.mxu0 0.0
        %1182 = vmatprep.subr.mxu0 0.0
        %1183 = vmatpush1.msra.mxu0 0.0
        %1184 = vmatprep.subr.mxu0 0.0
        %1185 = vmatpush1.msra.mxu0 0.0
        %1186 = vmatprep.subr.mxu0 0.0
        %1187 = vmatpush1.msra.mxu0 0.0
        %1188 = vmatprep.subr.mxu0 0.0
        %1189 = vmatpush1.msra.mxu0 0.0
        %1190 = vmatprep.subr.mxu0 0.0
        %1191 = vmatpush1.msra.mxu0 0.0
        %1192 = vmatprep.subr.mxu0 0.0
        %1193 = vmatpush1.msra.mxu0 0.0
        %1194 = vmatprep.subr.mxu0 0.0
        %1195 = vmatpush1.msra.mxu0 0.0
        %1196 = vmatprep.subr.mxu0 %v393
        %1197 = vmatpush1.msra.mxu0 %v392
        %1198 = vmatprep.subr.mxu0 %v391
        %1199 = vmatpush1.msra.mxu0 %v390
        %1200 = vmatprep.subr.mxu0 0.0
        %1201 = vmatpush2.msra.mxu0 0.0
        %1202 = vmatprep.subr.mxu0 0.0
        %1203 = vmatpush2.msra.mxu0 0.0
        %1204 = vmatprep.subr.mxu0 0.0
        %1205 = vmatpush2.msra.mxu0 0.0
        %1206 = vmatprep.subr.mxu0 0.0
        %1207 = vmatpush2.msra.mxu0 0.0
        %1208 = vmatprep.subr.mxu0 0.0
        %1209 = vmatpush2.msra.mxu0 0.0
        %1210 = vmatprep.subr.mxu0 0.0
        %1211 = vmatpush2.msra.mxu0 0.0
        %1212 = vmatprep.subr.mxu0 0.0
        %1213 = vmatpush2.msra.mxu0 0.0
        %1214 = vmatprep.subr.mxu0 0.0
        %1215 = vmatpush2.msra.mxu0 0.0
        %1216 = vmatprep.subr.mxu0 0.0
        %1217 = vmatpush2.msra.mxu0 0.0
        %1218 = vmatprep.subr.mxu0 0.0
        %1219 = vmatpush2.msra.mxu0 0.0
        %1220 = vmatprep.subr.mxu0 0.0
        %1221 = vmatpush2.msra.mxu0 0.0
        %1222 = vmatprep.subr.mxu0 0.0
        %1223 = vmatpush2.msra.mxu0 0.0
        %1224 = vmatprep.subr.mxu0 0.0
        %1225 = vmatpush2.msra.mxu0 0.0
        %1226 = vmatprep.subr.mxu0 0.0
        %1227 = vmatpush2.msra.mxu0 0.0
        %1228 = vmatprep.subr.mxu0 0.0
        %1229 = vmatpush2.msra.mxu0 0.0
        %1230 = vmatprep.subr.mxu0 0.0
        %1231 = vmatpush2.msra.mxu0 0.0
        %1232 = vmatprep.mubr.f32.mxu0 0.0
        %1233 = vmatmul.mubr.f32.gmra.mxu0 %v470
        %v1234 = vpop.f32.mrf.mxu0
        %v1235 = vadd.f32 0.0, %v1234
        %v1236 = vpop.f32.mrf.mxu0
        %v1237 = vadd.f32 0.0, %v1236
        %1238 = vmatprep.mubr.f32.mxu0 0.0
        %1239 = vmatmul.mubr.f32.gmra.mxu0 %v473
        %v1240 = vpop.f32.mrf.mxu0
        %v1241 = vadd.f32 0.0, %v1240
        %v1242 = vpop.f32.mrf.mxu0
        %v1243 = vadd.f32 0.0, %v1242
        %1244 = vdwg.mxu0
        %1245 = vmatprep.subr.mxu0 0.0
        %1246 = vmatpush1.msra.mxu0 0.0
        %1247 = vmatprep.subr.mxu0 0.0
        %1248 = vmatpush1.msra.mxu0 0.0
        %1249 = vmatprep.subr.mxu0 0.0
        %1250 = vmatpush1.msra.mxu0 0.0
        %1251 = vmatprep.subr.mxu0 0.0
        %1252 = vmatpush1.msra.mxu0 0.0
        %1253 = vmatprep.subr.mxu0 0.0
        %1254 = vmatpush1.msra.mxu0 0.0
        %1255 = vmatprep.subr.mxu0 0.0
        %1256 = vmatpush1.msra.mxu0 0.0
        %1257 = vmatprep.subr.mxu0 0.0
        %1258 = vmatpush1.msra.mxu0 0.0
        %1259 = vmatprep.subr.mxu0 0.0
        %1260 = vmatpush1.msra.mxu0 0.0
        %1261 = vmatprep.subr.mxu0 0.0
        %1262 = vmatpush1.msra.mxu0 0.0
        %1263 = vmatprep.subr.mxu0 0.0
        %1264 = vmatpush1.msra.mxu0 0.0
        %1265 = vmatprep.subr.mxu0 0.0
        %1266 = vmatpush1.msra.mxu0 0.0
        %1267 = vmatprep.subr.mxu0 0.0
        %1268 = vmatpush1.msra.mxu0 0.0
        %1269 = vmatprep.subr.mxu0 0.0
        %1270 = vmatpush1.msra.mxu0 0.0
        %1271 = vmatprep.subr.mxu0 0.0
        %1272 = vmatpush1.msra.mxu0 0.0
        %1273 = vmatprep.subr.mxu0 %v397
        %1274 = vmatpush1.msra.mxu0 %v396
        %1275 = vmatprep.subr.mxu0 %v395
        %1276 = vmatpush1.msra.mxu0 %v394
        %1277 = vmatprep.subr.mxu0 0.0
        %1278 = vmatpush2.msra.mxu0 0.0
        %1279 = vmatprep.subr.mxu0 0.0
        %1280 = vmatpush2.msra.mxu0 0.0
        %1281 = vmatprep.subr.mxu0 0.0
        %1282 = vmatpush2.msra.mxu0 0.0
        %1283 = vmatprep.subr.mxu0 0.0
        %1284 = vmatpush2.msra.mxu0 0.0
        %1285 = vmatprep.subr.mxu0 0.0
        %1286 = vmatpush2.msra.mxu0 0.0
        %1287 = vmatprep.subr.mxu0 0.0
        %1288 = vmatpush2.msra.mxu0 0.0
        %1289 = vmatprep.subr.mxu0 0.0
        %1290 = vmatpush2.msra.mxu0 0.0
        %1291 = vmatprep.subr.mxu0 0.0
        %1292 = vmatpush2.msra.mxu0 0.0
        %1293 = vmatprep.subr.mxu0 0.0
        %1294 = vmatpush2.msra.mxu0 0.0
        %1295 = vmatprep.subr.mxu0 0.0
        %1296 = vmatpush2.msra.mxu0 0.0
        %1297 = vmatprep.subr.mxu0 0.0
        %1298 = vmatpush2.msra.mxu0 0.0
        %1299 = vmatprep.subr.mxu0 0.0
        %1300 = vmatpush2.msra.mxu0 0.0
        %1301 = vmatprep.subr.mxu0 0.0
        %1302 = vmatpush2.msra.mxu0 0.0
        %1303 = vmatprep.subr.mxu0 0.0
        %1304 = vmatpush2.msra.mxu0 0.0
        %1305 = vmatprep.subr.mxu0 0.0
        %1306 = vmatpush2.msra.mxu0 0.0
        %1307 = vmatprep.subr.mxu0 0.0
        %1308 = vmatpush2.msra.mxu0 0.0
        %1309 = vmatprep.mubr.f32.mxu0 0.0
        %1310 = vmatmul.mubr.f32.gmra.mxu0 %v470
        %v1311 = vpop.f32.mrf.mxu0
        %v1312 = vadd.f32 0.0, %v1311
        %v1313 = vpop.f32.mrf.mxu0
        %v1314 = vadd.f32 0.0, %v1313
        %1315 = vmatprep.mubr.f32.mxu0 0.0
        %1316 = vmatmul.mubr.f32.gmra.mxu0 %v473
        %v1317 = vpop.f32.mrf.mxu0
        %v1318 = vadd.f32 0.0, %v1317
        %v1319 = vpop.f32.mrf.mxu0
        %v1320 = vadd.f32 0.0, %v1319
        %1321 = vdwg.mxu0
        %1322 = vmatprep.subr.mxu0 0.0
        %1323 = vmatpush1.msra.mxu0 0.0
        %1324 = vmatprep.subr.mxu0 0.0
        %1325 = vmatpush1.msra.mxu0 0.0
        %1326 = vmatprep.subr.mxu0 0.0
        %1327 = vmatpush1.msra.mxu0 0.0
        %1328 = vmatprep.subr.mxu0 0.0
        %1329 = vmatpush1.msra.mxu0 0.0
        %1330 = vmatprep.subr.mxu0 0.0
        %1331 = vmatpush1.msra.mxu0 0.0
        %1332 = vmatprep.subr.mxu0 0.0
        %1333 = vmatpush1.msra.mxu0 0.0
        %1334 = vmatprep.subr.mxu0 0.0
        %1335 = vmatpush1.msra.mxu0 0.0
        %1336 = vmatprep.subr.mxu0 0.0
        %1337 = vmatpush1.msra.mxu0 0.0
        %1338 = vmatprep.subr.mxu0 0.0
        %1339 = vmatpush1.msra.mxu0 0.0
        %1340 = vmatprep.subr.mxu0 0.0
        %1341 = vmatpush1.msra.mxu0 0.0
        %1342 = vmatprep.subr.mxu0 0.0
        %1343 = vmatpush1.msra.mxu0 0.0
        %1344 = vmatprep.subr.mxu0 0.0
        %1345 = vmatpush1.msra.mxu0 0.0
        %1346 = vmatprep.subr.mxu0 0.0
        %1347 = vmatpush1.msra.mxu0 0.0
        %1348 = vmatprep.subr.mxu0 0.0
        %1349 = vmatpush1.msra.mxu0 0.0
        %1350 = vmatprep.subr.mxu0 %v401
        %1351 = vmatpush1.msra.mxu0 %v400
        %1352 = vmatprep.subr.mxu0 %v399
        %1353 = vmatpush1.msra.mxu0 %v398
        %1354 = vmatprep.subr.mxu0 0.0
        %1355 = vmatpush2.msra.mxu0 0.0
        %1356 = vmatprep.subr.mxu0 0.0
        %1357 = vmatpush2.msra.mxu0 0.0
        %1358 = vmatprep.subr.mxu0 0.0
        %1359 = vmatpush2.msra.mxu0 0.0
        %1360 = vmatprep.subr.mxu0 0.0
        %1361 = vmatpush2.msra.mxu0 0.0
        %1362 = vmatprep.subr.mxu0 0.0
        %1363 = vmatpush2.msra.mxu0 0.0
        %1364 = vmatprep.subr.mxu0 0.0
        %1365 = vmatpush2.msra.mxu0 0.0
        %1366 = vmatprep.subr.mxu0 0.0
        %1367 = vmatpush2.msra.mxu0 0.0
        %1368 = vmatprep.subr.mxu0 0.0
        %1369 = vmatpush2.msra.mxu0 0.0
        %1370 = vmatprep.subr.mxu0 0.0
        %1371 = vmatpush2.msra.mxu0 0.0
        %1372 = vmatprep.subr.mxu0 0.0
        %1373 = vmatpush2.msra.mxu0 0.0
        %1374 = vmatprep.subr.mxu0 0.0
        %1375 = vmatpush2.msra.mxu0 0.0
        %1376 = vmatprep.subr.mxu0 0.0
        %1377 = vmatpush2.msra.mxu0 0.0
        %1378 = vmatprep.subr.mxu0 0.0
        %1379 = vmatpush2.msra.mxu0 0.0
        %1380 = vmatprep.subr.mxu0 0.0
        %1381 = vmatpush2.msra.mxu0 0.0
        %1382 = vmatprep.subr.mxu0 0.0
        %1383 = vmatpush2.msra.mxu0 0.0
        %1384 = vmatprep.subr.mxu0 0.0
        %1385 = vmatpush2.msra.mxu0 0.0
        %1386 = vmatprep.mubr.f32.mxu0 0.0
        %1387 = vmatmul.mubr.f32.gmra.mxu0 %v470
        %v1388 = vpop.f32.mrf.mxu0
        %v1389 = vadd.f32 0.0, %v1388
        %v1390 = vpop.f32.mrf.mxu0
        %v1391 = vadd.f32 0.0, %v1390
        %1392 = vmatprep.mubr.f32.mxu0 0.0
        %1393 = vmatmul.mubr.f32.gmra.mxu0 %v473
        %v1394 = vpop.f32.mrf.mxu0
        %v1395 = vadd.f32 0.0, %v1394
        %v1396 = vpop.f32.mrf.mxu0
        %v1397 = vadd.f32 0.0, %v1396
        %1398 = vdwg.mxu0
        %1399 = vmatprep.subr.mxu0 0.0
        %1400 = vmatpush1.msra.mxu0 0.0
        %1401 = vmatprep.subr.mxu0 0.0
        %1402 = vmatpush1.msra.mxu0 0.0
        %1403 = vmatprep.subr.mxu0 0.0
        %1404 = vmatpush1.msra.mxu0 0.0
        %1405 = vmatprep.subr.mxu0 0.0
        %1406 = vmatpush1.msra.mxu0 0.0
        %1407 = vmatprep.subr.mxu0 0.0
        %1408 = vmatpush1.msra.mxu0 0.0
        %1409 = vmatprep.subr.mxu0 0.0
        %1410 = vmatpush1.msra.mxu0 0.0
        %1411 = vmatprep.subr.mxu0 0.0
        %1412 = vmatpush1.msra.mxu0 0.0
        %1413 = vmatprep.subr.mxu0 0.0
        %1414 = vmatpush1.msra.mxu0 0.0
        %1415 = vmatprep.subr.mxu0 0.0
        %1416 = vmatpush1.msra.mxu0 0.0
        %1417 = vmatprep.subr.mxu0 0.0
        %1418 = vmatpush1.msra.mxu0 0.0
        %1419 = vmatprep.subr.mxu0 0.0
        %1420 = vmatpush1.msra.mxu0 0.0
        %1421 = vmatprep.subr.mxu0 0.0
        %1422 = vmatpush1.msra.mxu0 0.0
        %1423 = vmatprep.subr.mxu0 0.0
        %1424 = vmatpush1.msra.mxu0 0.0
        %1425 = vmatprep.subr.mxu0 0.0
        %1426 = vmatpush1.msra.mxu0 0.0
        %1427 = vmatprep.subr.mxu0 %v405
        %1428 = vmatpush1.msra.mxu0 %v404
        %1429 = vmatprep.subr.mxu0 %v403
        %1430 = vmatpush1.msra.mxu0 %v402
        %1431 = vmatprep.subr.mxu0 0.0
        %1432 = vmatpush2.msra.mxu0 0.0
        %1433 = vmatprep.subr.mxu0 0.0
        %1434 = vmatpush2.msra.mxu0 0.0
        %1435 = vmatprep.subr.mxu0 0.0
        %1436 = vmatpush2.msra.mxu0 0.0
        %1437 = vmatprep.subr.mxu0 0.0
        %1438 = vmatpush2.msra.mxu0 0.0
        %1439 = vmatprep.subr.mxu0 0.0
        %1440 = vmatpush2.msra.mxu0 0.0
        %1441 = vmatprep.subr.mxu0 0.0
        %1442 = vmatpush2.msra.mxu0 0.0
        %1443 = vmatprep.subr.mxu0 0.0
        %1444 = vmatpush2.msra.mxu0 0.0
        %1445 = vmatprep.subr.mxu0 0.0
        %1446 = vmatpush2.msra.mxu0 0.0
        %1447 = vmatprep.subr.mxu0 0.0
        %1448 = vmatpush2.msra.mxu0 0.0
        %1449 = vmatprep.subr.mxu0 0.0
        %1450 = vmatpush2.msra.mxu0 0.0
        %1451 = vmatprep.subr.mxu0 0.0
        %1452 = vmatpush2.msra.mxu0 0.0
        %1453 = vmatprep.subr.mxu0 0.0
        %1454 = vmatpush2.msra.mxu0 0.0
        %1455 = vmatprep.subr.mxu0 0.0
        %1456 = vmatpush2.msra.mxu0 0.0
        %1457 = vmatprep.subr.mxu0 0.0
        %1458 = vmatpush2.msra.mxu0 0.0
        %1459 = vmatprep.subr.mxu0 0.0
        %1460 = vmatpush2.msra.mxu0 0.0
        %1461 = vmatprep.subr.mxu0 0.0
        %1462 = vmatpush2.msra.mxu0 0.0
        %1463 = vmatprep.mubr.f32.mxu0 0.0
        %1464 = vmatmul.mubr.f32.gmra.mxu0 %v470
        %v1465 = vpop.f32.mrf.mxu0
        %v1466 = vadd.f32 0.0, %v1465
        %v1467 = vpop.f32.mrf.mxu0
        %v1468 = vadd.f32 0.0, %v1467
        %1469 = vmatprep.mubr.f32.mxu0 0.0
        %1470 = vmatmul.mubr.f32.gmra.mxu0 %v473
        %v1471 = vpop.f32.mrf.mxu0
        %v1472 = vadd.f32 0.0, %v1471
        %v1473 = vpop.f32.mrf.mxu0
        %v1474 = vadd.f32 0.0, %v1473
        %1475 = vdwg.mxu0
        %1476 = vmatprep.subr.mxu0 0.0
        %1477 = vmatpush1.msra.mxu0 0.0
        %1478 = vmatprep.subr.mxu0 0.0
        %1479 = vmatpush1.msra.mxu0 0.0
        %1480 = vmatprep.subr.mxu0 0.0
        %1481 = vmatpush1.msra.mxu0 0.0
        %1482 = vmatprep.subr.mxu0 0.0
        %1483 = vmatpush1.msra.mxu0 0.0
        %1484 = vmatprep.subr.mxu0 0.0
        %1485 = vmatpush1.msra.mxu0 0.0
        %1486 = vmatprep.subr.mxu0 0.0
        %1487 = vmatpush1.msra.mxu0 0.0
        %1488 = vmatprep.subr.mxu0 0.0
        %1489 = vmatpush1.msra.mxu0 0.0
        %1490 = vmatprep.subr.mxu0 0.0
        %1491 = vmatpush1.msra.mxu0 0.0
        %1492 = vmatprep.subr.mxu0 0.0
        %1493 = vmatpush1.msra.mxu0 0.0
        %1494 = vmatprep.subr.mxu0 0.0
        %1495 = vmatpush1.msra.mxu0 0.0
        %1496 = vmatprep.subr.mxu0 0.0
        %1497 = vmatpush1.msra.mxu0 0.0
        %1498 = vmatprep.subr.mxu0 0.0
        %1499 = vmatpush1.msra.mxu0 0.0
        %1500 = vmatprep.subr.mxu0 0.0
        %1501 = vmatpush1.msra.mxu0 0.0
        %1502 = vmatprep.subr.mxu0 0.0
        %1503 = vmatpush1.msra.mxu0 0.0
        %1504 = vmatprep.subr.mxu0 %v409
        %1505 = vmatpush1.msra.mxu0 %v408
        %1506 = vmatprep.subr.mxu0 %v407
        %1507 = vmatpush1.msra.mxu0 %v406
        %1508 = vmatprep.subr.mxu0 0.0
        %1509 = vmatpush2.msra.mxu0 0.0
        %1510 = vmatprep.subr.mxu0 0.0
        %1511 = vmatpush2.msra.mxu0 0.0
        %1512 = vmatprep.subr.mxu0 0.0
        %1513 = vmatpush2.msra.mxu0 0.0
        %1514 = vmatprep.subr.mxu0 0.0
        %1515 = vmatpush2.msra.mxu0 0.0
        %1516 = vmatprep.subr.mxu0 0.0
        %1517 = vmatpush2.msra.mxu0 0.0
        %1518 = vmatprep.subr.mxu0 0.0
        %1519 = vmatpush2.msra.mxu0 0.0
        %1520 = vmatprep.subr.mxu0 0.0
        %1521 = vmatpush2.msra.mxu0 0.0
        %1522 = vmatprep.subr.mxu0 0.0
        %1523 = vmatpush2.msra.mxu0 0.0
        %1524 = vmatprep.subr.mxu0 0.0
        %1525 = vmatpush2.msra.mxu0 0.0
        %1526 = vmatprep.subr.mxu0 0.0
        %1527 = vmatpush2.msra.mxu0 0.0
        %1528 = vmatprep.subr.mxu0 0.0
        %1529 = vmatpush2.msra.mxu0 0.0
        %1530 = vmatprep.subr.mxu0 0.0
        %1531 = vmatpush2.msra.mxu0 0.0
        %1532 = vmatprep.subr.mxu0 0.0
        %1533 = vmatpush2.msra.mxu0 0.0
        %1534 = vmatprep.subr.mxu0 0.0
        %1535 = vmatpush2.msra.mxu0 0.0
        %1536 = vmatprep.subr.mxu0 0.0
        %1537 = vmatpush2.msra.mxu0 0.0
        %1538 = vmatprep.subr.mxu0 0.0
        %1539 = vmatpush2.msra.mxu0 0.0
        %1540 = vmatprep.mubr.f32.mxu0 0.0
        %1541 = vmatmul.mubr.f32.gmra.mxu0 %v470
        %v1542 = vpop.f32.mrf.mxu0
        %v1543 = vadd.f32 0.0, %v1542
        %v1544 = vpop.f32.mrf.mxu0
        %v1545 = vadd.f32 0.0, %v1544
        %1546 = vmatprep.mubr.f32.mxu0 0.0
        %1547 = vmatmul.mubr.f32.gmra.mxu0 %v473
        %v1548 = vpop.f32.mrf.mxu0
        %v1549 = vadd.f32 0.0, %v1548
        %v1550 = vpop.f32.mrf.mxu0
        %v1551 = vadd.f32 0.0, %v1550
        %1552 = vdwg.mxu0
        %1553 = vmatprep.subr.mxu0 0.0
        %1554 = vmatpush1.msra.mxu0 0.0
        %1555 = vmatprep.subr.mxu0 0.0
        %1556 = vmatpush1.msra.mxu0 0.0
        %1557 = vmatprep.subr.mxu0 0.0
        %1558 = vmatpush1.msra.mxu0 0.0
        %1559 = vmatprep.subr.mxu0 0.0
        %1560 = vmatpush1.msra.mxu0 0.0
        %1561 = vmatprep.subr.mxu0 0.0
        %1562 = vmatpush1.msra.mxu0 0.0
        %1563 = vmatprep.subr.mxu0 0.0
        %1564 = vmatpush1.msra.mxu0 0.0
        %1565 = vmatprep.subr.mxu0 0.0
        %1566 = vmatpush1.msra.mxu0 0.0
        %1567 = vmatprep.subr.mxu0 0.0
        %1568 = vmatpush1.msra.mxu0 0.0
        %1569 = vmatprep.subr.mxu0 0.0
        %1570 = vmatpush1.msra.mxu0 0.0
        %1571 = vmatprep.subr.mxu0 0.0
        %1572 = vmatpush1.msra.mxu0 0.0
        %1573 = vmatprep.subr.mxu0 0.0
        %1574 = vmatpush1.msra.mxu0 0.0
        %1575 = vmatprep.subr.mxu0 0.0
        %1576 = vmatpush1.msra.mxu0 0.0
        %1577 = vmatprep.subr.mxu0 0.0
        %1578 = vmatpush1.msra.mxu0 0.0
        %1579 = vmatprep.subr.mxu0 0.0
        %1580 = vmatpush1.msra.mxu0 0.0
        %1581 = vmatprep.subr.mxu0 %v413
        %1582 = vmatpush1.msra.mxu0 %v412
        %1583 = vmatprep.subr.mxu0 %v411
        %1584 = vmatpush1.msra.mxu0 %v410
        %1585 = vmatprep.subr.mxu0 0.0
        %1586 = vmatpush2.msra.mxu0 0.0
        %1587 = vmatprep.subr.mxu0 0.0
        %1588 = vmatpush2.msra.mxu0 0.0
        %1589 = vmatprep.subr.mxu0 0.0
        %1590 = vmatpush2.msra.mxu0 0.0
        %1591 = vmatprep.subr.mxu0 0.0
        %1592 = vmatpush2.msra.mxu0 0.0
        %1593 = vmatprep.subr.mxu0 0.0
        %1594 = vmatpush2.msra.mxu0 0.0
        %1595 = vmatprep.subr.mxu0 0.0
        %1596 = vmatpush2.msra.mxu0 0.0
        %1597 = vmatprep.subr.mxu0 0.0
        %1598 = vmatpush2.msra.mxu0 0.0
        %1599 = vmatprep.subr.mxu0 0.0
        %1600 = vmatpush2.msra.mxu0 0.0
        %1601 = vmatprep.subr.mxu0 0.0
        %1602 = vmatpush2.msra.mxu0 0.0
        %1603 = vmatprep.subr.mxu0 0.0
        %1604 = vmatpush2.msra.mxu0 0.0
        %1605 = vmatprep.subr.mxu0 0.0
        %1606 = vmatpush2.msra.mxu0 0.0
        %1607 = vmatprep.subr.mxu0 0.0
        %1608 = vmatpush2.msra.mxu0 0.0
        %1609 = vmatprep.subr.mxu0 0.0
        %1610 = vmatpush2.msra.mxu0 0.0
        %1611 = vmatprep.subr.mxu0 0.0
        %1612 = vmatpush2.msra.mxu0 0.0
        %1613 = vmatprep.subr.mxu0 0.0
        %1614 = vmatpush2.msra.mxu0 0.0
        %1615 = vmatprep.subr.mxu0 0.0
        %1616 = vmatpush2.msra.mxu0 0.0
        %1617 = vmatprep.mubr.f32.mxu0 0.0
        %1618 = vmatmul.mubr.f32.gmra.mxu0 %v470
        %v1619 = vpop.f32.mrf.mxu0
        %v1620 = vadd.f32 0.0, %v1619
        %v1621 = vpop.f32.mrf.mxu0
        %v1622 = vadd.f32 0.0, %v1621
        %1623 = vmatprep.mubr.f32.mxu0 0.0
        %1624 = vmatmul.mubr.f32.gmra.mxu0 %v473
        %v1625 = vpop.f32.mrf.mxu0
        %v1626 = vadd.f32 0.0, %v1625
        %v1627 = vpop.f32.mrf.mxu0
        %v1628 = vadd.f32 0.0, %v1627
        %1629 = vdwg.mxu0
        %1630 = vmatprep.subr.mxu0 0.0
        %1631 = vmatpush1.msra.mxu0 0.0
        %1632 = vmatprep.subr.mxu0 0.0
        %1633 = vmatpush1.msra.mxu0 0.0
        %1634 = vmatprep.subr.mxu0 0.0
        %1635 = vmatpush1.msra.mxu0 0.0
        %1636 = vmatprep.subr.mxu0 0.0
        %1637 = vmatpush1.msra.mxu0 0.0
        %1638 = vmatprep.subr.mxu0 0.0
        %1639 = vmatpush1.msra.mxu0 0.0
        %1640 = vmatprep.subr.mxu0 0.0
        %1641 = vmatpush1.msra.mxu0 0.0
        %1642 = vmatprep.subr.mxu0 0.0
        %1643 = vmatpush1.msra.mxu0 0.0
        %1644 = vmatprep.subr.mxu0 0.0
        %1645 = vmatpush1.msra.mxu0 0.0
        %1646 = vmatprep.subr.mxu0 0.0
        %1647 = vmatpush1.msra.mxu0 0.0
        %1648 = vmatprep.subr.mxu0 0.0
        %1649 = vmatpush1.msra.mxu0 0.0
        %1650 = vmatprep.subr.mxu0 0.0
        %1651 = vmatpush1.msra.mxu0 0.0
        %1652 = vmatprep.subr.mxu0 0.0
        %1653 = vmatpush1.msra.mxu0 0.0
        %1654 = vmatprep.subr.mxu0 0.0
        %1655 = vmatpush1.msra.mxu0 0.0
        %1656 = vmatprep.subr.mxu0 0.0
        %1657 = vmatpush1.msra.mxu0 0.0
        %1658 = vmatprep.subr.mxu0 %v417
        %1659 = vmatpush1.msra.mxu0 %v416
        %1660 = vmatprep.subr.mxu0 %v415
        %1661 = vmatpush1.msra.mxu0 %v414
        %1662 = vmatprep.subr.mxu0 0.0
        %1663 = vmatpush2.msra.mxu0 0.0
        %1664 = vmatprep.subr.mxu0 0.0
        %1665 = vmatpush2.msra.mxu0 0.0
        %1666 = vmatprep.subr.mxu0 0.0
        %1667 = vmatpush2.msra.mxu0 0.0
        %1668 = vmatprep.subr.mxu0 0.0
        %1669 = vmatpush2.msra.mxu0 0.0
        %1670 = vmatprep.subr.mxu0 0.0
        %1671 = vmatpush2.msra.mxu0 0.0
        %1672 = vmatprep.subr.mxu0 0.0
        %1673 = vmatpush2.msra.mxu0 0.0
        %1674 = vmatprep.subr.mxu0 0.0
        %1675 = vmatpush2.msra.mxu0 0.0
        %1676 = vmatprep.subr.mxu0 0.0
        %1677 = vmatpush2.msra.mxu0 0.0
        %1678 = vmatprep.subr.mxu0 0.0
        %1679 = vmatpush2.msra.mxu0 0.0
        %1680 = vmatprep.subr.mxu0 0.0
        %1681 = vmatpush2.msra.mxu0 0.0
        %1682 = vmatprep.subr.mxu0 0.0
        %1683 = vmatpush2.msra.mxu0 0.0
        %1684 = vmatprep.subr.mxu0 0.0
        %1685 = vmatpush2.msra.mxu0 0.0
        %1686 = vmatprep.subr.mxu0 0.0
        %1687 = vmatpush2.msra.mxu0 0.0
        %1688 = vmatprep.subr.mxu0 0.0
        %1689 = vmatpush2.msra.mxu0 0.0
        %1690 = vmatprep.subr.mxu0 0.0
        %1691 = vmatpush2.msra.mxu0 0.0
        %1692 = vmatprep.subr.mxu0 0.0
        %1693 = vmatpush2.msra.mxu0 0.0
        %1694 = vmatprep.mubr.f32.mxu0 0.0
        %1695 = vmatmul.mubr.f32.gmra.mxu0 %v470
        %v1696 = vpop.f32.mrf.mxu0
        %v1697 = vadd.f32 0.0, %v1696
        %v1698 = vpop.f32.mrf.mxu0
        %v1699 = vadd.f32 0.0, %v1698
        %1700 = vmatprep.mubr.f32.mxu0 0.0
        %1701 = vmatmul.mubr.f32.gmra.mxu0 %v473
        %v1702 = vpop.f32.mrf.mxu0
        %v1703 = vadd.f32 0.0, %v1702
        %v1704 = vpop.f32.mrf.mxu0
        %v1705 = vadd.f32 0.0, %v1704
        %1706 = vdwg.mxu0
        %1707 = vmatprep.subr.mxu0 0.0
        %1708 = vmatpush1.msra.mxu0 0.0
        %1709 = vmatprep.subr.mxu0 0.0
        %1710 = vmatpush1.msra.mxu0 0.0
        %1711 = vmatprep.subr.mxu0 0.0
        %1712 = vmatpush1.msra.mxu0 0.0
        %1713 = vmatprep.subr.mxu0 0.0
        %1714 = vmatpush1.msra.mxu0 0.0
        %1715 = vmatprep.subr.mxu0 0.0
        %1716 = vmatpush1.msra.mxu0 0.0
        %1717 = vmatprep.subr.mxu0 0.0
        %1718 = vmatpush1.msra.mxu0 0.0
        %1719 = vmatprep.subr.mxu0 0.0
        %1720 = vmatpush1.msra.mxu0 0.0
        %1721 = vmatprep.subr.mxu0 0.0
        %1722 = vmatpush1.msra.mxu0 0.0
        %1723 = vmatprep.subr.mxu0 0.0
        %1724 = vmatpush1.msra.mxu0 0.0
        %1725 = vmatprep.subr.mxu0 0.0
        %1726 = vmatpush1.msra.mxu0 0.0
        %1727 = vmatprep.subr.mxu0 0.0
        %1728 = vmatpush1.msra.mxu0 0.0
        %1729 = vmatprep.subr.mxu0 0.0
        %1730 = vmatpush1.msra.mxu0 0.0
        %1731 = vmatprep.subr.mxu0 0.0
        %1732 = vmatpush1.msra.mxu0 0.0
        %1733 = vmatprep.subr.mxu0 0.0
        %1734 = vmatpush1.msra.mxu0 0.0
        %1735 = vmatprep.subr.mxu0 %v421
        %1736 = vmatpush1.msra.mxu0 %v420
        %1737 = vmatprep.subr.mxu0 %v419
        %1738 = vmatpush1.msra.mxu0 %v418
        %1739 = vmatprep.subr.mxu0 0.0
        %1740 = vmatpush2.msra.mxu0 0.0
        %1741 = vmatprep.subr.mxu0 0.0
        %1742 = vmatpush2.msra.mxu0 0.0
        %1743 = vmatprep.subr.mxu0 0.0
        %1744 = vmatpush2.msra.mxu0 0.0
        %1745 = vmatprep.subr.mxu0 0.0
        %1746 = vmatpush2.msra.mxu0 0.0
        %1747 = vmatprep.subr.mxu0 0.0
        %1748 = vmatpush2.msra.mxu0 0.0
        %1749 = vmatprep.subr.mxu0 0.0
        %1750 = vmatpush2.msra.mxu0 0.0
        %1751 = vmatprep.subr.mxu0 0.0
        %1752 = vmatpush2.msra.mxu0 0.0
        %1753 = vmatprep.subr.mxu0 0.0
        %1754 = vmatpush2.msra.mxu0 0.0
        %1755 = vmatprep.subr.mxu0 0.0
        %1756 = vmatpush2.msra.mxu0 0.0
        %1757 = vmatprep.subr.mxu0 0.0
        %1758 = vmatpush2.msra.mxu0 0.0
        %1759 = vmatprep.subr.mxu0 0.0
        %1760 = vmatpush2.msra.mxu0 0.0
        %1761 = vmatprep.subr.mxu0 0.0
        %1762 = vmatpush2.msra.mxu0 0.0
        %1763 = vmatprep.subr.mxu0 0.0
        %1764 = vmatpush2.msra.mxu0 0.0
        %1765 = vmatprep.subr.mxu0 0.0
        %1766 = vmatpush2.msra.mxu0 0.0
        %1767 = vmatprep.subr.mxu0 0.0
        %1768 = vmatpush2.msra.mxu0 0.0
        %1769 = vmatprep.subr.mxu0 0.0
        %1770 = vmatpush2.msra.mxu0 0.0
        %1771 = vmatprep.mubr.f32.mxu0 0.0
        %1772 = vmatmul.mubr.f32.gmra.mxu0 %v470
        %v1773 = vpop.f32.mrf.mxu0
        %v1774 = vadd.f32 0.0, %v1773
        %v1775 = vpop.f32.mrf.mxu0
        %v1776 = vadd.f32 0.0, %v1775
        %1777 = vmatprep.mubr.f32.mxu0 0.0
        %1778 = vmatmul.mubr.f32.gmra.mxu0 %v473
        %v1779 = vpop.f32.mrf.mxu0
        %v1780 = vadd.f32 0.0, %v1779
        %v1781 = vpop.f32.mrf.mxu0
        %v1782 = vadd.f32 0.0, %v1781
        %1783 = vdwg.mxu0
        %1784 = vmatprep.subr.mxu0 0.0
        %1785 = vmatpush1.msra.mxu0 0.0
        %1786 = vmatprep.subr.mxu0 0.0
        %1787 = vmatpush1.msra.mxu0 0.0
        %1788 = vmatprep.subr.mxu0 0.0
        %1789 = vmatpush1.msra.mxu0 0.0
        %1790 = vmatprep.subr.mxu0 0.0
        %1791 = vmatpush1.msra.mxu0 0.0
        %1792 = vmatprep.subr.mxu0 0.0
        %1793 = vmatpush1.msra.mxu0 0.0
        %1794 = vmatprep.subr.mxu0 0.0
        %1795 = vmatpush1.msra.mxu0 0.0
        %1796 = vmatprep.subr.mxu0 0.0
        %1797 = vmatpush1.msra.mxu0 0.0
        %1798 = vmatprep.subr.mxu0 0.0
        %1799 = vmatpush1.msra.mxu0 0.0
        %1800 = vmatprep.subr.mxu0 0.0
        %1801 = vmatpush1.msra.mxu0 0.0
        %1802 = vmatprep.subr.mxu0 0.0
        %1803 = vmatpush1.msra.mxu0 0.0
        %1804 = vmatprep.subr.mxu0 0.0
        %1805 = vmatpush1.msra.mxu0 0.0
        %1806 = vmatprep.subr.mxu0 0.0
        %1807 = vmatpush1.msra.mxu0 0.0
        %1808 = vmatprep.subr.mxu0 0.0
        %1809 = vmatpush1.msra.mxu0 0.0
        %1810 = vmatprep.subr.mxu0 0.0
        %1811 = vmatpush1.msra.mxu0 0.0
        %1812 = vmatprep.subr.mxu0 %v425
        %1813 = vmatpush1.msra.mxu0 %v424
        %1814 = vmatprep.subr.mxu0 %v423
        %1815 = vmatpush1.msra.mxu0 %v422
        %1816 = vmatprep.subr.mxu0 0.0
        %1817 = vmatpush2.msra.mxu0 0.0
        %1818 = vmatprep.subr.mxu0 0.0
        %1819 = vmatpush2.msra.mxu0 0.0
        %1820 = vmatprep.subr.mxu0 0.0
        %1821 = vmatpush2.msra.mxu0 0.0
        %1822 = vmatprep.subr.mxu0 0.0
        %1823 = vmatpush2.msra.mxu0 0.0
        %1824 = vmatprep.subr.mxu0 0.0
        %1825 = vmatpush2.msra.mxu0 0.0
        %1826 = vmatprep.subr.mxu0 0.0
        %1827 = vmatpush2.msra.mxu0 0.0
        %1828 = vmatprep.subr.mxu0 0.0
        %1829 = vmatpush2.msra.mxu0 0.0
        %1830 = vmatprep.subr.mxu0 0.0
        %1831 = vmatpush2.msra.mxu0 0.0
        %1832 = vmatprep.subr.mxu0 0.0
        %1833 = vmatpush2.msra.mxu0 0.0
        %1834 = vmatprep.subr.mxu0 0.0
        %1835 = vmatpush2.msra.mxu0 0.0
        %1836 = vmatprep.subr.mxu0 0.0
        %1837 = vmatpush2.msra.mxu0 0.0
        %1838 = vmatprep.subr.mxu0 0.0
        %1839 = vmatpush2.msra.mxu0 0.0
        %1840 = vmatprep.subr.mxu0 0.0
        %1841 = vmatpush2.msra.mxu0 0.0
        %1842 = vmatprep.subr.mxu0 0.0
        %1843 = vmatpush2.msra.mxu0 0.0
        %1844 = vmatprep.subr.mxu0 0.0
        %1845 = vmatpush2.msra.mxu0 0.0
        %1846 = vmatprep.subr.mxu0 0.0
        %1847 = vmatpush2.msra.mxu0 0.0
        %1848 = vmatprep.mubr.f32.mxu0 0.0
        %1849 = vmatmul.mubr.f32.gmra.mxu0 %v470
        %v1850 = vpop.f32.mrf.mxu0
        %v1851 = vadd.f32 0.0, %v1850
        %v1852 = vpop.f32.mrf.mxu0
        %v1853 = vadd.f32 0.0, %v1852
        %1854 = vmatprep.mubr.f32.mxu0 0.0
        %1855 = vmatmul.mubr.f32.gmra.mxu0 %v473
        %v1856 = vpop.f32.mrf.mxu0
        %v1857 = vadd.f32 0.0, %v1856
        %v1858 = vpop.f32.mrf.mxu0
        %v1859 = vadd.f32 0.0, %v1858
        %1860 = vdwg.mxu0
        %1861 = vmatprep.subr.mxu0 0.0
        %1862 = vmatpush1.msra.mxu0 0.0
        %1863 = vmatprep.subr.mxu0 0.0
        %1864 = vmatpush1.msra.mxu0 0.0
        %1865 = vmatprep.subr.mxu0 0.0
        %1866 = vmatpush1.msra.mxu0 0.0
        %1867 = vmatprep.subr.mxu0 0.0
        %1868 = vmatpush1.msra.mxu0 0.0
        %1869 = vmatprep.subr.mxu0 0.0
        %1870 = vmatpush1.msra.mxu0 0.0
        %1871 = vmatprep.subr.mxu0 0.0
        %1872 = vmatpush1.msra.mxu0 0.0
        %1873 = vmatprep.subr.mxu0 0.0
        %1874 = vmatpush1.msra.mxu0 0.0
        %1875 = vmatprep.subr.mxu0 0.0
        %1876 = vmatpush1.msra.mxu0 0.0
        %1877 = vmatprep.subr.mxu0 0.0
        %1878 = vmatpush1.msra.mxu0 0.0
        %1879 = vmatprep.subr.mxu0 0.0
        %1880 = vmatpush1.msra.mxu0 0.0
        %1881 = vmatprep.subr.mxu0 0.0
        %1882 = vmatpush1.msra.mxu0 0.0
        %1883 = vmatprep.subr.mxu0 0.0
        %1884 = vmatpush1.msra.mxu0 0.0
        %1885 = vmatprep.subr.mxu0 0.0
        %1886 = vmatpush1.msra.mxu0 0.0
        %1887 = vmatprep.subr.mxu0 0.0
        %1888 = vmatpush1.msra.mxu0 0.0
        %1889 = vmatprep.subr.mxu0 %v429
        %1890 = vmatpush1.msra.mxu0 %v428
        %1891 = vmatprep.subr.mxu0 %v427
        %1892 = vmatpush1.msra.mxu0 %v426
        %1893 = vmatprep.subr.mxu0 0.0
        %1894 = vmatpush2.msra.mxu0 0.0
        %1895 = vmatprep.subr.mxu0 0.0
        %1896 = vmatpush2.msra.mxu0 0.0
        %1897 = vmatprep.subr.mxu0 0.0
        %1898 = vmatpush2.msra.mxu0 0.0
        %1899 = vmatprep.subr.mxu0 0.0
        %1900 = vmatpush2.msra.mxu0 0.0
        %1901 = vmatprep.subr.mxu0 0.0
        %1902 = vmatpush2.msra.mxu0 0.0
        %1903 = vmatprep.subr.mxu0 0.0
        %1904 = vmatpush2.msra.mxu0 0.0
        %1905 = vmatprep.subr.mxu0 0.0
        %1906 = vmatpush2.msra.mxu0 0.0
        %1907 = vmatprep.subr.mxu0 0.0
        %1908 = vmatpush2.msra.mxu0 0.0
        %1909 = vmatprep.subr.mxu0 0.0
        %1910 = vmatpush2.msra.mxu0 0.0
        %1911 = vmatprep.subr.mxu0 0.0
        %1912 = vmatpush2.msra.mxu0 0.0
        %1913 = vmatprep.subr.mxu0 0.0
        %1914 = vmatpush2.msra.mxu0 0.0
        %1915 = vmatprep.subr.mxu0 0.0
        %1916 = vmatpush2.msra.mxu0 0.0
        %1917 = vmatprep.subr.mxu0 0.0
        %1918 = vmatpush2.msra.mxu0 0.0
        %1919 = vmatprep.subr.mxu0 0.0
        %1920 = vmatpush2.msra.mxu0 0.0
        %1921 = vmatprep.subr.mxu0 0.0
        %1922 = vmatpush2.msra.mxu0 0.0
        %1923 = vmatprep.subr.mxu0 0.0
        %1924 = vmatpush2.msra.mxu0 0.0
        %1925 = vmatprep.mubr.f32.mxu0 0.0
        %1926 = vmatmul.mubr.f32.gmra.mxu0 %v470
        %v1927 = vpop.f32.mrf.mxu0
        %v1928 = vadd.f32 0.0, %v1927
        %v1929 = vpop.f32.mrf.mxu0
        %v1930 = vadd.f32 0.0, %v1929
        %1931 = vmatprep.mubr.f32.mxu0 0.0
        %1932 = vmatmul.mubr.f32.gmra.mxu0 %v473
        %v1933 = vpop.f32.mrf.mxu0
        %v1934 = vadd.f32 0.0, %v1933
        %v1935 = vpop.f32.mrf.mxu0
        %v1936 = vadd.f32 0.0, %v1935
        %1937 = vdwg.mxu0
        %1938 = vmatprep.subr.mxu0 0.0
        %1939 = vmatpush1.msra.mxu0 0.0
        %1940 = vmatprep.subr.mxu0 0.0
        %1941 = vmatpush1.msra.mxu0 0.0
        %1942 = vmatprep.subr.mxu0 0.0
        %1943 = vmatpush1.msra.mxu0 0.0
        %1944 = vmatprep.subr.mxu0 0.0
        %1945 = vmatpush1.msra.mxu0 0.0
        %1946 = vmatprep.subr.mxu0 0.0
        %1947 = vmatpush1.msra.mxu0 0.0
        %1948 = vmatprep.subr.mxu0 0.0
        %1949 = vmatpush1.msra.mxu0 0.0
        %1950 = vmatprep.subr.mxu0 0.0
        %1951 = vmatpush1.msra.mxu0 0.0
        %1952 = vmatprep.subr.mxu0 0.0
        %1953 = vmatpush1.msra.mxu0 0.0
        %1954 = vmatprep.subr.mxu0 0.0
        %1955 = vmatpush1.msra.mxu0 0.0
        %1956 = vmatprep.subr.mxu0 0.0
        %1957 = vmatpush1.msra.mxu0 0.0
        %1958 = vmatprep.subr.mxu0 0.0
        %1959 = vmatpush1.msra.mxu0 0.0
        %1960 = vmatprep.subr.mxu0 0.0
        %1961 = vmatpush1.msra.mxu0 0.0
        %1962 = vmatprep.subr.mxu0 0.0
        %1963 = vmatpush1.msra.mxu0 0.0
        %1964 = vmatprep.subr.mxu0 0.0
        %1965 = vmatpush1.msra.mxu0 0.0
        %1966 = vmatprep.subr.mxu0 %v433
        %1967 = vmatpush1.msra.mxu0 %v432
        %1968 = vmatprep.subr.mxu0 %v431
        %1969 = vmatpush1.msra.mxu0 %v430
        %1970 = vmatprep.subr.mxu0 0.0
        %1971 = vmatpush2.msra.mxu0 0.0
        %1972 = vmatprep.subr.mxu0 0.0
        %1973 = vmatpush2.msra.mxu0 0.0
        %1974 = vmatprep.subr.mxu0 0.0
        %1975 = vmatpush2.msra.mxu0 0.0
        %1976 = vmatprep.subr.mxu0 0.0
        %1977 = vmatpush2.msra.mxu0 0.0
        %1978 = vmatprep.subr.mxu0 0.0
        %1979 = vmatpush2.msra.mxu0 0.0
        %1980 = vmatprep.subr.mxu0 0.0
        %1981 = vmatpush2.msra.mxu0 0.0
        %1982 = vmatprep.subr.mxu0 0.0
        %1983 = vmatpush2.msra.mxu0 0.0
        %1984 = vmatprep.subr.mxu0 0.0
        %1985 = vmatpush2.msra.mxu0 0.0
        %1986 = vmatprep.subr.mxu0 0.0
        %1987 = vmatpush2.msra.mxu0 0.0
        %1988 = vmatprep.subr.mxu0 0.0
        %1989 = vmatpush2.msra.mxu0 0.0
        %1990 = vmatprep.subr.mxu0 0.0
        %1991 = vmatpush2.msra.mxu0 0.0
        %1992 = vmatprep.subr.mxu0 0.0
        %1993 = vmatpush2.msra.mxu0 0.0
        %1994 = vmatprep.subr.mxu0 0.0
        %1995 = vmatpush2.msra.mxu0 0.0
        %1996 = vmatprep.subr.mxu0 0.0
        %1997 = vmatpush2.msra.mxu0 0.0
        %1998 = vmatprep.subr.mxu0 0.0
        %1999 = vmatpush2.msra.mxu0 0.0
        %2000 = vmatprep.subr.mxu0 0.0
        %2001 = vmatpush2.msra.mxu0 0.0
        %2002 = vmatprep.mubr.f32.mxu0 0.0
        %2003 = vmatmul.mubr.f32.gmra.mxu0 %v470
        %v2004 = vpop.f32.mrf.mxu0
        %v2005 = vadd.f32 0.0, %v2004
        %v2006 = vpop.f32.mrf.mxu0
        %v2007 = vadd.f32 0.0, %v2006
        %2008 = vmatprep.mubr.f32.mxu0 0.0
        %2009 = vmatmul.mubr.f32.gmra.mxu0 %v473
        %v2010 = vpop.f32.mrf.mxu0
        %v2011 = vadd.f32 0.0, %v2010
        %v2012 = vpop.f32.mrf.mxu0
        %v2013 = vadd.f32 0.0, %v2012
        %2014 = vdwg.mxu0
        %2015 = vmatprep.subr.mxu0 0.0
        %2016 = vmatpush1.msra.mxu0 0.0
        %2017 = vmatprep.subr.mxu0 0.0
        %2018 = vmatpush1.msra.mxu0 0.0
        %2019 = vmatprep.subr.mxu0 0.0
        %2020 = vmatpush1.msra.mxu0 0.0
        %2021 = vmatprep.subr.mxu0 0.0
        %2022 = vmatpush1.msra.mxu0 0.0
        %2023 = vmatprep.subr.mxu0 0.0
        %2024 = vmatpush1.msra.mxu0 0.0
        %2025 = vmatprep.subr.mxu0 0.0
        %2026 = vmatpush1.msra.mxu0 0.0
        %2027 = vmatprep.subr.mxu0 0.0
        %2028 = vmatpush1.msra.mxu0 0.0
        %2029 = vmatprep.subr.mxu0 0.0
        %2030 = vmatpush1.msra.mxu0 0.0
        %2031 = vmatprep.subr.mxu0 0.0
        %2032 = vmatpush1.msra.mxu0 0.0
        %2033 = vmatprep.subr.mxu0 0.0
        %2034 = vmatpush1.msra.mxu0 0.0
        %2035 = vmatprep.subr.mxu0 0.0
        %2036 = vmatpush1.msra.mxu0 0.0
        %2037 = vmatprep.subr.mxu0 0.0
        %2038 = vmatpush1.msra.mxu0 0.0
        %2039 = vmatprep.subr.mxu0 0.0
        %2040 = vmatpush1.msra.mxu0 0.0
        %2041 = vmatprep.subr.mxu0 0.0
        %2042 = vmatpush1.msra.mxu0 0.0
        %2043 = vmatprep.subr.mxu0 %v437
        %2044 = vmatpush1.msra.mxu0 %v436
        %2045 = vmatprep.subr.mxu0 %v435
        %2046 = vmatpush1.msra.mxu0 %v434
        %2047 = vmatprep.subr.mxu0 0.0
        %2048 = vmatpush2.msra.mxu0 0.0
        %2049 = vmatprep.subr.mxu0 0.0
        %2050 = vmatpush2.msra.mxu0 0.0
        %2051 = vmatprep.subr.mxu0 0.0
        %2052 = vmatpush2.msra.mxu0 0.0
        %2053 = vmatprep.subr.mxu0 0.0
        %2054 = vmatpush2.msra.mxu0 0.0
        %2055 = vmatprep.subr.mxu0 0.0
        %2056 = vmatpush2.msra.mxu0 0.0
        %2057 = vmatprep.subr.mxu0 0.0
        %2058 = vmatpush2.msra.mxu0 0.0
        %2059 = vmatprep.subr.mxu0 0.0
        %2060 = vmatpush2.msra.mxu0 0.0
        %2061 = vmatprep.subr.mxu0 0.0
        %2062 = vmatpush2.msra.mxu0 0.0
        %2063 = vmatprep.subr.mxu0 0.0
        %2064 = vmatpush2.msra.mxu0 0.0
        %2065 = vmatprep.subr.mxu0 0.0
        %2066 = vmatpush2.msra.mxu0 0.0
        %2067 = vmatprep.subr.mxu0 0.0
        %2068 = vmatpush2.msra.mxu0 0.0
        %2069 = vmatprep.subr.mxu0 0.0
        %2070 = vmatpush2.msra.mxu0 0.0
        %2071 = vmatprep.subr.mxu0 0.0
        %2072 = vmatpush2.msra.mxu0 0.0
        %2073 = vmatprep.subr.mxu0 0.0
        %2074 = vmatpush2.msra.mxu0 0.0
        %2075 = vmatprep.subr.mxu0 0.0
        %2076 = vmatpush2.msra.mxu0 0.0
        %2077 = vmatprep.subr.mxu0 0.0
        %2078 = vmatpush2.msra.mxu0 0.0
        %2079 = vmatprep.mubr.f32.mxu0 0.0
        %2080 = vmatmul.mubr.f32.gmra.mxu0 %v470
        %v2081 = vpop.f32.mrf.mxu0
        %v2082 = vadd.f32 0.0, %v2081
        %v2083 = vpop.f32.mrf.mxu0
        %v2084 = vadd.f32 0.0, %v2083
        %2085 = vmatprep.mubr.f32.mxu0 0.0
        %2086 = vmatmul.mubr.f32.gmra.mxu0 %v473
        %v2087 = vpop.f32.mrf.mxu0
        %v2088 = vadd.f32 0.0, %v2087
        %v2089 = vpop.f32.mrf.mxu0
        %v2090 = vadd.f32 0.0, %v2089
        %2091 = vdwg.mxu0
        %2092 = vmatprep.subr.mxu0 0.0
        %2093 = vmatpush1.msra.mxu0 0.0
        %2094 = vmatprep.subr.mxu0 0.0
        %2095 = vmatpush1.msra.mxu0 0.0
        %2096 = vmatprep.subr.mxu0 0.0
        %2097 = vmatpush1.msra.mxu0 0.0
        %2098 = vmatprep.subr.mxu0 0.0
        %2099 = vmatpush1.msra.mxu0 0.0
        %2100 = vmatprep.subr.mxu0 0.0
        %2101 = vmatpush1.msra.mxu0 0.0
        %2102 = vmatprep.subr.mxu0 0.0
        %2103 = vmatpush1.msra.mxu0 0.0
        %2104 = vmatprep.subr.mxu0 0.0
        %2105 = vmatpush1.msra.mxu0 0.0
        %2106 = vmatprep.subr.mxu0 0.0
        %2107 = vmatpush1.msra.mxu0 0.0
        %2108 = vmatprep.subr.mxu0 0.0
        %2109 = vmatpush1.msra.mxu0 0.0
        %2110 = vmatprep.subr.mxu0 0.0
        %2111 = vmatpush1.msra.mxu0 0.0
        %2112 = vmatprep.subr.mxu0 0.0
        %2113 = vmatpush1.msra.mxu0 0.0
        %2114 = vmatprep.subr.mxu0 0.0
        %2115 = vmatpush1.msra.mxu0 0.0
        %2116 = vmatprep.subr.mxu0 0.0
        %2117 = vmatpush1.msra.mxu0 0.0
        %2118 = vmatprep.subr.mxu0 0.0
        %2119 = vmatpush1.msra.mxu0 0.0
        %2120 = vmatprep.subr.mxu0 %v441
        %2121 = vmatpush1.msra.mxu0 %v440
        %2122 = vmatprep.subr.mxu0 %v439
        %2123 = vmatpush1.msra.mxu0 %v438
        %2124 = vmatprep.subr.mxu0 0.0
        %2125 = vmatpush2.msra.mxu0 0.0
        %2126 = vmatprep.subr.mxu0 0.0
        %2127 = vmatpush2.msra.mxu0 0.0
        %2128 = vmatprep.subr.mxu0 0.0
        %2129 = vmatpush2.msra.mxu0 0.0
        %2130 = vmatprep.subr.mxu0 0.0
        %2131 = vmatpush2.msra.mxu0 0.0
        %2132 = vmatprep.subr.mxu0 0.0
        %2133 = vmatpush2.msra.mxu0 0.0
        %2134 = vmatprep.subr.mxu0 0.0
        %2135 = vmatpush2.msra.mxu0 0.0
        %2136 = vmatprep.subr.mxu0 0.0
        %2137 = vmatpush2.msra.mxu0 0.0
        %2138 = vmatprep.subr.mxu0 0.0
        %2139 = vmatpush2.msra.mxu0 0.0
        %2140 = vmatprep.subr.mxu0 0.0
        %2141 = vmatpush2.msra.mxu0 0.0
        %2142 = vmatprep.subr.mxu0 0.0
        %2143 = vmatpush2.msra.mxu0 0.0
        %2144 = vmatprep.subr.mxu0 0.0
        %2145 = vmatpush2.msra.mxu0 0.0
        %2146 = vmatprep.subr.mxu0 0.0
        %2147 = vmatpush2.msra.mxu0 0.0
        %2148 = vmatprep.subr.mxu0 0.0
        %2149 = vmatpush2.msra.mxu0 0.0
        %2150 = vmatprep.subr.mxu0 0.0
        %2151 = vmatpush2.msra.mxu0 0.0
        %2152 = vmatprep.subr.mxu0 0.0
        %2153 = vmatpush2.msra.mxu0 0.0
        %2154 = vmatprep.subr.mxu0 0.0
        %2155 = vmatpush2.msra.mxu0 0.0
        %2156 = vmatprep.mubr.f32.mxu0 0.0
        %2157 = vmatmul.mubr.f32.gmra.mxu0 %v470
        %v2158 = vpop.f32.mrf.mxu0
        %v2159 = vadd.f32 0.0, %v2158
        %v2160 = vpop.f32.mrf.mxu0
        %v2161 = vadd.f32 0.0, %v2160
        %2162 = vmatprep.mubr.f32.mxu0 0.0
        %2163 = vmatmul.mubr.f32.gmra.mxu0 %v473
        %v2164 = vpop.f32.mrf.mxu0
        %v2165 = vadd.f32 0.0, %v2164
        %v2166 = vpop.f32.mrf.mxu0
        %v2167 = vadd.f32 0.0, %v2166
        %2168 = vdwg.mxu0
        %2169 = vmatprep.subr.mxu0 0.0
        %2170 = vmatpush1.msra.mxu0 0.0
        %2171 = vmatprep.subr.mxu0 0.0
        %2172 = vmatpush1.msra.mxu0 0.0
        %2173 = vmatprep.subr.mxu0 0.0
        %2174 = vmatpush1.msra.mxu0 0.0
        %2175 = vmatprep.subr.mxu0 0.0
        %2176 = vmatpush1.msra.mxu0 0.0
        %2177 = vmatprep.subr.mxu0 0.0
        %2178 = vmatpush1.msra.mxu0 0.0
        %2179 = vmatprep.subr.mxu0 0.0
        %2180 = vmatpush1.msra.mxu0 0.0
        %2181 = vmatprep.subr.mxu0 0.0
        %2182 = vmatpush1.msra.mxu0 0.0
        %2183 = vmatprep.subr.mxu0 0.0
        %2184 = vmatpush1.msra.mxu0 0.0
        %2185 = vmatprep.subr.mxu0 0.0
        %2186 = vmatpush1.msra.mxu0 0.0
        %2187 = vmatprep.subr.mxu0 0.0
        %2188 = vmatpush1.msra.mxu0 0.0
        %2189 = vmatprep.subr.mxu0 0.0
        %2190 = vmatpush1.msra.mxu0 0.0
        %2191 = vmatprep.subr.mxu0 0.0
        %2192 = vmatpush1.msra.mxu0 0.0
        %2193 = vmatprep.subr.mxu0 0.0
        %2194 = vmatpush1.msra.mxu0 0.0
        %2195 = vmatprep.subr.mxu0 0.0
        %2196 = vmatpush1.msra.mxu0 0.0
        %2197 = vmatprep.subr.mxu0 %v445
        %2198 = vmatpush1.msra.mxu0 %v444
        %2199 = vmatprep.subr.mxu0 %v443
        %2200 = vmatpush1.msra.mxu0 %v442
        %2201 = vmatprep.subr.mxu0 0.0
        %2202 = vmatpush2.msra.mxu0 0.0
        %2203 = vmatprep.subr.mxu0 0.0
        %2204 = vmatpush2.msra.mxu0 0.0
        %2205 = vmatprep.subr.mxu0 0.0
        %2206 = vmatpush2.msra.mxu0 0.0
        %2207 = vmatprep.subr.mxu0 0.0
        %2208 = vmatpush2.msra.mxu0 0.0
        %2209 = vmatprep.subr.mxu0 0.0
        %2210 = vmatpush2.msra.mxu0 0.0
        %2211 = vmatprep.subr.mxu0 0.0
        %2212 = vmatpush2.msra.mxu0 0.0
        %2213 = vmatprep.subr.mxu0 0.0
        %2214 = vmatpush2.msra.mxu0 0.0
        %2215 = vmatprep.subr.mxu0 0.0
        %2216 = vmatpush2.msra.mxu0 0.0
        %2217 = vmatprep.subr.mxu0 0.0
        %2218 = vmatpush2.msra.mxu0 0.0
        %2219 = vmatprep.subr.mxu0 0.0
        %2220 = vmatpush2.msra.mxu0 0.0
        %2221 = vmatprep.subr.mxu0 0.0
        %2222 = vmatpush2.msra.mxu0 0.0
        %2223 = vmatprep.subr.mxu0 0.0
        %2224 = vmatpush2.msra.mxu0 0.0
        %2225 = vmatprep.subr.mxu0 0.0
        %2226 = vmatpush2.msra.mxu0 0.0
        %2227 = vmatprep.subr.mxu0 0.0
        %2228 = vmatpush2.msra.mxu0 0.0
        %2229 = vmatprep.subr.mxu0 0.0
        %2230 = vmatpush2.msra.mxu0 0.0
        %2231 = vmatprep.subr.mxu0 0.0
        %2232 = vmatpush2.msra.mxu0 0.0
        %2233 = vmatprep.mubr.f32.mxu0 0.0
        %2234 = vmatmul.mubr.f32.gmra.mxu0 %v470
        %v2235 = vpop.f32.mrf.mxu0
        %v2236 = vadd.f32 0.0, %v2235
        %v2237 = vpop.f32.mrf.mxu0
        %v2238 = vadd.f32 0.0, %v2237
        %2239 = vmatprep.mubr.f32.mxu0 0.0
        %2240 = vmatmul.mubr.f32.gmra.mxu0 %v473
        %v2241 = vpop.f32.mrf.mxu0
        %v2242 = vadd.f32 0.0, %v2241
        %v2243 = vpop.f32.mrf.mxu0
        %v2244 = vadd.f32 0.0, %v2243
        %2245 = vdwg.mxu0
        %2246 = vmatprep.subr.mxu0 0.0
        %2247 = vmatpush1.msra.mxu0 0.0
        %2248 = vmatprep.subr.mxu0 0.0
        %2249 = vmatpush1.msra.mxu0 0.0
        %2250 = vmatprep.subr.mxu0 0.0
        %2251 = vmatpush1.msra.mxu0 0.0
        %2252 = vmatprep.subr.mxu0 0.0
        %2253 = vmatpush1.msra.mxu0 0.0
        %2254 = vmatprep.subr.mxu0 0.0
        %2255 = vmatpush1.msra.mxu0 0.0
        %2256 = vmatprep.subr.mxu0 0.0
        %2257 = vmatpush1.msra.mxu0 0.0
        %2258 = vmatprep.subr.mxu0 0.0
        %2259 = vmatpush1.msra.mxu0 0.0
        %2260 = vmatprep.subr.mxu0 0.0
        %2261 = vmatpush1.msra.mxu0 0.0
        %2262 = vmatprep.subr.mxu0 0.0
        %2263 = vmatpush1.msra.mxu0 0.0
        %2264 = vmatprep.subr.mxu0 0.0
        %2265 = vmatpush1.msra.mxu0 0.0
        %2266 = vmatprep.subr.mxu0 0.0
        %2267 = vmatpush1.msra.mxu0 0.0
        %2268 = vmatprep.subr.mxu0 0.0
        %2269 = vmatpush1.msra.mxu0 0.0
        %2270 = vmatprep.subr.mxu0 0.0
        %2271 = vmatpush1.msra.mxu0 0.0
        %2272 = vmatprep.subr.mxu0 0.0
        %2273 = vmatpush1.msra.mxu0 0.0
        %2274 = vmatprep.subr.mxu0 %v449
        %2275 = vmatpush1.msra.mxu0 %v448
        %2276 = vmatprep.subr.mxu0 %v447
        %2277 = vmatpush1.msra.mxu0 %v446
        %2278 = vmatprep.subr.mxu0 0.0
        %2279 = vmatpush2.msra.mxu0 0.0
        %2280 = vmatprep.subr.mxu0 0.0
        %2281 = vmatpush2.msra.mxu0 0.0
        %2282 = vmatprep.subr.mxu0 0.0
        %2283 = vmatpush2.msra.mxu0 0.0
        %2284 = vmatprep.subr.mxu0 0.0
        %2285 = vmatpush2.msra.mxu0 0.0
        %2286 = vmatprep.subr.mxu0 0.0
        %2287 = vmatpush2.msra.mxu0 0.0
        %2288 = vmatprep.subr.mxu0 0.0
        %2289 = vmatpush2.msra.mxu0 0.0
        %2290 = vmatprep.subr.mxu0 0.0
        %2291 = vmatpush2.msra.mxu0 0.0
        %2292 = vmatprep.subr.mxu0 0.0
        %2293 = vmatpush2.msra.mxu0 0.0
        %2294 = vmatprep.subr.mxu0 0.0
        %2295 = vmatpush2.msra.mxu0 0.0
        %2296 = vmatprep.subr.mxu0 0.0
        %2297 = vmatpush2.msra.mxu0 0.0
        %2298 = vmatprep.subr.mxu0 0.0
        %2299 = vmatpush2.msra.mxu0 0.0
        %2300 = vmatprep.subr.mxu0 0.0
        %2301 = vmatpush2.msra.mxu0 0.0
        %2302 = vmatprep.subr.mxu0 0.0
        %2303 = vmatpush2.msra.mxu0 0.0
        %2304 = vmatprep.subr.mxu0 0.0
        %2305 = vmatpush2.msra.mxu0 0.0
        %2306 = vmatprep.subr.mxu0 0.0
        %2307 = vmatpush2.msra.mxu0 0.0
        %2308 = vmatprep.subr.mxu0 0.0
        %2309 = vmatpush2.msra.mxu0 0.0
        %2310 = vmatprep.mubr.f32.mxu0 0.0
        %2311 = vmatmul.mubr.f32.gmra.mxu0 %v470
        %v2312 = vpop.f32.mrf.mxu0
        %v2313 = vadd.f32 0.0, %v2312
        %v2314 = vpop.f32.mrf.mxu0
        %v2315 = vadd.f32 0.0, %v2314
        %2316 = vmatprep.mubr.f32.mxu0 0.0
        %2317 = vmatmul.mubr.f32.gmra.mxu0 %v473
        %v2318 = vpop.f32.mrf.mxu0
        %v2319 = vadd.f32 0.0, %v2318
        %v2320 = vpop.f32.mrf.mxu0
        %v2321 = vadd.f32 0.0, %v2320
        %2322 = vdwg.mxu0
        %2323 = vmatprep.subr.mxu0 0.0
        %2324 = vmatpush1.msra.mxu0 0.0
        %2325 = vmatprep.subr.mxu0 0.0
        %2326 = vmatpush1.msra.mxu0 0.0
        %2327 = vmatprep.subr.mxu0 0.0
        %2328 = vmatpush1.msra.mxu0 0.0
        %2329 = vmatprep.subr.mxu0 0.0
        %2330 = vmatpush1.msra.mxu0 0.0
        %2331 = vmatprep.subr.mxu0 0.0
        %2332 = vmatpush1.msra.mxu0 0.0
        %2333 = vmatprep.subr.mxu0 0.0
        %2334 = vmatpush1.msra.mxu0 0.0
        %2335 = vmatprep.subr.mxu0 0.0
        %2336 = vmatpush1.msra.mxu0 0.0
        %2337 = vmatprep.subr.mxu0 0.0
        %2338 = vmatpush1.msra.mxu0 0.0
        %2339 = vmatprep.subr.mxu0 0.0
        %2340 = vmatpush1.msra.mxu0 0.0
        %2341 = vmatprep.subr.mxu0 0.0
        %2342 = vmatpush1.msra.mxu0 0.0
        %2343 = vmatprep.subr.mxu0 0.0
        %2344 = vmatpush1.msra.mxu0 0.0
        %2345 = vmatprep.subr.mxu0 0.0
        %2346 = vmatpush1.msra.mxu0 0.0
        %2347 = vmatprep.subr.mxu0 0.0
        %2348 = vmatpush1.msra.mxu0 0.0
        %2349 = vmatprep.subr.mxu0 0.0
        %2350 = vmatpush1.msra.mxu0 0.0
        %2351 = vmatprep.subr.mxu0 %v453
        %2352 = vmatpush1.msra.mxu0 %v452
        %2353 = vmatprep.subr.mxu0 %v451
        %2354 = vmatpush1.msra.mxu0 %v450
        %2355 = vmatprep.subr.mxu0 0.0
        %2356 = vmatpush2.msra.mxu0 0.0
        %2357 = vmatprep.subr.mxu0 0.0
        %2358 = vmatpush2.msra.mxu0 0.0
        %2359 = vmatprep.subr.mxu0 0.0
        %2360 = vmatpush2.msra.mxu0 0.0
        %2361 = vmatprep.subr.mxu0 0.0
        %2362 = vmatpush2.msra.mxu0 0.0
        %2363 = vmatprep.subr.mxu0 0.0
        %2364 = vmatpush2.msra.mxu0 0.0
        %2365 = vmatprep.subr.mxu0 0.0
        %2366 = vmatpush2.msra.mxu0 0.0
        %2367 = vmatprep.subr.mxu0 0.0
        %2368 = vmatpush2.msra.mxu0 0.0
        %2369 = vmatprep.subr.mxu0 0.0
        %2370 = vmatpush2.msra.mxu0 0.0
        %2371 = vmatprep.subr.mxu0 0.0
        %2372 = vmatpush2.msra.mxu0 0.0
        %2373 = vmatprep.subr.mxu0 0.0
        %2374 = vmatpush2.msra.mxu0 0.0
        %2375 = vmatprep.subr.mxu0 0.0
        %2376 = vmatpush2.msra.mxu0 0.0
        %2377 = vmatprep.subr.mxu0 0.0
        %2378 = vmatpush2.msra.mxu0 0.0
        %2379 = vmatprep.subr.mxu0 0.0
        %2380 = vmatpush2.msra.mxu0 0.0
        %2381 = vmatprep.subr.mxu0 0.0
        %2382 = vmatpush2.msra.mxu0 0.0
        %2383 = vmatprep.subr.mxu0 0.0
        %2384 = vmatpush2.msra.mxu0 0.0
        %2385 = vmatprep.subr.mxu0 0.0
        %2386 = vmatpush2.msra.mxu0 0.0
        %2387 = vmatprep.mubr.f32.mxu0 0.0
        %2388 = vmatmul.mubr.f32.gmra.mxu0 %v470
        %v2389 = vpop.f32.mrf.mxu0
        %v2390 = vadd.f32 0.0, %v2389
        %v2391 = vpop.f32.mrf.mxu0
        %v2392 = vadd.f32 0.0, %v2391
        %2393 = vmatprep.mubr.f32.mxu0 0.0
        %2394 = vmatmul.mubr.f32.gmra.mxu0 %v473
        %v2395 = vpop.f32.mrf.mxu0
        %v2396 = vadd.f32 0.0, %v2395
        %v2397 = vpop.f32.mrf.mxu0
        %v2398 = vadd.f32 0.0, %v2397
        %2399 = vdwg.mxu0
        %2400 = vmatprep.subr.mxu0 0.0
        %2401 = vmatpush1.msra.mxu0 0.0
        %2402 = vmatprep.subr.mxu0 0.0
        %2403 = vmatpush1.msra.mxu0 0.0
        %2404 = vmatprep.subr.mxu0 0.0
        %2405 = vmatpush1.msra.mxu0 0.0
        %2406 = vmatprep.subr.mxu0 0.0
        %2407 = vmatpush1.msra.mxu0 0.0
        %2408 = vmatprep.subr.mxu0 0.0
        %2409 = vmatpush1.msra.mxu0 0.0
        %2410 = vmatprep.subr.mxu0 0.0
        %2411 = vmatpush1.msra.mxu0 0.0
        %2412 = vmatprep.subr.mxu0 0.0
        %2413 = vmatpush1.msra.mxu0 0.0
        %2414 = vmatprep.subr.mxu0 0.0
        %2415 = vmatpush1.msra.mxu0 0.0
        %2416 = vmatprep.subr.mxu0 0.0
        %2417 = vmatpush1.msra.mxu0 0.0
        %2418 = vmatprep.subr.mxu0 0.0
        %2419 = vmatpush1.msra.mxu0 0.0
        %2420 = vmatprep.subr.mxu0 0.0
        %2421 = vmatpush1.msra.mxu0 0.0
        %2422 = vmatprep.subr.mxu0 0.0
        %2423 = vmatpush1.msra.mxu0 0.0
        %2424 = vmatprep.subr.mxu0 0.0
        %2425 = vmatpush1.msra.mxu0 0.0
        %2426 = vmatprep.subr.mxu0 0.0
        %2427 = vmatpush1.msra.mxu0 0.0
        %2428 = vmatprep.subr.mxu0 %v457
        %2429 = vmatpush1.msra.mxu0 %v456
        %2430 = vmatprep.subr.mxu0 %v455
        %2431 = vmatpush1.msra.mxu0 %v454
        %2432 = vmatprep.subr.mxu0 0.0
        %2433 = vmatpush2.msra.mxu0 0.0
        %2434 = vmatprep.subr.mxu0 0.0
        %2435 = vmatpush2.msra.mxu0 0.0
        %2436 = vmatprep.subr.mxu0 0.0
        %2437 = vmatpush2.msra.mxu0 0.0
        %2438 = vmatprep.subr.mxu0 0.0
        %2439 = vmatpush2.msra.mxu0 0.0
        %2440 = vmatprep.subr.mxu0 0.0
        %2441 = vmatpush2.msra.mxu0 0.0
        %2442 = vmatprep.subr.mxu0 0.0
        %2443 = vmatpush2.msra.mxu0 0.0
        %2444 = vmatprep.subr.mxu0 0.0
        %2445 = vmatpush2.msra.mxu0 0.0
        %2446 = vmatprep.subr.mxu0 0.0
        %2447 = vmatpush2.msra.mxu0 0.0
        %2448 = vmatprep.subr.mxu0 0.0
        %2449 = vmatpush2.msra.mxu0 0.0
        %2450 = vmatprep.subr.mxu0 0.0
        %2451 = vmatpush2.msra.mxu0 0.0
        %2452 = vmatprep.subr.mxu0 0.0
        %2453 = vmatpush2.msra.mxu0 0.0
        %2454 = vmatprep.subr.mxu0 0.0
        %2455 = vmatpush2.msra.mxu0 0.0
        %2456 = vmatprep.subr.mxu0 0.0
        %2457 = vmatpush2.msra.mxu0 0.0
        %2458 = vmatprep.subr.mxu0 0.0
        %2459 = vmatpush2.msra.mxu0 0.0
        %2460 = vmatprep.subr.mxu0 0.0
        %2461 = vmatpush2.msra.mxu0 0.0
        %2462 = vmatprep.subr.mxu0 0.0
        %2463 = vmatpush2.msra.mxu0 0.0
        %2464 = vmatprep.mubr.f32.mxu0 0.0
        %2465 = vmatmul.mubr.f32.gmra.mxu0 %v470
        %v2466 = vpop.f32.mrf.mxu0
        %v2467 = vadd.f32 0.0, %v2466
        %v2468 = vpop.f32.mrf.mxu0
        %v2469 = vadd.f32 0.0, %v2468
        %2470 = vmatprep.mubr.f32.mxu0 0.0
        %2471 = vmatmul.mubr.f32.gmra.mxu0 %v473
        %v2472 = vpop.f32.mrf.mxu0
        %v2473 = vadd.f32 0.0, %v2472
        %v2474 = vpop.f32.mrf.mxu0
        %v2475 = vadd.f32 0.0, %v2474
        %2476 = vdwg.mxu0
        %2477 = vmatprep.subr.mxu0 0.0
        %2478 = vmatpush1.msra.mxu0 0.0
        %2479 = vmatprep.subr.mxu0 0.0
        %2480 = vmatpush1.msra.mxu0 0.0
        %2481 = vmatprep.subr.mxu0 0.0
        %2482 = vmatpush1.msra.mxu0 0.0
        %2483 = vmatprep.subr.mxu0 0.0
        %2484 = vmatpush1.msra.mxu0 0.0
        %2485 = vmatprep.subr.mxu0 0.0
        %2486 = vmatpush1.msra.mxu0 0.0
        %2487 = vmatprep.subr.mxu0 0.0
        %2488 = vmatpush1.msra.mxu0 0.0
        %2489 = vmatprep.subr.mxu0 0.0
        %2490 = vmatpush1.msra.mxu0 0.0
        %2491 = vmatprep.subr.mxu0 0.0
        %2492 = vmatpush1.msra.mxu0 0.0
        %2493 = vmatprep.subr.mxu0 0.0
        %2494 = vmatpush1.msra.mxu0 0.0
        %2495 = vmatprep.subr.mxu0 0.0
        %2496 = vmatpush1.msra.mxu0 0.0
        %2497 = vmatprep.subr.mxu0 0.0
        %2498 = vmatpush1.msra.mxu0 0.0
        %2499 = vmatprep.subr.mxu0 0.0
        %2500 = vmatpush1.msra.mxu0 0.0
        %2501 = vmatprep.subr.mxu0 0.0
        %2502 = vmatpush1.msra.mxu0 0.0
        %2503 = vmatprep.subr.mxu0 0.0
        %2504 = vmatpush1.msra.mxu0 0.0
        %2505 = vmatprep.subr.mxu0 %v461
        %2506 = vmatpush1.msra.mxu0 %v460
        %2507 = vmatprep.subr.mxu0 %v459
        %2508 = vmatpush1.msra.mxu0 %v458
        %2509 = vmatprep.subr.mxu0 0.0
        %2510 = vmatpush2.msra.mxu0 0.0
        %2511 = vmatprep.subr.mxu0 0.0
        %2512 = vmatpush2.msra.mxu0 0.0
        %2513 = vmatprep.subr.mxu0 0.0
        %2514 = vmatpush2.msra.mxu0 0.0
        %2515 = vmatprep.subr.mxu0 0.0
        %2516 = vmatpush2.msra.mxu0 0.0
        %2517 = vmatprep.subr.mxu0 0.0
        %2518 = vmatpush2.msra.mxu0 0.0
        %2519 = vmatprep.subr.mxu0 0.0
        %2520 = vmatpush2.msra.mxu0 0.0
        %2521 = vmatprep.subr.mxu0 0.0
        %2522 = vmatpush2.msra.mxu0 0.0
        %2523 = vmatprep.subr.mxu0 0.0
        %2524 = vmatpush2.msra.mxu0 0.0
        %2525 = vmatprep.subr.mxu0 0.0
        %2526 = vmatpush2.msra.mxu0 0.0
        %2527 = vmatprep.subr.mxu0 0.0
        %2528 = vmatpush2.msra.mxu0 0.0
        %2529 = vmatprep.subr.mxu0 0.0
        %2530 = vmatpush2.msra.mxu0 0.0
        %2531 = vmatprep.subr.mxu0 0.0
        %2532 = vmatpush2.msra.mxu0 0.0
        %2533 = vmatprep.subr.mxu0 0.0
        %2534 = vmatpush2.msra.mxu0 0.0
        %2535 = vmatprep.subr.mxu0 0.0
        %2536 = vmatpush2.msra.mxu0 0.0
        %2537 = vmatprep.subr.mxu0 0.0
        %2538 = vmatpush2.msra.mxu0 0.0
        %2539 = vmatprep.subr.mxu0 0.0
        %2540 = vmatpush2.msra.mxu0 0.0
        %2541 = vmatprep.mubr.f32.mxu0 0.0
        %2542 = vmatmul.mubr.f32.gmra.mxu0 %v470
        %v2543 = vpop.f32.mrf.mxu0
        %v2544 = vadd.f32 0.0, %v2543
        %v2545 = vpop.f32.mrf.mxu0
        %v2546 = vadd.f32 0.0, %v2545
        %2547 = vmatprep.mubr.f32.mxu0 0.0
        %2548 = vmatmul.mubr.f32.gmra.mxu0 %v473
        %v2549 = vpop.f32.mrf.mxu0
        %v2550 = vadd.f32 0.0, %v2549
        %v2551 = vpop.f32.mrf.mxu0
        %v2552 = vadd.f32 0.0, %v2551
        %2553 = vdwg.mxu0
        %2554 = vmatprep.subr.mxu0 0.0
        %2555 = vmatpush1.msra.mxu0 0.0
        %2556 = vmatprep.subr.mxu0 0.0
        %2557 = vmatpush1.msra.mxu0 0.0
        %2558 = vmatprep.subr.mxu0 0.0
        %2559 = vmatpush1.msra.mxu0 0.0
        %2560 = vmatprep.subr.mxu0 0.0
        %2561 = vmatpush1.msra.mxu0 0.0
        %2562 = vmatprep.subr.mxu0 0.0
        %2563 = vmatpush1.msra.mxu0 0.0
        %2564 = vmatprep.subr.mxu0 0.0
        %2565 = vmatpush1.msra.mxu0 0.0
        %2566 = vmatprep.subr.mxu0 0.0
        %2567 = vmatpush1.msra.mxu0 0.0
        %2568 = vmatprep.subr.mxu0 0.0
        %2569 = vmatpush1.msra.mxu0 0.0
        %2570 = vmatprep.subr.mxu0 0.0
        %2571 = vmatpush1.msra.mxu0 0.0
        %2572 = vmatprep.subr.mxu0 0.0
        %2573 = vmatpush1.msra.mxu0 0.0
        %2574 = vmatprep.subr.mxu0 0.0
        %2575 = vmatpush1.msra.mxu0 0.0
        %2576 = vmatprep.subr.mxu0 0.0
        %2577 = vmatpush1.msra.mxu0 0.0
        %2578 = vmatprep.subr.mxu0 0.0
        %2579 = vmatpush1.msra.mxu0 0.0
        %2580 = vmatprep.subr.mxu0 0.0
        %2581 = vmatpush1.msra.mxu0 0.0
        %2582 = vmatprep.subr.mxu0 %v465
        %2583 = vmatpush1.msra.mxu0 %v464
        %2584 = vmatprep.subr.mxu0 %v463
        %2585 = vmatpush1.msra.mxu0 %v462
        %2586 = vmatprep.subr.mxu0 0.0
        %2587 = vmatpush2.msra.mxu0 0.0
        %2588 = vmatprep.subr.mxu0 0.0
        %2589 = vmatpush2.msra.mxu0 0.0
        %2590 = vmatprep.subr.mxu0 0.0
        %2591 = vmatpush2.msra.mxu0 0.0
        %2592 = vmatprep.subr.mxu0 0.0
        %2593 = vmatpush2.msra.mxu0 0.0
        %2594 = vmatprep.subr.mxu0 0.0
        %2595 = vmatpush2.msra.mxu0 0.0
        %2596 = vmatprep.subr.mxu0 0.0
        %2597 = vmatpush2.msra.mxu0 0.0
        %2598 = vmatprep.subr.mxu0 0.0
        %2599 = vmatpush2.msra.mxu0 0.0
        %2600 = vmatprep.subr.mxu0 0.0
        %2601 = vmatpush2.msra.mxu0 0.0
        %2602 = vmatprep.subr.mxu0 0.0
        %2603 = vmatpush2.msra.mxu0 0.0
        %2604 = vmatprep.subr.mxu0 0.0
        %2605 = vmatpush2.msra.mxu0 0.0
        %2606 = vmatprep.subr.mxu0 0.0
        %2607 = vmatpush2.msra.mxu0 0.0
        %2608 = vmatprep.subr.mxu0 0.0
        %2609 = vmatpush2.msra.mxu0 0.0
        %2610 = vmatprep.subr.mxu0 0.0
        %2611 = vmatpush2.msra.mxu0 0.0
        %2612 = vmatprep.subr.mxu0 0.0
        %2613 = vmatpush2.msra.mxu0 0.0
        %2614 = vmatprep.subr.mxu0 0.0
        %2615 = vmatpush2.msra.mxu0 0.0
        %2616 = vmatprep.subr.mxu0 0.0
        %2617 = vmatpush2.msra.mxu0 0.0
        %2618 = vmatprep.mubr.f32.mxu0 0.0
        %2619 = vmatmul.mubr.f32.gmra.mxu0 %v470
        %v2620 = vpop.f32.mrf.mxu0
        %v2621 = vadd.f32 0.0, %v2620
        %v2622 = vpop.f32.mrf.mxu0
        %v2623 = vadd.f32 0.0, %v2622
        %2624 = vmatprep.mubr.f32.mxu0 0.0
        %2625 = vmatmul.mubr.f32.gmra.mxu0 %v473
        %v2626 = vpop.f32.mrf.mxu0
        %v2627 = vadd.f32 0.0, %v2626
        %v2628 = vpop.f32.mrf.mxu0
        %v2629 = vadd.f32 0.0, %v2628
        %2630 = vdwg.mxu0
        %v2631 = vld [vmem:[%s3] sm:$0xff]
        %2633 = vset.pattern.permute.xlu0 0
        %2634 = vperm.xlu0 %2633, %v2631
        %v2635 = vpop.permute.xlu0 %2634
        %v2637 = vadd.f32 %v542, %v2635
        %v2638 = vadd.f32 %v544, %v2635
        %v2639 = vadd.f32 %v619, %v2635
        %v2640 = vadd.f32 %v621, %v2635
        %v2641 = vadd.f32 %v696, %v2635
        %v2642 = vadd.f32 %v698, %v2635
        %v2643 = vadd.f32 %v773, %v2635
        %v2644 = vadd.f32 %v775, %v2635
        %v2645 = vadd.f32 %v850, %v2635
        %v2646 = vadd.f32 %v852, %v2635
        %v2647 = vadd.f32 %v927, %v2635
        %v2648 = vadd.f32 %v929, %v2635
        %v2649 = vadd.f32 %v1004, %v2635
        %v2650 = vadd.f32 %v1006, %v2635
        %v2651 = vadd.f32 %v1081, %v2635
        %v2652 = vadd.f32 %v1083, %v2635
        %v2653 = vadd.f32 %v1158, %v2635
        %v2654 = vadd.f32 %v1160, %v2635
        %v2655 = vadd.f32 %v1235, %v2635
        %v2656 = vadd.f32 %v1237, %v2635
        %v2657 = vadd.f32 %v1312, %v2635
        %v2658 = vadd.f32 %v1314, %v2635
        %v2659 = vadd.f32 %v1389, %v2635
        %v2660 = vadd.f32 %v1391, %v2635
        %v2661 = vadd.f32 %v1466, %v2635
        %v2662 = vadd.f32 %v1468, %v2635
        %v2663 = vadd.f32 %v1543, %v2635
        %v2664 = vadd.f32 %v1545, %v2635
        %v2665 = vadd.f32 %v1620, %v2635
        %v2666 = vadd.f32 %v1622, %v2635
        %v2667 = vadd.f32 %v1697, %v2635
        %v2668 = vadd.f32 %v1699, %v2635
        %v2669 = vadd.f32 %v1774, %v2635
        %v2670 = vadd.f32 %v1776, %v2635
        %v2671 = vadd.f32 %v1851, %v2635
        %v2672 = vadd.f32 %v1853, %v2635
        %v2673 = vadd.f32 %v1928, %v2635
        %v2674 = vadd.f32 %v1930, %v2635
        %v2675 = vadd.f32 %v2005, %v2635
        %v2676 = vadd.f32 %v2007, %v2635
        %v2677 = vadd.f32 %v2082, %v2635
        %v2678 = vadd.f32 %v2084, %v2635
        %v2679 = vadd.f32 %v2159, %v2635
        %v2680 = vadd.f32 %v2161, %v2635
        %v2681 = vadd.f32 %v2236, %v2635
        %v2682 = vadd.f32 %v2238, %v2635
        %v2683 = vadd.f32 %v2313, %v2635
        %v2684 = vadd.f32 %v2315, %v2635
        %v2685 = vadd.f32 %v2390, %v2635
        %v2686 = vadd.f32 %v2392, %v2635
        %v2687 = vadd.f32 %v2467, %v2635
        %v2688 = vadd.f32 %v2469, %v2635
        %v2689 = vadd.f32 %v2544, %v2635
        %v2690 = vadd.f32 %v2546, %v2635
        %v2691 = vadd.f32 %v2621, %v2635
        %v2692 = vadd.f32 %v2623, %v2635
        %v2693 = vmax.f32 %v2637, 0.0
        %v2694 = vmax.f32 %v2638, 0.0
        %v2695 = vmax.f32 %v2639, 0.0
        %v2696 = vmax.f32 %v2640, 0.0
        %v2697 = vmax.f32 %v2641, 0.0
        %v2698 = vmax.f32 %v2642, 0.0
        %v2699 = vmax.f32 %v2643, 0.0
        %v2700 = vmax.f32 %v2644, 0.0
        %v2701 = vmax.f32 %v2645, 0.0
        %v2702 = vmax.f32 %v2646, 0.0
        %v2703 = vmax.f32 %v2647, 0.0
        %v2704 = vmax.f32 %v2648, 0.0
        %v2705 = vmax.f32 %v2649, 0.0
        %v2706 = vmax.f32 %v2650, 0.0
        %v2707 = vmax.f32 %v2651, 0.0
        %v2708 = vmax.f32 %v2652, 0.0
        %v2709 = vmax.f32 %v2653, 0.0
        %v2710 = vmax.f32 %v2654, 0.0
        %v2711 = vmax.f32 %v2655, 0.0
        %v2712 = vmax.f32 %v2656, 0.0
        %v2713 = vmax.f32 %v2657, 0.0
        %v2714 = vmax.f32 %v2658, 0.0
        %v2715 = vmax.f32 %v2659, 0.0
        %v2716 = vmax.f32 %v2660, 0.0
        %v2717 = vmax.f32 %v2661, 0.0
        %v2718 = vmax.f32 %v2662, 0.0
        %v2719 = vmax.f32 %v2663, 0.0
        %v2720 = vmax.f32 %v2664, 0.0
        %v2721 = vmax.f32 %v2665, 0.0
        %v2722 = vmax.f32 %v2666, 0.0
        %v2723 = vmax.f32 %v2667, 0.0
        %v2724 = vmax.f32 %v2668, 0.0
        %v2725 = vmax.f32 %v2669, 0.0
        %v2726 = vmax.f32 %v2670, 0.0
        %v2727 = vmax.f32 %v2671, 0.0
        %v2728 = vmax.f32 %v2672, 0.0
        %v2729 = vmax.f32 %v2673, 0.0
        %v2730 = vmax.f32 %v2674, 0.0
        %v2731 = vmax.f32 %v2675, 0.0
        %v2732 = vmax.f32 %v2676, 0.0
        %v2733 = vmax.f32 %v2677, 0.0
        %v2734 = vmax.f32 %v2678, 0.0
        %v2735 = vmax.f32 %v2679, 0.0
        %v2736 = vmax.f32 %v2680, 0.0
        %v2737 = vmax.f32 %v2681, 0.0
        %v2738 = vmax.f32 %v2682, 0.0
        %v2739 = vmax.f32 %v2683, 0.0
        %v2740 = vmax.f32 %v2684, 0.0
        %v2741 = vmax.f32 %v2685, 0.0
        %v2742 = vmax.f32 %v2686, 0.0
        %v2743 = vmax.f32 %v2687, 0.0
        %v2744 = vmax.f32 %v2688, 0.0
        %v2745 = vmax.f32 %v2689, 0.0
        %v2746 = vmax.f32 %v2690, 0.0
        %v2747 = vmax.f32 %v2691, 0.0
        %v2748 = vmax.f32 %v2692, 0.0
        %v2749 = vld [vmem:[%s4] sm:$0xff]
        %2751 = vset.pattern.permute.xlu0 0
        %2752 = vperm.xlu0 %2751, %v2749
        %v2753 = vpop.permute.xlu0 %2752
        %v2755 = vmul.f32 %v2693, %v2753
        %v2756 = vmul.f32 %v2694, %v2753
        %v2757 = vmul.f32 %v2695, %v2753
        %v2758 = vmul.f32 %v2696, %v2753
        %v2759 = vmul.f32 %v2697, %v2753
        %v2760 = vmul.f32 %v2698, %v2753
        %v2761 = vmul.f32 %v2699, %v2753
        %v2762 = vmul.f32 %v2700, %v2753
        %v2763 = vmul.f32 %v2701, %v2753
        %v2764 = vmul.f32 %v2702, %v2753
        %v2765 = vmul.f32 %v2703, %v2753
        %v2766 = vmul.f32 %v2704, %v2753
        %v2767 = vmul.f32 %v2705, %v2753
        %v2768 = vmul.f32 %v2706, %v2753
        %v2769 = vmul.f32 %v2707, %v2753
        %v2770 = vmul.f32 %v2708, %v2753
        %v2771 = vmul.f32 %v2709, %v2753
        %v2772 = vmul.f32 %v2710, %v2753
        %v2773 = vmul.f32 %v2711, %v2753
        %v2774 = vmul.f32 %v2712, %v2753
        %v2775 = vmul.f32 %v2713, %v2753
        %v2776 = vmul.f32 %v2714, %v2753
        %v2777 = vmul.f32 %v2715, %v2753
        %v2778 = vmul.f32 %v2716, %v2753
        %v2779 = vmul.f32 %v2717, %v2753
        %v2780 = vmul.f32 %v2718, %v2753
        %v2781 = vmul.f32 %v2719, %v2753
        %v2782 = vmul.f32 %v2720, %v2753
        %v2783 = vmul.f32 %v2721, %v2753
        %v2784 = vmul.f32 %v2722, %v2753
        %v2785 = vmul.f32 %v2723, %v2753
        %v2786 = vmul.f32 %v2724, %v2753
        %v2787 = vmul.f32 %v2725, %v2753
        %v2788 = vmul.f32 %v2726, %v2753
        %v2789 = vmul.f32 %v2727, %v2753
        %v2790 = vmul.f32 %v2728, %v2753
        %v2791 = vmul.f32 %v2729, %v2753
        %v2792 = vmul.f32 %v2730, %v2753
        %v2793 = vmul.f32 %v2731, %v2753
        %v2794 = vmul.f32 %v2732, %v2753
        %v2795 = vmul.f32 %v2733, %v2753
        %v2796 = vmul.f32 %v2734, %v2753
        %v2797 = vmul.f32 %v2735, %v2753
        %v2798 = vmul.f32 %v2736, %v2753
        %v2799 = vmul.f32 %v2737, %v2753
        %v2800 = vmul.f32 %v2738, %v2753
        %v2801 = vmul.f32 %v2739, %v2753
        %v2802 = vmul.f32 %v2740, %v2753
        %v2803 = vmul.f32 %v2741, %v2753
        %v2804 = vmul.f32 %v2742, %v2753
        %v2805 = vmul.f32 %v2743, %v2753
        %v2806 = vmul.f32 %v2744, %v2753
        %v2807 = vmul.f32 %v2745, %v2753
        %v2808 = vmul.f32 %v2746, %v2753
        %v2809 = vmul.f32 %v2747, %v2753
        %v2810 = vmul.f32 %v2748, %v2753
        %v2811 = vrot.slane %v2755, 4
        %v2812 = vadd.f32 %v2755, %v2811
        %v2813 = vrot.slane %v2812, 2
        %v2814 = vadd.f32 %v2812, %v2813
        %v2815 = vrot.slane %v2814, 1
        %v2816 = vadd.f32 %v2814, %v2815
        %v2817 = vrot.slane %v2756, 4
        %v2818 = vadd.f32 %v2756, %v2817
        %v2819 = vrot.slane %v2818, 2
        %v2820 = vadd.f32 %v2818, %v2819
        %v2821 = vrot.slane %v2820, 1
        %v2822 = vadd.f32 %v2820, %v2821
        %v2823 = vrot.slane %v2757, 4
        %v2824 = vadd.f32 %v2757, %v2823
        %v2825 = vrot.slane %v2824, 2
        %v2826 = vadd.f32 %v2824, %v2825
        %v2827 = vrot.slane %v2826, 1
        %v2828 = vadd.f32 %v2826, %v2827
        %v2829 = vrot.slane %v2758, 4
        %v2830 = vadd.f32 %v2758, %v2829
        %v2831 = vrot.slane %v2830, 2
        %v2832 = vadd.f32 %v2830, %v2831
        %v2833 = vrot.slane %v2832, 1
        %v2834 = vadd.f32 %v2832, %v2833
        %v2835 = vrot.slane %v2759, 4
        %v2836 = vadd.f32 %v2759, %v2835
        %v2837 = vrot.slane %v2836, 2
        %v2838 = vadd.f32 %v2836, %v2837
        %v2839 = vrot.slane %v2838, 1
        %v2840 = vadd.f32 %v2838, %v2839
        %v2841 = vrot.slane %v2760, 4
        %v2842 = vadd.f32 %v2760, %v2841
        %v2843 = vrot.slane %v2842, 2
        %v2844 = vadd.f32 %v2842, %v2843
        %v2845 = vrot.slane %v2844, 1
        %v2846 = vadd.f32 %v2844, %v2845
        %v2847 = vrot.slane %v2761, 4
        %v2848 = vadd.f32 %v2761, %v2847
        %v2849 = vrot.slane %v2848, 2
        %v2850 = vadd.f32 %v2848, %v2849
        %v2851 = vrot.slane %v2850, 1
        %v2852 = vadd.f32 %v2850, %v2851
        %v2853 = vrot.slane %v2762, 4
        %v2854 = vadd.f32 %v2762, %v2853
        %v2855 = vrot.slane %v2854, 2
        %v2856 = vadd.f32 %v2854, %v2855
        %v2857 = vrot.slane %v2856, 1
        %v2858 = vadd.f32 %v2856, %v2857
        %v2859 = vrot.slane %v2763, 4
        %v2860 = vadd.f32 %v2763, %v2859
        %v2861 = vrot.slane %v2860, 2
        %v2862 = vadd.f32 %v2860, %v2861
        %v2863 = vrot.slane %v2862, 1
        %v2864 = vadd.f32 %v2862, %v2863
        %v2865 = vrot.slane %v2764, 4
        %v2866 = vadd.f32 %v2764, %v2865
        %v2867 = vrot.slane %v2866, 2
        %v2868 = vadd.f32 %v2866, %v2867
        %v2869 = vrot.slane %v2868, 1
        %v2870 = vadd.f32 %v2868, %v2869
        %v2871 = vrot.slane %v2765, 4
        %v2872 = vadd.f32 %v2765, %v2871
        %v2873 = vrot.slane %v2872, 2
        %v2874 = vadd.f32 %v2872, %v2873
        %v2875 = vrot.slane %v2874, 1
        %v2876 = vadd.f32 %v2874, %v2875
        %v2877 = vrot.slane %v2766, 4
        %v2878 = vadd.f32 %v2766, %v2877
        %v2879 = vrot.slane %v2878, 2
        %v2880 = vadd.f32 %v2878, %v2879
        %v2881 = vrot.slane %v2880, 1
        %v2882 = vadd.f32 %v2880, %v2881
        %v2883 = vrot.slane %v2767, 4
        %v2884 = vadd.f32 %v2767, %v2883
        %v2885 = vrot.slane %v2884, 2
        %v2886 = vadd.f32 %v2884, %v2885
        %v2887 = vrot.slane %v2886, 1
        %v2888 = vadd.f32 %v2886, %v2887
        %v2889 = vrot.slane %v2768, 4
        %v2890 = vadd.f32 %v2768, %v2889
        %v2891 = vrot.slane %v2890, 2
        %v2892 = vadd.f32 %v2890, %v2891
        %v2893 = vrot.slane %v2892, 1
        %v2894 = vadd.f32 %v2892, %v2893
        %v2895 = vrot.slane %v2769, 4
        %v2896 = vadd.f32 %v2769, %v2895
        %v2897 = vrot.slane %v2896, 2
        %v2898 = vadd.f32 %v2896, %v2897
        %v2899 = vrot.slane %v2898, 1
        %v2900 = vadd.f32 %v2898, %v2899
        %v2901 = vrot.slane %v2770, 4
        %v2902 = vadd.f32 %v2770, %v2901
        %v2903 = vrot.slane %v2902, 2
        %v2904 = vadd.f32 %v2902, %v2903
        %v2905 = vrot.slane %v2904, 1
        %v2906 = vadd.f32 %v2904, %v2905
        %v2907 = vrot.slane %v2771, 4
        %v2908 = vadd.f32 %v2771, %v2907
        %v2909 = vrot.slane %v2908, 2
        %v2910 = vadd.f32 %v2908, %v2909
        %v2911 = vrot.slane %v2910, 1
        %v2912 = vadd.f32 %v2910, %v2911
        %v2913 = vrot.slane %v2772, 4
        %v2914 = vadd.f32 %v2772, %v2913
        %v2915 = vrot.slane %v2914, 2
        %v2916 = vadd.f32 %v2914, %v2915
        %v2917 = vrot.slane %v2916, 1
        %v2918 = vadd.f32 %v2916, %v2917
        %v2919 = vrot.slane %v2773, 4
        %v2920 = vadd.f32 %v2773, %v2919
        %v2921 = vrot.slane %v2920, 2
        %v2922 = vadd.f32 %v2920, %v2921
        %v2923 = vrot.slane %v2922, 1
        %v2924 = vadd.f32 %v2922, %v2923
        %v2925 = vrot.slane %v2774, 4
        %v2926 = vadd.f32 %v2774, %v2925
        %v2927 = vrot.slane %v2926, 2
        %v2928 = vadd.f32 %v2926, %v2927
        %v2929 = vrot.slane %v2928, 1
        %v2930 = vadd.f32 %v2928, %v2929
        %v2931 = vrot.slane %v2775, 4
        %v2932 = vadd.f32 %v2775, %v2931
        %v2933 = vrot.slane %v2932, 2
        %v2934 = vadd.f32 %v2932, %v2933
        %v2935 = vrot.slane %v2934, 1
        %v2936 = vadd.f32 %v2934, %v2935
        %v2937 = vrot.slane %v2776, 4
        %v2938 = vadd.f32 %v2776, %v2937
        %v2939 = vrot.slane %v2938, 2
        %v2940 = vadd.f32 %v2938, %v2939
        %v2941 = vrot.slane %v2940, 1
        %v2942 = vadd.f32 %v2940, %v2941
        %v2943 = vrot.slane %v2777, 4
        %v2944 = vadd.f32 %v2777, %v2943
        %v2945 = vrot.slane %v2944, 2
        %v2946 = vadd.f32 %v2944, %v2945
        %v2947 = vrot.slane %v2946, 1
        %v2948 = vadd.f32 %v2946, %v2947
        %v2949 = vrot.slane %v2778, 4
        %v2950 = vadd.f32 %v2778, %v2949
        %v2951 = vrot.slane %v2950, 2
        %v2952 = vadd.f32 %v2950, %v2951
        %v2953 = vrot.slane %v2952, 1
        %v2954 = vadd.f32 %v2952, %v2953
        %v2955 = vrot.slane %v2779, 4
        %v2956 = vadd.f32 %v2779, %v2955
        %v2957 = vrot.slane %v2956, 2
        %v2958 = vadd.f32 %v2956, %v2957
        %v2959 = vrot.slane %v2958, 1
        %v2960 = vadd.f32 %v2958, %v2959
        %v2961 = vrot.slane %v2780, 4
        %v2962 = vadd.f32 %v2780, %v2961
        %v2963 = vrot.slane %v2962, 2
        %v2964 = vadd.f32 %v2962, %v2963
        %v2965 = vrot.slane %v2964, 1
        %v2966 = vadd.f32 %v2964, %v2965
        %v2967 = vrot.slane %v2781, 4
        %v2968 = vadd.f32 %v2781, %v2967
        %v2969 = vrot.slane %v2968, 2
        %v2970 = vadd.f32 %v2968, %v2969
        %v2971 = vrot.slane %v2970, 1
        %v2972 = vadd.f32 %v2970, %v2971
        %v2973 = vrot.slane %v2782, 4
        %v2974 = vadd.f32 %v2782, %v2973
        %v2975 = vrot.slane %v2974, 2
        %v2976 = vadd.f32 %v2974, %v2975
        %v2977 = vrot.slane %v2976, 1
        %v2978 = vadd.f32 %v2976, %v2977
        %v2979 = vrot.slane %v2783, 4
        %v2980 = vadd.f32 %v2783, %v2979
        %v2981 = vrot.slane %v2980, 2
        %v2982 = vadd.f32 %v2980, %v2981
        %v2983 = vrot.slane %v2982, 1
        %v2984 = vadd.f32 %v2982, %v2983
        %v2985 = vrot.slane %v2784, 4
        %v2986 = vadd.f32 %v2784, %v2985
        %v2987 = vrot.slane %v2986, 2
        %v2988 = vadd.f32 %v2986, %v2987
        %v2989 = vrot.slane %v2988, 1
        %v2990 = vadd.f32 %v2988, %v2989
        %v2991 = vrot.slane %v2785, 4
        %v2992 = vadd.f32 %v2785, %v2991
        %v2993 = vrot.slane %v2992, 2
        %v2994 = vadd.f32 %v2992, %v2993
        %v2995 = vrot.slane %v2994, 1
        %v2996 = vadd.f32 %v2994, %v2995
        %v2997 = vrot.slane %v2786, 4
        %v2998 = vadd.f32 %v2786, %v2997
        %v2999 = vrot.slane %v2998, 2
        %v3000 = vadd.f32 %v2998, %v2999
        %v3001 = vrot.slane %v3000, 1
        %v3002 = vadd.f32 %v3000, %v3001
        %v3003 = vrot.slane %v2787, 4
        %v3004 = vadd.f32 %v2787, %v3003
        %v3005 = vrot.slane %v3004, 2
        %v3006 = vadd.f32 %v3004, %v3005
        %v3007 = vrot.slane %v3006, 1
        %v3008 = vadd.f32 %v3006, %v3007
        %v3009 = vrot.slane %v2788, 4
        %v3010 = vadd.f32 %v2788, %v3009
        %v3011 = vrot.slane %v3010, 2
        %v3012 = vadd.f32 %v3010, %v3011
        %v3013 = vrot.slane %v3012, 1
        %v3014 = vadd.f32 %v3012, %v3013
        %v3015 = vrot.slane %v2789, 4
        %v3016 = vadd.f32 %v2789, %v3015
        %v3017 = vrot.slane %v3016, 2
        %v3018 = vadd.f32 %v3016, %v3017
        %v3019 = vrot.slane %v3018, 1
        %v3020 = vadd.f32 %v3018, %v3019
        %v3021 = vrot.slane %v2790, 4
        %v3022 = vadd.f32 %v2790, %v3021
        %v3023 = vrot.slane %v3022, 2
        %v3024 = vadd.f32 %v3022, %v3023
        %v3025 = vrot.slane %v3024, 1
        %v3026 = vadd.f32 %v3024, %v3025
        %v3027 = vrot.slane %v2791, 4
        %v3028 = vadd.f32 %v2791, %v3027
        %v3029 = vrot.slane %v3028, 2
        %v3030 = vadd.f32 %v3028, %v3029
        %v3031 = vrot.slane %v3030, 1
        %v3032 = vadd.f32 %v3030, %v3031
        %v3033 = vrot.slane %v2792, 4
        %v3034 = vadd.f32 %v2792, %v3033
        %v3035 = vrot.slane %v3034, 2
        %v3036 = vadd.f32 %v3034, %v3035
        %v3037 = vrot.slane %v3036, 1
        %v3038 = vadd.f32 %v3036, %v3037
        %v3039 = vrot.slane %v2793, 4
        %v3040 = vadd.f32 %v2793, %v3039
        %v3041 = vrot.slane %v3040, 2
        %v3042 = vadd.f32 %v3040, %v3041
        %v3043 = vrot.slane %v3042, 1
        %v3044 = vadd.f32 %v3042, %v3043
        %v3045 = vrot.slane %v2794, 4
        %v3046 = vadd.f32 %v2794, %v3045
        %v3047 = vrot.slane %v3046, 2
        %v3048 = vadd.f32 %v3046, %v3047
        %v3049 = vrot.slane %v3048, 1
        %v3050 = vadd.f32 %v3048, %v3049
        %v3051 = vrot.slane %v2795, 4
        %v3052 = vadd.f32 %v2795, %v3051
        %v3053 = vrot.slane %v3052, 2
        %v3054 = vadd.f32 %v3052, %v3053
        %v3055 = vrot.slane %v3054, 1
        %v3056 = vadd.f32 %v3054, %v3055
        %v3057 = vrot.slane %v2796, 4
        %v3058 = vadd.f32 %v2796, %v3057
        %v3059 = vrot.slane %v3058, 2
        %v3060 = vadd.f32 %v3058, %v3059
        %v3061 = vrot.slane %v3060, 1
        %v3062 = vadd.f32 %v3060, %v3061
        %v3063 = vrot.slane %v2797, 4
        %v3064 = vadd.f32 %v2797, %v3063
        %v3065 = vrot.slane %v3064, 2
        %v3066 = vadd.f32 %v3064, %v3065
        %v3067 = vrot.slane %v3066, 1
        %v3068 = vadd.f32 %v3066, %v3067
        %v3069 = vrot.slane %v2798, 4
        %v3070 = vadd.f32 %v2798, %v3069
        %v3071 = vrot.slane %v3070, 2
        %v3072 = vadd.f32 %v3070, %v3071
        %v3073 = vrot.slane %v3072, 1
        %v3074 = vadd.f32 %v3072, %v3073
        %v3075 = vrot.slane %v2799, 4
        %v3076 = vadd.f32 %v2799, %v3075
        %v3077 = vrot.slane %v3076, 2
        %v3078 = vadd.f32 %v3076, %v3077
        %v3079 = vrot.slane %v3078, 1
        %v3080 = vadd.f32 %v3078, %v3079
        %v3081 = vrot.slane %v2800, 4
        %v3082 = vadd.f32 %v2800, %v3081
        %v3083 = vrot.slane %v3082, 2
        %v3084 = vadd.f32 %v3082, %v3083
        %v3085 = vrot.slane %v3084, 1
        %v3086 = vadd.f32 %v3084, %v3085
        %v3087 = vrot.slane %v2801, 4
        %v3088 = vadd.f32 %v2801, %v3087
        %v3089 = vrot.slane %v3088, 2
        %v3090 = vadd.f32 %v3088, %v3089
        %v3091 = vrot.slane %v3090, 1
        %v3092 = vadd.f32 %v3090, %v3091
        %v3093 = vrot.slane %v2802, 4
        %v3094 = vadd.f32 %v2802, %v3093
        %v3095 = vrot.slane %v3094, 2
        %v3096 = vadd.f32 %v3094, %v3095
        %v3097 = vrot.slane %v3096, 1
        %v3098 = vadd.f32 %v3096, %v3097
        %v3099 = vrot.slane %v2803, 4
        %v3100 = vadd.f32 %v2803, %v3099
        %v3101 = vrot.slane %v3100, 2
        %v3102 = vadd.f32 %v3100, %v3101
        %v3103 = vrot.slane %v3102, 1
        %v3104 = vadd.f32 %v3102, %v3103
        %v3105 = vrot.slane %v2804, 4
        %v3106 = vadd.f32 %v2804, %v3105
        %v3107 = vrot.slane %v3106, 2
        %v3108 = vadd.f32 %v3106, %v3107
        %v3109 = vrot.slane %v3108, 1
        %v3110 = vadd.f32 %v3108, %v3109
        %v3111 = vrot.slane %v2805, 4
        %v3112 = vadd.f32 %v2805, %v3111
        %v3113 = vrot.slane %v3112, 2
        %v3114 = vadd.f32 %v3112, %v3113
        %v3115 = vrot.slane %v3114, 1
        %v3116 = vadd.f32 %v3114, %v3115
        %v3117 = vrot.slane %v2806, 4
        %v3118 = vadd.f32 %v2806, %v3117
        %v3119 = vrot.slane %v3118, 2
        %v3120 = vadd.f32 %v3118, %v3119
        %v3121 = vrot.slane %v3120, 1
        %v3122 = vadd.f32 %v3120, %v3121
        %v3123 = vrot.slane %v2807, 4
        %v3124 = vadd.f32 %v2807, %v3123
        %v3125 = vrot.slane %v3124, 2
        %v3126 = vadd.f32 %v3124, %v3125
        %v3127 = vrot.slane %v3126, 1
        %v3128 = vadd.f32 %v3126, %v3127
        %v3129 = vrot.slane %v2808, 4
        %v3130 = vadd.f32 %v2808, %v3129
        %v3131 = vrot.slane %v3130, 2
        %v3132 = vadd.f32 %v3130, %v3131
        %v3133 = vrot.slane %v3132, 1
        %v3134 = vadd.f32 %v3132, %v3133
        %v3135 = vrot.slane %v2809, 4
        %v3136 = vadd.f32 %v2809, %v3135
        %v3137 = vrot.slane %v3136, 2
        %v3138 = vadd.f32 %v3136, %v3137
        %v3139 = vrot.slane %v3138, 1
        %v3140 = vadd.f32 %v3138, %v3139
        %v3141 = vrot.slane %v2810, 4
        %v3142 = vadd.f32 %v2810, %v3141
        %v3143 = vrot.slane %v3142, 2
        %v3144 = vadd.f32 %v3142, %v3143
        %v3145 = vrot.slane %v3144, 1
        %v3146 = vadd.f32 %v3144, %v3145
        %v3147 = vld [vmem:[#allocation2] sm:$0x1]
        %3149 = vset.pattern.permute.xlu0 0
        %3150 = vperm.xlu0 %3149, %v3147
        %v3151 = vpop.permute.xlu0 %3150
        %v3153 = vlaneseq
        %v3154 = vshrl.u32 %v3153, 7
        %v3155 = vsub.s32 0, %v3154
        %v3156 = vrot.slane %v3151, %v3155
        %v3157 = vadd.f32 %v2816, %v3156
        %v3158 = vadd.f32 %v2822, %v3156
        %v3159 = vadd.f32 %v2828, %v3156
        %v3160 = vadd.f32 %v2834, %v3156
        %v3161 = vadd.f32 %v2840, %v3156
        %v3162 = vadd.f32 %v2846, %v3156
        %v3163 = vadd.f32 %v2852, %v3156
        %v3164 = vadd.f32 %v2858, %v3156
        %v3165 = vadd.f32 %v2864, %v3156
        %v3166 = vadd.f32 %v2870, %v3156
        %v3167 = vadd.f32 %v2876, %v3156
        %v3168 = vadd.f32 %v2882, %v3156
        %v3169 = vadd.f32 %v2888, %v3156
        %v3170 = vadd.f32 %v2894, %v3156
        %v3171 = vadd.f32 %v2900, %v3156
        %v3172 = vadd.f32 %v2906, %v3156
        %v3173 = vadd.f32 %v2912, %v3156
        %v3174 = vadd.f32 %v2918, %v3156
        %v3175 = vadd.f32 %v2924, %v3156
        %v3176 = vadd.f32 %v2930, %v3156
        %v3177 = vadd.f32 %v2936, %v3156
        %v3178 = vadd.f32 %v2942, %v3156
        %v3179 = vadd.f32 %v2948, %v3156
        %v3180 = vadd.f32 %v2954, %v3156
        %v3181 = vadd.f32 %v2960, %v3156
        %v3182 = vadd.f32 %v2966, %v3156
        %v3183 = vadd.f32 %v2972, %v3156
        %v3184 = vadd.f32 %v2978, %v3156
        %v3185 = vadd.f32 %v2984, %v3156
        %v3186 = vadd.f32 %v2990, %v3156
        %v3187 = vadd.f32 %v2996, %v3156
        %v3188 = vadd.f32 %v3002, %v3156
        %v3189 = vadd.f32 %v3008, %v3156
        %v3190 = vadd.f32 %v3014, %v3156
        %v3191 = vadd.f32 %v3020, %v3156
        %v3192 = vadd.f32 %v3026, %v3156
        %v3193 = vadd.f32 %v3032, %v3156
        %v3194 = vadd.f32 %v3038, %v3156
        %v3195 = vadd.f32 %v3044, %v3156
        %v3196 = vadd.f32 %v3050, %v3156
        %v3197 = vadd.f32 %v3056, %v3156
        %v3198 = vadd.f32 %v3062, %v3156
        %v3199 = vadd.f32 %v3068, %v3156
        %v3200 = vadd.f32 %v3074, %v3156
        %v3201 = vadd.f32 %v3080, %v3156
        %v3202 = vadd.f32 %v3086, %v3156
        %v3203 = vadd.f32 %v3092, %v3156
        %v3204 = vadd.f32 %v3098, %v3156
        %v3205 = vadd.f32 %v3104, %v3156
        %v3206 = vadd.f32 %v3110, %v3156
        %v3207 = vadd.f32 %v3116, %v3156
        %v3208 = vadd.f32 %v3122, %v3156
        %v3209 = vadd.f32 %v3128, %v3156
        %v3210 = vadd.f32 %v3134, %v3156
        %v3211 = vadd.f32 %v3140, %v3156
        %v3212 = vadd.f32 %v3146, %v3156
        %v3213 = vmax.f32 %v3157, %v3159
        %v3214 = vmax.f32 %v3158, %v3160
        %v3215 = vmax.f32 %v3213, %v3161
        %v3216 = vmax.f32 %v3214, %v3162
        %v3217 = vmax.f32 %v3215, %v3163
        %v3218 = vmax.f32 %v3216, %v3164
        %v3219 = vmax.f32 %v3217, %v3165
        %v3220 = vmax.f32 %v3218, %v3166
        %v3221 = vmax.f32 %v3219, %v3167
        %v3222 = vmax.f32 %v3220, %v3168
        %v3223 = vmax.f32 %v3221, %v3169
        %v3224 = vmax.f32 %v3222, %v3170
        %v3225 = vmax.f32 %v3223, %v3171
        %v3226 = vmax.f32 %v3224, %v3172
        %v3227 = vmax.f32 %v3225, %v3173
        %v3228 = vmax.f32 %v3226, %v3174
        %v3229 = vmax.f32 %v3227, %v3175
        %v3230 = vmax.f32 %v3228, %v3176
        %v3231 = vmax.f32 %v3229, %v3177
        %v3232 = vmax.f32 %v3230, %v3178
        %v3233 = vmax.f32 %v3231, %v3179
        %v3234 = vmax.f32 %v3232, %v3180
        %v3235 = vmax.f32 %v3233, %v3181
        %v3236 = vmax.f32 %v3234, %v3182
        %v3237 = vmax.f32 %v3235, %v3183
        %v3238 = vmax.f32 %v3236, %v3184
        %v3239 = vmax.f32 %v3237, %v3185
        %v3240 = vmax.f32 %v3238, %v3186
        %v3241 = vmax.f32 %v3239, %v3187
        %v3242 = vmax.f32 %v3240, %v3188
        %v3243 = vmax.f32 %v3241, %v3189
        %v3244 = vmax.f32 %v3242, %v3190
        %v3245 = vmax.f32 %v3243, %v3191
        %v3246 = vmax.f32 %v3244, %v3192
        %v3247 = vmax.f32 %v3245, %v3193
        %v3248 = vmax.f32 %v3246, %v3194
        %v3249 = vmax.f32 %v3247, %v3195
        %v3250 = vmax.f32 %v3248, %v3196
        %v3251 = vmax.f32 %v3249, %v3197
        %v3252 = vmax.f32 %v3250, %v3198
        %v3253 = vmax.f32 %v3251, %v3199
        %v3254 = vmax.f32 %v3252, %v3200
        %v3255 = vmax.f32 %v3253, %v3201
        %v3256 = vmax.f32 %v3254, %v3202
        %v3257 = vmax.f32 %v3255, %v3203
        %v3258 = vmax.f32 %v3256, %v3204
        %v3259 = vmax.f32 %v3257, %v3205
        %v3260 = vmax.f32 %v3258, %v3206
        %v3261 = vmax.f32 %v3259, %v3207
        %v3262 = vmax.f32 %v3260, %v3208
        %v3263 = vmax.f32 %v3261, %v3209
        %v3264 = vmax.f32 %v3262, %v3210
        %v3265 = vmax.f32 %v3263, %v3211
        %v3266 = vmax.f32 %v3264, %v3212
        %v3267 = vsub.f32 %v3157, %v3265
        %v3268 = vsub.f32 %v3158, %v3266
        %v3269 = vmul.f32 %v3267, 1.442695
        %v3270 = vpow.pop %v3269
        %v3271 = vmul.f32 %v3268, 1.442695
        %v3272 = vpow.pop %v3271
        %v3273 = vadd.f32 %v3270, 0.0
        %v3274 = vadd.f32 %v3272, 0.0
        %v3275 = vmul.f32 %v3270, %v548
        %v3276 = vmul.f32 %v3272, %v550
        %v3277 = vadd.f32 %v3275, 0.0
        %v3278 = vadd.f32 %v3276, 0.0
        %v3279 = vsub.f32 %v3159, %v3265
        %v3280 = vsub.f32 %v3160, %v3266
        %v3281 = vmul.f32 %v3279, 1.442695
        %v3282 = vpow.pop %v3281
        %v3283 = vmul.f32 %v3280, 1.442695
        %v3284 = vpow.pop %v3283
        %v3285 = vadd.f32 %v3273, %v3282
        %v3286 = vadd.f32 %v3274, %v3284
        %v3287 = vmul.f32 %v3282, %v625
        %v3288 = vmul.f32 %v3284, %v627
        %v3289 = vadd.f32 %v3277, %v3287
        %v3290 = vadd.f32 %v3278, %v3288
        %v3291 = vsub.f32 %v3161, %v3265
        %v3292 = vsub.f32 %v3162, %v3266
        %v3293 = vmul.f32 %v3291, 1.442695
        %v3294 = vpow.pop %v3293
        %v3295 = vmul.f32 %v3292, 1.442695
        %v3296 = vpow.pop %v3295
        %v3297 = vadd.f32 %v3285, %v3294
        %v3298 = vadd.f32 %v3286, %v3296
        %v3299 = vmul.f32 %v3294, %v702
        %v3300 = vmul.f32 %v3296, %v704
        %v3301 = vadd.f32 %v3289, %v3299
        %v3302 = vadd.f32 %v3290, %v3300
        %v3303 = vsub.f32 %v3163, %v3265
        %v3304 = vsub.f32 %v3164, %v3266
        %v3305 = vmul.f32 %v3303, 1.442695
        %v3306 = vpow.pop %v3305
        %v3307 = vmul.f32 %v3304, 1.442695
        %v3308 = vpow.pop %v3307
        %v3309 = vadd.f32 %v3297, %v3306
        %v3310 = vadd.f32 %v3298, %v3308
        %v3311 = vmul.f32 %v3306, %v779
        %v3312 = vmul.f32 %v3308, %v781
        %v3313 = vadd.f32 %v3301, %v3311
        %v3314 = vadd.f32 %v3302, %v3312
        %v3315 = vsub.f32 %v3165, %v3265
        %v3316 = vsub.f32 %v3166, %v3266
        %v3317 = vmul.f32 %v3315, 1.442695
        %v3318 = vpow.pop %v3317
        %v3319 = vmul.f32 %v3316, 1.442695
        %v3320 = vpow.pop %v3319
        %v3321 = vadd.f32 %v3309, %v3318
        %v3322 = vadd.f32 %v3310, %v3320
        %v3323 = vmul.f32 %v3318, %v856
        %v3324 = vmul.f32 %v3320, %v858
        %v3325 = vadd.f32 %v3313, %v3323
        %v3326 = vadd.f32 %v3314, %v3324
        %v3327 = vsub.f32 %v3167, %v3265
        %v3328 = vsub.f32 %v3168, %v3266
        %v3329 = vmul.f32 %v3327, 1.442695
        %v3330 = vpow.pop %v3329
        %v3331 = vmul.f32 %v3328, 1.442695
        %v3332 = vpow.pop %v3331
        %v3333 = vadd.f32 %v3321, %v3330
        %v3334 = vadd.f32 %v3322, %v3332
        %v3335 = vmul.f32 %v3330, %v933
        %v3336 = vmul.f32 %v3332, %v935
        %v3337 = vadd.f32 %v3325, %v3335
        %v3338 = vadd.f32 %v3326, %v3336
        %v3339 = vsub.f32 %v3169, %v3265
        %v3340 = vsub.f32 %v3170, %v3266
        %v3341 = vmul.f32 %v3339, 1.442695
        %v3342 = vpow.pop %v3341
        %v3343 = vmul.f32 %v3340, 1.442695
        %v3344 = vpow.pop %v3343
        %v3345 = vadd.f32 %v3333, %v3342
        %v3346 = vadd.f32 %v3334, %v3344
        %v3347 = vmul.f32 %v3342, %v1010
        %v3348 = vmul.f32 %v3344, %v1012
        %v3349 = vadd.f32 %v3337, %v3347
        %v3350 = vadd.f32 %v3338, %v3348
        %v3351 = vsub.f32 %v3171, %v3265
        %v3352 = vsub.f32 %v3172, %v3266
        %v3353 = vmul.f32 %v3351, 1.442695
        %v3354 = vpow.pop %v3353
        %v3355 = vmul.f32 %v3352, 1.442695
        %v3356 = vpow.pop %v3355
        %v3357 = vadd.f32 %v3345, %v3354
        %v3358 = vadd.f32 %v3346, %v3356
        %v3359 = vmul.f32 %v3354, %v1087
        %v3360 = vmul.f32 %v3356, %v1089
        %v3361 = vadd.f32 %v3349, %v3359
        %v3362 = vadd.f32 %v3350, %v3360
        %v3363 = vsub.f32 %v3173, %v3265
        %v3364 = vsub.f32 %v3174, %v3266
        %v3365 = vmul.f32 %v3363, 1.442695
        %v3366 = vpow.pop %v3365
        %v3367 = vmul.f32 %v3364, 1.442695
        %v3368 = vpow.pop %v3367
        %v3369 = vadd.f32 %v3357, %v3366
        %v3370 = vadd.f32 %v3358, %v3368
        %v3371 = vmul.f32 %v3366, %v1164
        %v3372 = vmul.f32 %v3368, %v1166
        %v3373 = vadd.f32 %v3361, %v3371
        %v3374 = vadd.f32 %v3362, %v3372
        %v3375 = vsub.f32 %v3175, %v3265
        %v3376 = vsub.f32 %v3176, %v3266
        %v3377 = vmul.f32 %v3375, 1.442695
        %v3378 = vpow.pop %v3377
        %v3379 = vmul.f32 %v3376, 1.442695
        %v3380 = vpow.pop %v3379
        %v3381 = vadd.f32 %v3369, %v3378
        %v3382 = vadd.f32 %v3370, %v3380
        %v3383 = vmul.f32 %v3378, %v1241
        %v3384 = vmul.f32 %v3380, %v1243
        %v3385 = vadd.f32 %v3373, %v3383
        %v3386 = vadd.f32 %v3374, %v3384
        %v3387 = vsub.f32 %v3177, %v3265
        %v3388 = vsub.f32 %v3178, %v3266
        %v3389 = vmul.f32 %v3387, 1.442695
        %v3390 = vpow.pop %v3389
        %v3391 = vmul.f32 %v3388, 1.442695
        %v3392 = vpow.pop %v3391
        %v3393 = vadd.f32 %v3381, %v3390
        %v3394 = vadd.f32 %v3382, %v3392
        %v3395 = vmul.f32 %v3390, %v1318
        %v3396 = vmul.f32 %v3392, %v1320
        %v3397 = vadd.f32 %v3385, %v3395
        %v3398 = vadd.f32 %v3386, %v3396
        %v3399 = vsub.f32 %v3179, %v3265
        %v3400 = vsub.f32 %v3180, %v3266
        %v3401 = vmul.f32 %v3399, 1.442695
        %v3402 = vpow.pop %v3401
        %v3403 = vmul.f32 %v3400, 1.442695
        %v3404 = vpow.pop %v3403
        %v3405 = vadd.f32 %v3393, %v3402
        %v3406 = vadd.f32 %v3394, %v3404
        %v3407 = vmul.f32 %v3402, %v1395
        %v3408 = vmul.f32 %v3404, %v1397
        %v3409 = vadd.f32 %v3397, %v3407
        %v3410 = vadd.f32 %v3398, %v3408
        %v3411 = vsub.f32 %v3181, %v3265
        %v3412 = vsub.f32 %v3182, %v3266
        %v3413 = vmul.f32 %v3411, 1.442695
        %v3414 = vpow.pop %v3413
        %v3415 = vmul.f32 %v3412, 1.442695
        %v3416 = vpow.pop %v3415
        %v3417 = vadd.f32 %v3405, %v3414
        %v3418 = vadd.f32 %v3406, %v3416
        %v3419 = vmul.f32 %v3414, %v1472
        %v3420 = vmul.f32 %v3416, %v1474
        %v3421 = vadd.f32 %v3409, %v3419
        %v3422 = vadd.f32 %v3410, %v3420
        %v3423 = vsub.f32 %v3183, %v3265
        %v3424 = vsub.f32 %v3184, %v3266
        %v3425 = vmul.f32 %v3423, 1.442695
        %v3426 = vpow.pop %v3425
        %v3427 = vmul.f32 %v3424, 1.442695
        %v3428 = vpow.pop %v3427
        %v3429 = vadd.f32 %v3417, %v3426
        %v3430 = vadd.f32 %v3418, %v3428
        %v3431 = vmul.f32 %v3426, %v1549
        %v3432 = vmul.f32 %v3428, %v1551
        %v3433 = vadd.f32 %v3421, %v3431
        %v3434 = vadd.f32 %v3422, %v3432
        %v3435 = vsub.f32 %v3185, %v3265
        %v3436 = vsub.f32 %v3186, %v3266
        %v3437 = vmul.f32 %v3435, 1.442695
        %v3438 = vpow.pop %v3437
        %v3439 = vmul.f32 %v3436, 1.442695
        %v3440 = vpow.pop %v3439
        %v3441 = vadd.f32 %v3429, %v3438
        %v3442 = vadd.f32 %v3430, %v3440
        %v3443 = vmul.f32 %v3438, %v1626
        %v3444 = vmul.f32 %v3440, %v1628
        %v3445 = vadd.f32 %v3433, %v3443
        %v3446 = vadd.f32 %v3434, %v3444
        %v3447 = vsub.f32 %v3187, %v3265
        %v3448 = vsub.f32 %v3188, %v3266
        %v3449 = vmul.f32 %v3447, 1.442695
        %v3450 = vpow.pop %v3449
        %v3451 = vmul.f32 %v3448, 1.442695
        %v3452 = vpow.pop %v3451
        %v3453 = vadd.f32 %v3441, %v3450
        %v3454 = vadd.f32 %v3442, %v3452
        %v3455 = vmul.f32 %v3450, %v1703
        %v3456 = vmul.f32 %v3452, %v1705
        %v3457 = vadd.f32 %v3445, %v3455
        %v3458 = vadd.f32 %v3446, %v3456
        %v3459 = vsub.f32 %v3189, %v3265
        %v3460 = vsub.f32 %v3190, %v3266
        %v3461 = vmul.f32 %v3459, 1.442695
        %v3462 = vpow.pop %v3461
        %v3463 = vmul.f32 %v3460, 1.442695
        %v3464 = vpow.pop %v3463
        %v3465 = vadd.f32 %v3453, %v3462
        %v3466 = vadd.f32 %v3454, %v3464
        %v3467 = vmul.f32 %v3462, %v1780
        %v3468 = vmul.f32 %v3464, %v1782
        %v3469 = vadd.f32 %v3457, %v3467
        %v3470 = vadd.f32 %v3458, %v3468
        %v3471 = vsub.f32 %v3191, %v3265
        %v3472 = vsub.f32 %v3192, %v3266
        %v3473 = vmul.f32 %v3471, 1.442695
        %v3474 = vpow.pop %v3473
        %v3475 = vmul.f32 %v3472, 1.442695
        %v3476 = vpow.pop %v3475
        %v3477 = vadd.f32 %v3465, %v3474
        %v3478 = vadd.f32 %v3466, %v3476
        %v3479 = vmul.f32 %v3474, %v1857
        %v3480 = vmul.f32 %v3476, %v1859
        %v3481 = vadd.f32 %v3469, %v3479
        %v3482 = vadd.f32 %v3470, %v3480
        %v3483 = vsub.f32 %v3193, %v3265
        %v3484 = vsub.f32 %v3194, %v3266
        %v3485 = vmul.f32 %v3483, 1.442695
        %v3486 = vpow.pop %v3485
        %v3487 = vmul.f32 %v3484, 1.442695
        %v3488 = vpow.pop %v3487
        %v3489 = vadd.f32 %v3477, %v3486
        %v3490 = vadd.f32 %v3478, %v3488
        %v3491 = vmul.f32 %v3486, %v1934
        %v3492 = vmul.f32 %v3488, %v1936
        %v3493 = vadd.f32 %v3481, %v3491
        %v3494 = vadd.f32 %v3482, %v3492
        %v3495 = vsub.f32 %v3195, %v3265
        %v3496 = vsub.f32 %v3196, %v3266
        %v3497 = vmul.f32 %v3495, 1.442695
        %v3498 = vpow.pop %v3497
        %v3499 = vmul.f32 %v3496, 1.442695
        %v3500 = vpow.pop %v3499
        %v3501 = vadd.f32 %v3489, %v3498
        %v3502 = vadd.f32 %v3490, %v3500
        %v3503 = vmul.f32 %v3498, %v2011
        %v3504 = vmul.f32 %v3500, %v2013
        %v3505 = vadd.f32 %v3493, %v3503
        %v3506 = vadd.f32 %v3494, %v3504
        %v3507 = vsub.f32 %v3197, %v3265
        %v3508 = vsub.f32 %v3198, %v3266
        %v3509 = vmul.f32 %v3507, 1.442695
        %v3510 = vpow.pop %v3509
        %v3511 = vmul.f32 %v3508, 1.442695
        %v3512 = vpow.pop %v3511
        %v3513 = vadd.f32 %v3501, %v3510
        %v3514 = vadd.f32 %v3502, %v3512
        %v3515 = vmul.f32 %v3510, %v2088
        %v3516 = vmul.f32 %v3512, %v2090
        %v3517 = vadd.f32 %v3505, %v3515
        %v3518 = vadd.f32 %v3506, %v3516
        %v3519 = vsub.f32 %v3199, %v3265
        %v3520 = vsub.f32 %v3200, %v3266
        %v3521 = vmul.f32 %v3519, 1.442695
        %v3522 = vpow.pop %v3521
        %v3523 = vmul.f32 %v3520, 1.442695
        %v3524 = vpow.pop %v3523
        %v3525 = vadd.f32 %v3513, %v3522
        %v3526 = vadd.f32 %v3514, %v3524
        %v3527 = vmul.f32 %v3522, %v2165
        %v3528 = vmul.f32 %v3524, %v2167
        %v3529 = vadd.f32 %v3517, %v3527
        %v3530 = vadd.f32 %v3518, %v3528
        %v3531 = vsub.f32 %v3201, %v3265
        %v3532 = vsub.f32 %v3202, %v3266
        %v3533 = vmul.f32 %v3531, 1.442695
        %v3534 = vpow.pop %v3533
        %v3535 = vmul.f32 %v3532, 1.442695
        %v3536 = vpow.pop %v3535
        %v3537 = vadd.f32 %v3525, %v3534
        %v3538 = vadd.f32 %v3526, %v3536
        %v3539 = vmul.f32 %v3534, %v2242
        %v3540 = vmul.f32 %v3536, %v2244
        %v3541 = vadd.f32 %v3529, %v3539
        %v3542 = vadd.f32 %v3530, %v3540
        %v3543 = vsub.f32 %v3203, %v3265
        %v3544 = vsub.f32 %v3204, %v3266
        %v3545 = vmul.f32 %v3543, 1.442695
        %v3546 = vpow.pop %v3545
        %v3547 = vmul.f32 %v3544, 1.442695
        %v3548 = vpow.pop %v3547
        %v3549 = vadd.f32 %v3537, %v3546
        %v3550 = vadd.f32 %v3538, %v3548
        %v3551 = vmul.f32 %v3546, %v2319
        %v3552 = vmul.f32 %v3548, %v2321
        %v3553 = vadd.f32 %v3541, %v3551
        %v3554 = vadd.f32 %v3542, %v3552
        %v3555 = vsub.f32 %v3205, %v3265
        %v3556 = vsub.f32 %v3206, %v3266
        %v3557 = vmul.f32 %v3555, 1.442695
        %v3558 = vpow.pop %v3557
        %v3559 = vmul.f32 %v3556, 1.442695
        %v3560 = vpow.pop %v3559
        %v3561 = vadd.f32 %v3549, %v3558
        %v3562 = vadd.f32 %v3550, %v3560
        %v3563 = vmul.f32 %v3558, %v2396
        %v3564 = vmul.f32 %v3560, %v2398
        %v3565 = vadd.f32 %v3553, %v3563
        %v3566 = vadd.f32 %v3554, %v3564
        %v3567 = vsub.f32 %v3207, %v3265
        %v3568 = vsub.f32 %v3208, %v3266
        %v3569 = vmul.f32 %v3567, 1.442695
        %v3570 = vpow.pop %v3569
        %v3571 = vmul.f32 %v3568, 1.442695
        %v3572 = vpow.pop %v3571
        %v3573 = vadd.f32 %v3561, %v3570
        %v3574 = vadd.f32 %v3562, %v3572
        %v3575 = vmul.f32 %v3570, %v2473
        %v3576 = vmul.f32 %v3572, %v2475
        %v3577 = vadd.f32 %v3565, %v3575
        %v3578 = vadd.f32 %v3566, %v3576
        %v3579 = vsub.f32 %v3209, %v3265
        %v3580 = vsub.f32 %v3210, %v3266
        %v3581 = vmul.f32 %v3579, 1.442695
        %v3582 = vpow.pop %v3581
        %v3583 = vmul.f32 %v3580, 1.442695
        %v3584 = vpow.pop %v3583
        %v3585 = vadd.f32 %v3573, %v3582
        %v3586 = vadd.f32 %v3574, %v3584
        %v3587 = vmul.f32 %v3582, %v2550
        %v3588 = vmul.f32 %v3584, %v2552
        %v3589 = vadd.f32 %v3577, %v3587
        %v3590 = vadd.f32 %v3578, %v3588
        %v3591 = vsub.f32 %v3211, %v3265
        %v3592 = vsub.f32 %v3212, %v3266
        %v3593 = vmul.f32 %v3591, 1.442695
        %v3594 = vpow.pop %v3593
        %v3595 = vmul.f32 %v3592, 1.442695
        %v3596 = vpow.pop %v3595
        %v3597 = vadd.f32 %v3585, %v3594
        %v3598 = vadd.f32 %v3586, %v3596
        %v3599 = vmul.f32 %v3594, %v2627
        %v3600 = vmul.f32 %v3596, %v2629
        %v3601 = vadd.f32 %v3589, %v3599
        %v3602 = vadd.f32 %v3590, %v3600
        %v3603 = vrcp.pop %v3597
        %v3604 = vrcp.pop %v3598
        %v3605 = vmul.f32 %v3601, %v3603
        %v3606 = vmul.f32 %v3602, %v3604
        %v3607 = vld [vmem:[#allocation3] sm:$0x1]
        %3609 = vset.pattern.permute.xlu0 0
        %3610 = vperm.xlu0 %3609, %v3607
        %v3611 = vpop.permute.xlu0 %3610
        %v3613 = vlaneseq
        %v3614 = vshrl.u32 %v3613, 7
        %v3615 = vsub.s32 0, %v3614
        %v3616 = vrot.slane %v3611, %v3615
        %v3617 = vadd.f32 %v3605, %v3616
        %v3618 = vadd.f32 %v3606, %v3616
        %v3619 = vld [vmem:[%s319] sm:$0x3]
        %v3621 = vlaneseq
        %v3622 = vshrl.u32 %v3621, 7
        %v3623 = vsub.s32 0, %v3622
        %v3624 = vrot.slane %v3619, %v3623
        %v3625 = vlaneseq
        %v3626 = vshrl.u32 %v3625, 7
        %v3627 = vsub.s32 1, %v3626
        %v3628 = vrot.slane %v3619, %v3627
        %v3631 = vadd.f32 %v3617, %v3624
        %v3632 = vadd.f32 %v3618, %v3628
        %v3635 = vcombine.low %v3631, %v3632
        %v3637 = vunpack.c.l.s4 1966171168
        %v3638 = vunpack.c.0.s8 %v3637
        %v3639 = vlaneseq
        %v3640 = vshrl.u32 %v3639, 7
        %v3641 = vsub.s32 %v3638, %v3640
        %v3642 = vrot.slane %v3635, %v3641
        %v3644 = vunpack.c.l.s4 1966171168
        %v3645 = vunpack.c.0.s8 %v3644
        %v3646 = vlaneseq
        %v3647 = vshrl.u32 %v3646, 7
        %v3648 = vsub.s32 %v3645, %v3647
        %v3649 = vrot.slane %v3642, %v3648
        %v3651 = vlaneseq
        %vm3652 = vcmp.ge.s32.totalorder %v3651, 0
        %vm3653 = vcmp.lt.s32.totalorder %v3651, 256
        %vm3654 = vmand %vm3652, %vm3653
        %3655 = vst.msk [vmem:[%s314] sm:$0x3] %vm3654, %v3649
        %s3656 = sand.u32 %s193, 1
        %s3657 = scalar_lea.sflag [#allocation6], %s3656
        %s3658 = sand.u32 %s193, 1
        %s3659 = smul.addr %s3658, 2
        %s3660 = scalar_lea.vmem [#allocation7], %s3659
        // Predicated region
        $region53: #{tpu_custom_call.1} parent=47 // pred_check
          %p3661 = pneg %p203
        $region54: #{tpu_custom_call.1} parent=47 // pred_check_branch
          %3663 = sbr.rel (%p3661) target = $region56
        $region55: #{tpu_custom_call.1} parent=47 // pred_region
          %s3664 = smul.u32 2, %s28
          %s3666 = ssub.s32 32, 32
          %3667 = vsyncadd %s3657, %s3666
          %s3668 = smul.addr %s3664, 16
          %s3669 = scalar_lea.hbm %s7, %s3668
          %s3671 = sshll.u32 %s3660, 4
          %s3672 = int_to_ptr.vmem [resolvable:$true] %s3671
          %3674 = dma.vmem_to_hbm [thread:$0]  %s3672, 32, %s3669, %s3657
        $region56: #{tpu_custom_call.1} parent=47 // pred_fallthru
          _
      $region48: #{tpu_custom_call.1} parent=5 // pred_fallthru
        _
      %p3675 = scmp.le.s32.totalorder 2, %s23
      // Predicated region
      $region57: #{tpu_custom_call.1} parent=5 // pred_check
        %p3676 = pneg %p3675
      $region58: #{tpu_custom_call.1} parent=5 // pred_check_branch
        %3678 = sbr.rel (%p3676) target = $region60
      $region59: #{tpu_custom_call.1} parent=5 // pred_region
        %s3679 = ssub.s32 %s23, 2
        // Predicated region
        $region61: #{tpu_custom_call.1} parent=59 // pred_check
          %p3680 = pneg %p209
        $region62: #{tpu_custom_call.1} parent=59 // pred_check_branch
          %3682 = sbr.rel (%p3680) target = $region64
        $region63: #{tpu_custom_call.1} parent=59 // pred_region
          %s3683 = sand.u32 %s194, 1
          %s3684 = scalar_lea.sflag [#allocation6], %s3683
          %s3685 = sand.u32 %s194, 1
          %s3686 = smul.addr %s3685, 2
          %s3687 = scalar_lea.vmem [#allocation7], %s3686
          %3688 = dma.done %s3684, 32
        $region64: #{tpu_custom_call.1} parent=59 // pred_fallthru
          _
      $region60: #{tpu_custom_call.1} parent=5 // pred_fallthru
        _
    $region6: #{tpu_custom_call.1} parent=1 // loop_footer
      %s27 = sadd.s32 1, %s23
    $region7: #{tpu_custom_call.1} parent=1 // loop_footer_branch
      %22 = sbr.rel target = $region3
    $region8: #{tpu_custom_call.1} parent=1 // loop_exit
      _
    %3689 = vsyncpa [#allocation5], 1
    %s3690 = scalar_lea.sflag [#allocation5], 1
    %3691 = vsyncpa %s3690, 1
    %3692 = vsyncpa [#allocation6], 1
    %s3693 = scalar_lea.sflag [#allocation6], 1
    %3694 = vsyncpa %s3693, 1

</llo_original>
